<compile_context>
chip_gen: v6e
topology: v6e:2x2x1
jax: 0.10.0
libtpu: 0.0.40
codegen_flags: <defaults>
</compile_context>

<pallas_src>
import functools
import math

import jax
import jax.numpy as jnp
from jax.experimental import pallas as pl
from jax.experimental.pallas import tpu as pltpu


VMEM_LIMIT_BYTES = 48 * 1024 * 1024   # v7x-safe budget (64 MiB physical, leave headroom)


# ---------------------------------------------------------------------------
# in-kernel helpers (f32 elementwise math)
# ---------------------------------------------------------------------------

def _layernorm(x, g, b):
    mu = jnp.mean(x, axis=-1, keepdims=True)
    xc = x - mu
    var = jnp.mean(xc * xc, axis=-1, keepdims=True)
    return xc * jax.lax.rsqrt(var + 1e-5) * g + b


def _gelu_tanh(x):
    # tanh-form GELU (EUP tanh slot).  Slight divergence from exact-erf nn.GELU.
    c = math.sqrt(2.0 / math.pi)
    return 0.5 * x * (1.0 + jnp.tanh(c * (x + 0.044715 * x * x * x)))


def _round_up(x, m):
    return ((x + m - 1) // m) * m


def _choose_tg(t, bp, target_rows=512):
    """Largest divisor of t such that tg*bp is close to target_rows."""
    tg = max(1, min(t, max(1, target_rows // bp)))
    while t % tg:
        tg -= 1
    return tg


# ---------------------------------------------------------------------------
# fused transformer-block kernel: LN1 -> QKV -> per-t attention -> out-proj ->
# residual -> LN2 -> FC1 -> GELU -> FC2 -> residual, one grid step per t-tile
# ---------------------------------------------------------------------------

def _block_kernel(x_ref, ln1_g, ln1_b, w_qkv, b_qkv, w_o, b_o,
                  ln2_g, ln2_b, w_fc1, b_fc1, w_fc2, b_fc2,
                  o_ref, attn_sc, *, n_head, head_dim, b_real):
    tg, bp, e = x_ref.shape
    rows = tg * bp                                       # bp is a multiple of 8
    x = x_ref[...].reshape(rows, e)                      # (rows, E) f32

    # ---- LN1 + fused QKV projection (bf16 operands, f32 accumulation) ----
    h = _layernorm(x, ln1_g[...], ln1_b[...])
    qkv = jnp.dot(h.astype(jnp.bfloat16), w_qkv[...],
                  preferred_element_type=jnp.float32) + b_qkv[...]   # (rows, 3E)

    # ---- per-timestep attention over the (padded) batch axis ----
    scale = 1.0 / math.sqrt(head_dim)
    for hidx in range(n_head):                           # static unroll, H small
        lo = hidx * head_dim
        q_h = qkv[:, lo:lo + head_dim].reshape(tg, bp, head_dim).astype(jnp.bfloat16)
        k_h = qkv[:, e + lo:e + lo + head_dim].reshape(tg, bp, head_dim).astype(jnp.bfloat16)
        v_h = qkv[:, 2 * e + lo:2 * e + lo + head_dim].reshape(tg, bp, head_dim).astype(jnp.bfloat16)
        s = jnp.einsum('tqd,tkd->tqk', q_h, k_h,
                       preferred_element_type=jnp.float32) * scale   # (tg, bp, bp)
        if bp != b_real:                                  # mask padded key columns
            col = jax.lax.broadcasted_iota(jnp.int32, s.shape, 2)
            s = jnp.where(col < b_real, s, -1e30)
        s = s - jnp.max(s, axis=-1, keepdims=True)
        p = jnp.exp(s)
        p = p * (1.0 / jnp.sum(p, axis=-1, keepdims=True))           # exact reciprocal
        o_h = jnp.einsum('tqk,tkd->tqd', p.astype(jnp.bfloat16), v_h,
                         preferred_element_type=jnp.float32)          # (tg, bp, hd)
        attn_sc[:, lo:lo + head_dim] = o_h.reshape(rows, head_dim)

    # single full-K out-projection from the lane-aligned head scratch
    attn = jnp.dot(attn_sc[...].astype(jnp.bfloat16), w_o[...],
                   preferred_element_type=jnp.float32) + b_o[...]
    x = x + attn                                          # residual (dropout = identity)

    # ---- LN2 + MLP (FC1 -> GELU -> FC2) + residual ----
    h2 = _layernorm(x, ln2_g[...], ln2_b[...])
    m = jnp.dot(h2.astype(jnp.bfloat16), w_fc1[...],
                preferred_element_type=jnp.float32) + b_fc1[...]
    m = _gelu_tanh(m)
    m = jnp.dot(m.astype(jnp.bfloat16), w_fc2[...],
                preferred_element_type=jnp.float32) + b_fc2[...]
    o_ref[...] = (x + m).reshape(tg, bp, e)


def gpt_block(x, lp, n_head, *, b_real, tg):
    t, bp, e = x.shape
    kernel = functools.partial(_block_kernel, n_head=n_head,
                               head_dim=e // n_head, b_real=b_real)

    def wspec(shape):
        return pl.BlockSpec(shape, lambda i, _s=shape: (0,) * len(_s))

    return pl.pallas_call(
        kernel,
        out_shape=jax.ShapeDtypeStruct((t, bp, e), jnp.float32),
        grid=(t // tg,),
        in_specs=[
            pl.BlockSpec((tg, bp, e), lambda i: (i, 0, 0)),          # activations (tiled)
            wspec((1, e)), wspec((1, e)),                            # ln1
            wspec((e, 3 * e)), wspec((1, 3 * e)),                    # qkv proj
            wspec((e, e)), wspec((1, e)),                            # out proj
            wspec((1, e)), wspec((1, e)),                            # ln2
            wspec((e, 4 * e)), wspec((1, 4 * e)),                    # fc1
            wspec((4 * e, e)), wspec((1, e)),                        # fc2
        ],
        out_specs=pl.BlockSpec((tg, bp, e), lambda i: (i, 0, 0)),
        scratch_shapes=[pltpu.VMEM((tg * bp, e), jnp.float32)],      # head-output scratch
        compiler_params=pltpu.CompilerParams(
            dimension_semantics=("parallel",),
            vmem_limit_bytes=VMEM_LIMIT_BYTES),
    )(x, lp["ln1_g"], lp["ln1_b"], lp["attn_in_w"], lp["attn_in_b"],
      lp["attn_out_w"], lp["attn_out_b"], lp["ln2_g"], lp["ln2_b"],
      lp["fc1_w"], lp["fc1_b"], lp["fc2_w"], lp["fc2_b"])


# ---------------------------------------------------------------------------
# fused final LayerNorm + lm_head, gridded over lane-dense vocab tiles
# ---------------------------------------------------------------------------

def _lmhead_kernel(x_ref, g_ref, b_ref, w_ref, o_ref):
    xn = _layernorm(x_ref[...], g_ref[...], b_ref[...])
    o_ref[...] = jnp.dot(xn.astype(jnp.bfloat16), w_ref[...],
                         preferred_element_type=jnp.float32)


def lm_head(x2d, g, b, w_pad):
    n, e = x2d.shape
    vp = w_pad.shape[1]
    tv = vp if vp <= 512 else 512          # vp is padded so tv always divides it
    return pl.pallas_call(
        _lmhead_kernel,
        out_shape=jax.ShapeDtypeStruct((n, vp), jnp.float32),
        grid=(vp // tv,),
        in_specs=[
            pl.BlockSpec((n, e), lambda j: (0, 0)),
            pl.BlockSpec((1, e), lambda j: (0, 0)),
            pl.BlockSpec((1, e), lambda j: (0, 0)),
            pl.BlockSpec((e, tv), lambda j: (0, j)),
        ],
        out_specs=pl.BlockSpec((n, tv), lambda j: (0, j)),
        compiler_params=pltpu.CompilerParams(
            dimension_semantics=("parallel",),
            vmem_limit_bytes=VMEM_LIMIT_BYTES),
    )(x2d, g, b, w_pad)


# ---------------------------------------------------------------------------
# parameters (pre-transposed, matmul weights stored bf16) and forward pass
# ---------------------------------------------------------------------------

def init_params(key, cfg):
    E, V, BS, L = cfg["n_embd"], cfg["vocab_size"], cfg["block_size"], cfg["n_layer"]
    vp128 = _round_up(V, 128)
    Vp = vp128 if vp128 <= 512 else _round_up(V, 512)    # lane-dense vocab tiles
    keys = iter(jax.random.split(key, 3 + 4 * L))

    def normal(shape):
        return 0.02 * jax.random.normal(next(keys), shape, jnp.float32)

    lm_w = jnp.pad(normal((E, V)), ((0, 0), (0, Vp - V))).astype(jnp.bfloat16)
    params = {
        "wte": normal((V, E)),
        "wpe": normal((BS, E)),
        "lnf_g": jnp.ones((1, E), jnp.float32),
        "lnf_b": jnp.zeros((1, E), jnp.float32),
        "lm_head_w": lm_w,                                # (E, Vp) bf16, pre-transposed
        "layers": [],
    }
    for _ in range(L):
        params["layers"].append({
            "ln1_g": jnp.ones((1, E), jnp.float32),
            "ln1_b": jnp.zeros((1, E), jnp.float32),
            "attn_in_w": normal((E, 3 * E)).astype(jnp.bfloat16),   # pre-transposed in_proj
            "attn_in_b": jnp.zeros((1, 3 * E), jnp.float32),
            "attn_out_w": normal((E, E)).astype(jnp.bfloat16),      # pre-transposed out_proj
            "attn_out_b": jnp.zeros((1, E), jnp.float32),
            "ln2_g": jnp.ones((1, E), jnp.float32),
            "ln2_b": jnp.zeros((1, E), jnp.float32),
            "fc1_w": normal((E, 4 * E)).astype(jnp.bfloat16),
            "fc1_b": jnp.zeros((1, 4 * E), jnp.float32),
            "fc2_w": normal((4 * E, E)).astype(jnp.bfloat16),
            "fc2_b": jnp.zeros((1, E), jnp.float32),
        })
    return params


def gpt_forward(idx, params, cfg):
    b, t = idx.shape
    E, V, H = cfg["n_embd"], cfg["vocab_size"], cfg["n_head"]
    bp = _round_up(b, 8)                                  # sublane-aligned batch group
    # embedding gather + positional add kept as JAX glue (data-dependent gather)
    x = params["wte"][idx] + params["wpe"][:t][None, :, :]          # (B, T, E)
    x = jnp.transpose(x, (1, 0, 2))                                  # (T, B, E)
    if bp != b:
        x = jnp.pad(x, ((0, 0), (0, bp - b), (0, 0)))                # (T, Bp, E)
    tg = _choose_tg(t, bp)
    for lp in params["layers"]:
        x = gpt_block(x, lp, H, b_real=b, tg=tg)
    logits = lm_head(x.reshape(t * bp, E), params["lnf_g"], params["lnf_b"],
                     params["lm_head_w"])
    logits = logits.reshape(t, bp, -1)[:, :b, :V]                    # drop batch/vocab pad
    return jnp.transpose(logits, (1, 0, 2))                          # (B, T, V)
    # TODO(synk): targets/cross-entropy loss branch and generate() sampling loop
    # (torch.multinomial) not implemented.


if __name__ == "__main__":
    cfg = dict(vocab_size=64, block_size=16, n_embd=32, n_head=4, n_layer=2, dropout=0.0)
    key = jax.random.PRNGKey(0)
    pkey, ikey = jax.random.split(key)
    params = init_params(pkey, cfg)
    idx = jax.random.randint(ikey, (2, 8), 0, cfg["vocab_size"], dtype=jnp.int32)

    fwd = jax.jit(lambda i, p: gpt_forward(i, p, cfg))
    logits = fwd(idx, params)
    jax.block_until_ready(logits)
    assert logits.shape == (2, 8, cfg["vocab_size"]), logits.shape
    assert bool(jnp.all(jnp.isfinite(logits)))
    print("KERNEL_OK")
</pallas_src>

<mosaic_0001>
module attributes {stable_mosaic.version = 11 : i64} {
  func.func @_lmhead_kernel(%arg0: i32, %arg1: memref<64x32xf32, #tpu.memory_space<vmem>>, %arg2: memref<1x32xf32, #tpu.memory_space<vmem>>, %arg3: memref<1x32xf32, #tpu.memory_space<vmem>>, %arg4: memref<32x128xbf16, #tpu.memory_space<vmem>>, %arg5: memref<64x128xf32, #tpu.memory_space<vmem>>) attributes {dimension_semantics = [#tpu.dimension_semantics<parallel>], iteration_bounds = array<i64: 1>, scalar_prefetch = 0 : i64, scratch_operands = 0 : i64, tpu.core_type = #tpu.core_type<tc>, window_params = [{pipeline_mode = #tpu.pipeline_mode<synchronous>, transform_indices = @transform_0, window_bounds = array<i64: 64, 32>}, {pipeline_mode = #tpu.pipeline_mode<synchronous>, transform_indices = @transform_1, window_bounds = array<i64: 1, 32>}, {pipeline_mode = #tpu.pipeline_mode<synchronous>, transform_indices = @transform_2, window_bounds = array<i64: 1, 32>}, {transform_indices = @transform_3, window_bounds = array<i64: 32, 128>}, {transform_indices = @transform_4, window_bounds = array<i64: 64, 128>}]} {
    %c0 = arith.constant 0 : index
    %c0_0 = arith.constant 0 : index
    %0 = vector.load %arg1[%c0, %c0_0] : memref<64x32xf32, #tpu.memory_space<vmem>>, vector<64x32xf32>
    %c0_1 = arith.constant 0 : index
    %c0_2 = arith.constant 0 : index
    %1 = vector.load %arg2[%c0_1, %c0_2] : memref<1x32xf32, #tpu.memory_space<vmem>>, vector<1x32xf32>
    %c0_3 = arith.constant 0 : index
    %c0_4 = arith.constant 0 : index
    %2 = vector.load %arg3[%c0_3, %c0_4] : memref<1x32xf32, #tpu.memory_space<vmem>>, vector<1x32xf32>
    %cst = arith.constant dense<0.000000e+00> : vector<64xf32>
    %3 = vector.multi_reduction <add>, %0, %cst [1] : vector<64x32xf32> to vector<64xf32>
    %4 = vector.shape_cast %3 : vector<64xf32> to vector<64x1xf32>
    %cst_5 = arith.constant 3.200000e+01 : f32
    %5 = vector.broadcast %cst_5 : f32 to vector<64x1xf32>
    %6 = arith.divf %4, %5 : vector<64x1xf32>
    %7 = vector.broadcast %6 : vector<64x1xf32> to vector<64x32xf32>
    %8 = arith.subf %0, %7 : vector<64x32xf32>
    %9 = arith.mulf %8, %8 : vector<64x32xf32>
    %cst_6 = arith.constant dense<0.000000e+00> : vector<64xf32>
    %10 = vector.multi_reduction <add>, %9, %cst_6 [1] : vector<64x32xf32> to vector<64xf32>
    %11 = vector.shape_cast %10 : vector<64xf32> to vector<64x1xf32>
    %cst_7 = arith.constant 3.200000e+01 : f32
    %12 = vector.broadcast %cst_7 : f32 to vector<64x1xf32>
    %13 = arith.divf %11, %12 : vector<64x1xf32>
    %cst_8 = arith.constant 9.99999974E-6 : f32
    %14 = vector.broadcast %cst_8 : f32 to vector<64x1xf32>
    %15 = arith.addf %13, %14 : vector<64x1xf32>
    %16 = math.rsqrt %15 : vector<64x1xf32>
    %17 = vector.broadcast %16 : vector<64x1xf32> to vector<64x32xf32>
    %18 = arith.mulf %8, %17 : vector<64x32xf32>
    %19 = vector.broadcast %1 : vector<1x32xf32> to vector<64x32xf32>
    %20 = arith.mulf %18, %19 : vector<64x32xf32>
    %21 = vector.broadcast %2 : vector<1x32xf32> to vector<64x32xf32>
    %22 = arith.addf %20, %21 : vector<64x32xf32>
    %23 = arith.truncf %22 : vector<64x32xf32> to vector<64x32xbf16>
    %c0_9 = arith.constant 0 : index
    %c0_10 = arith.constant 0 : index
    %24 = vector.load %arg4[%c0_9, %c0_10] : memref<32x128xbf16, #tpu.memory_space<vmem>>, vector<32x128xbf16>
    %cst_11 = arith.constant dense<0.000000e+00> : vector<64x128xf32>
    %25 = tpu.matmul %23, %24, %cst_11 {dimension_numbers = #tpu.dot_dimension_numbers<[1], [0], [0], [1], [0, 0, 1, 1], [], []>} : vector<64x32xbf16>, vector<32x128xbf16>, vector<64x128xf32> -> vector<64x128xf32>
    %c0_12 = arith.constant 0 : index
    %c0_13 = arith.constant 0 : index
    %26 = vector.load %arg5[%c0_12, %c0_13] : memref<64x128xf32, #tpu.memory_space<vmem>>, vector<64x128xf32>
    tpu.vector_store %arg5[%c0_12, %c0_13], %25 {strides = array<i32>} : memref<64x128xf32, #tpu.memory_space<vmem>>, vector<64x128xf32>,
    return
  }
  func.func @transform_0(%arg0: i32) -> (i32, i32) {
    %c0_i32 = arith.constant 0 : i32
    %c0_i32_0 = arith.constant 0 : i32
    %c0_i32_1 = arith.constant 0 : i32
    return %c0_i32, %c0_i32_0 : i32, i32
  }
  func.func @transform_1(%arg0: i32) -> (i32, i32) {
    %c0_i32 = arith.constant 0 : i32
    %c0_i32_0 = arith.constant 0 : i32
    %c0_i32_1 = arith.constant 0 : i32
    return %c0_i32, %c0_i32_0 : i32, i32
  }
  func.func @transform_2(%arg0: i32) -> (i32, i32) {
    %c0_i32 = arith.constant 0 : i32
    %c0_i32_0 = arith.constant 0 : i32
    %c0_i32_1 = arith.constant 0 : i32
    return %c0_i32, %c0_i32_0 : i32, i32
  }
  func.func @transform_3(%arg0: i32) -> (i32, i32) {
    %c0_i32 = arith.constant 0 : i32
    %c0_i32_0 = arith.constant 0 : i32
    return %c0_i32, %arg0 : i32, i32
  }
  func.func @transform_4(%arg0: i32) -> (i32, i32) {
    %c0_i32 = arith.constant 0 : i32
    %c0_i32_0 = arith.constant 0 : i32
    return %c0_i32, %arg0 : i32, i32
  }
}

module attributes {stable_mosaic.version = 11 : i64} {
  func.func @_block_kernel(%arg0: i32, %arg1: memref<8x8x32xf32, #tpu.memory_space<vmem>>, %arg2: memref<1x32xf32, #tpu.memory_space<vmem>>, %arg3: memref<1x32xf32, #tpu.memory_space<vmem>>, %arg4: memref<32x96xbf16, #tpu.memory_space<vmem>>, %arg5: memref<1x96xf32, #tpu.memory_space<vmem>>, %arg6: memref<32x32xbf16, #tpu.memory_space<vmem>>, %arg7: memref<1x32xf32, #tpu.memory_space<vmem>>, %arg8: memref<1x32xf32, #tpu.memory_space<vmem>>, %arg9: memref<1x32xf32, #tpu.memory_space<vmem>>, %arg10: memref<32x128xbf16, #tpu.memory_space<vmem>>, %arg11: memref<1x128xf32, #tpu.memory_space<vmem>>, %arg12: memref<128x32xbf16, #tpu.memory_space<vmem>>, %arg13: memref<1x32xf32, #tpu.memory_space<vmem>>, %arg14: memref<8x8x32xf32, #tpu.memory_space<vmem>>, %arg15: memref<64x32xf32, #tpu.memory_space<vmem>>) attributes {dimension_semantics = [#tpu.dimension_semantics<parallel>], iteration_bounds = array<i64: 1>, scalar_prefetch = 0 : i64, scratch_operands = 1 : i64, tpu.core_type = #tpu.core_type<tc>, window_params = [{transform_indices = @transform_0, window_bounds = array<i64: 8, 8, 32>}, {pipeline_mode = #tpu.pipeline_mode<synchronous>, transform_indices = @transform_1, window_bounds = array<i64: 1, 32>}, {pipeline_mode = #tpu.pipeline_mode<synchronous>, transform_indices = @transform_2, window_bounds = array<i64: 1, 32>}, {pipeline_mode = #tpu.pipeline_mode<synchronous>, transform_indices = @transform_3, window_bounds = array<i64: 32, 96>}, {pipeline_mode = #tpu.pipeline_mode<synchronous>, transform_indices = @transform_4, window_bounds = array<i64: 1, 96>}, {pipeline_mode = #tpu.pipeline_mode<synchronous>, transform_indices = @transform_5, window_bounds = array<i64: 32, 32>}, {pipeline_mode = #tpu.pipeline_mode<synchronous>, transform_indices = @transform_6, window_bounds = array<i64: 1, 32>}, {pipeline_mode = #tpu.pipeline_mode<synchronous>, transform_indices = @transform_7, window_bounds = array<i64: 1, 32>}, {pipeline_mode = #tpu.pipeline_mode<synchronous>, transform_indices = @transform_8, window_bounds = array<i64: 1, 32>}, {pipeline_mode = #tpu.pipeline_mode<synchronous>, transform_indices = @transform_9, window_bounds = array<i64: 32, 128>}, {pipeline_mode = #tpu.pipeline_mode<synchronous>, transform_indices = @transform_10, window_bounds = array<i64: 1, 128>}, {pipeline_mode = #tpu.pipeline_mode<synchronous>, transform_indices = @transform_11, window_bounds = array<i64: 128, 32>}, {pipeline_mode = #tpu.pipeline_mode<synchronous>, transform_indices = @transform_12, window_bounds = array<i64: 1, 32>}, {transform_indices = @transform_13, window_bounds = array<i64: 8, 8, 32>}]} {
    %c0 = arith.constant 0 : index
    %c0_0 = arith.constant 0 : index
    %c0_1 = arith.constant 0 : index
    %0 = vector.load %arg1[%c0, %c0_0, %c0_1] : memref<8x8x32xf32, #tpu.memory_space<vmem>>, vector<8x8x32xf32>
    %1 = vector.shape_cast %0 : vector<8x8x32xf32> to vector<64x32xf32>
    %c0_2 = arith.constant 0 : index
    %c0_3 = arith.constant 0 : index
    %2 = vector.load %arg2[%c0_2, %c0_3] : memref<1x32xf32, #tpu.memory_space<vmem>>, vector<1x32xf32>
    %c0_4 = arith.constant 0 : index
    %c0_5 = arith.constant 0 : index
    %3 = vector.load %arg3[%c0_4, %c0_5] : memref<1x32xf32, #tpu.memory_space<vmem>>, vector<1x32xf32>
    %cst = arith.constant dense<0.000000e+00> : vector<64xf32>
    %4 = vector.multi_reduction <add>, %1, %cst [1] : vector<64x32xf32> to vector<64xf32>
    %5 = vector.shape_cast %4 : vector<64xf32> to vector<64x1xf32>
    %cst_6 = arith.constant 3.200000e+01 : f32
    %6 = vector.broadcast %cst_6 : f32 to vector<64x1xf32>
    %7 = arith.divf %5, %6 : vector<64x1xf32>
    %8 = vector.broadcast %7 : vector<64x1xf32> to vector<64x32xf32>
    %9 = arith.subf %1, %8 : vector<64x32xf32>
    %10 = arith.mulf %9, %9 : vector<64x32xf32>
    %cst_7 = arith.constant dense<0.000000e+00> : vector<64xf32>
    %11 = vector.multi_reduction <add>, %10, %cst_7 [1] : vector<64x32xf32> to vector<64xf32>
    %12 = vector.shape_cast %11 : vector<64xf32> to vector<64x1xf32>
    %cst_8 = arith.constant 3.200000e+01 : f32
    %13 = vector.broadcast %cst_8 : f32 to vector<64x1xf32>
    %14 = arith.divf %12, %13 : vector<64x1xf32>
    %cst_9 = arith.constant 9.99999974E-6 : f32
    %15 = vector.broadcast %cst_9 : f32 to vector<64x1xf32>
    %16 = arith.addf %14, %15 : vector<64x1xf32>
    %17 = math.rsqrt %16 : vector<64x1xf32>
    %18 = vector.broadcast %17 : vector<64x1xf32> to vector<64x32xf32>
    %19 = arith.mulf %9, %18 : vector<64x32xf32>
    %20 = vector.broadcast %2 : vector<1x32xf32> to vector<64x32xf32>
    %21 = arith.mulf %19, %20 : vector<64x32xf32>
    %22 = vector.broadcast %3 : vector<1x32xf32> to vector<64x32xf32>
    %23 = arith.addf %21, %22 : vector<64x32xf32>
    %24 = arith.truncf %23 : vector<64x32xf32> to vector<64x32xbf16>
    %c0_10 = arith.constant 0 : index
    %c0_11 = arith.constant 0 : index
    %25 = vector.load %arg4[%c0_10, %c0_11] : memref<32x96xbf16, #tpu.memory_space<vmem>>, vector<32x96xbf16>
    %cst_12 = arith.constant dense<0.000000e+00> : vector<64x96xf32>
    %26 = tpu.matmul %24, %25, %cst_12 {dimension_numbers = #tpu.dot_dimension_numbers<[1], [0], [0], [1], [0, 0, 1, 1], [], []>} : vector<64x32xbf16>, vector<32x96xbf16>, vector<64x96xf32> -> vector<64x96xf32>
    %c0_13 = arith.constant 0 : index
    %c0_14 = arith.constant 0 : index
    %27 = vector.load %arg5[%c0_13, %c0_14] : memref<1x96xf32, #tpu.memory_space<vmem>>, vector<1x96xf32>
    %28 = vector.broadcast %27 : vector<1x96xf32> to vector<64x96xf32>
    %29 = arith.addf %26, %28 : vector<64x96xf32>
    %30 = vector.extract_strided_slice %29 {offsets = [0, 0], sizes = [64, 8], strides = [1, 1]} : vector<64x96xf32> to vector<64x8xf32>
    %31 = vector.shape_cast %30 : vector<64x8xf32> to vector<8x8x8xf32>
    %32 = arith.truncf %31 : vector<8x8x8xf32> to vector<8x8x8xbf16>
    %33 = vector.extract_strided_slice %29 {offsets = [0, 32], sizes = [64, 8], strides = [1, 1]} : vector<64x96xf32> to vector<64x8xf32>
    %34 = vector.shape_cast %33 : vector<64x8xf32> to vector<8x8x8xf32>
    %35 = arith.truncf %34 : vector<8x8x8xf32> to vector<8x8x8xbf16>
    %36 = vector.extract_strided_slice %29 {offsets = [0, 64], sizes = [64, 8], strides = [1, 1]} : vector<64x96xf32> to vector<64x8xf32>
    %37 = vector.shape_cast %36 : vector<64x8xf32> to vector<8x8x8xf32>
    %38 = arith.truncf %37 : vector<8x8x8xf32> to vector<8x8x8xbf16>
    "tpu.trace_start"() <{level = 10 : i32, message = "tqd,tkd->tqk"}> : () -> ()
    %cst_15 = arith.constant dense<0.000000e+00> : vector<8x8x8xf32>
    %39 = tpu.matmul %32, %35, %cst_15 {dimension_numbers = #tpu.dot_dimension_numbers<[2], [2], [1], [1], [0, 0, 0, 1, 1, 1], [0], [0]>} : vector<8x8x8xbf16>, vector<8x8x8xbf16>, vector<8x8x8xf32> -> vector<8x8x8xf32>
    "tpu.trace_stop"() : () -> ()
    %cst_16 = arith.constant 0.353553385 : f32
    %40 = vector.broadcast %cst_16 : f32 to vector<8x8x8xf32>
    %41 = arith.mulf %39, %40 : vector<8x8x8xf32>
    %42 = tpu.iota {dimensions = array<i32: 2>} : vector<8x8x8xi32>
    %c2_i32 = arith.constant 2 : i32
    %43 = vector.broadcast %c2_i32 : i32 to vector<8x8x8xi32>
    %44 = arith.cmpi slt, %42, %43 : vector<8x8x8xi32>
    %cst_17 = arith.constant -1.000000e+30 : f32
    %45 = vector.broadcast %cst_17 : f32 to vector<8x8x8xf32>
    %46 = arith.select %44, %41, %45 : vector<8x8x8xi1>, vector<8x8x8xf32>
    %cst_18 = arith.constant dense<0xFF800000> : vector<8x8xf32>
    %47 = vector.multi_reduction <maximumf>, %46, %cst_18 [2] : vector<8x8x8xf32> to vector<8x8xf32>
    %48 = vector.shape_cast %47 : vector<8x8xf32> to vector<8x8x1xf32>
    %49 = vector.broadcast %48 : vector<8x8x1xf32> to vector<8x8x8xf32>
    %50 = arith.subf %46, %49 : vector<8x8x8xf32>
    %51 = math.exp %50 : vector<8x8x8xf32>
    %cst_19 = arith.constant dense<0.000000e+00> : vector<8x8xf32>
    %52 = vector.multi_reduction <add>, %51, %cst_19 [2] : vector<8x8x8xf32> to vector<8x8xf32>
    %53 = vector.shape_cast %52 : vector<8x8xf32> to vector<8x8x1xf32>
    %cst_20 = arith.constant 1.000000e+00 : f32
    %54 = vector.broadcast %cst_20 : f32 to vector<8x8x1xf32>
    %55 = arith.divf %54, %53 : vector<8x8x1xf32>
    %56 = vector.broadcast %55 : vector<8x8x1xf32> to vector<8x8x8xf32>
    %57 = arith.mulf %51, %56 : vector<8x8x8xf32>
    %58 = arith.truncf %57 : vector<8x8x8xf32> to vector<8x8x8xbf16>
    "tpu.trace_start"() <{level = 10 : i32, message = "tqk,tkd->tqd"}> : () -> ()
    %cst_21 = arith.constant dense<0.000000e+00> : vector<8x8x8xf32>
    %59 = tpu.matmul %58, %38, %cst_21 {dimension_numbers = #tpu.dot_dimension_numbers<[2], [1], [1], [2], [0, 0, 0, 1, 1, 2], [0], [0]>} : vector<8x8x8xbf16>, vector<8x8x8xbf16>, vector<8x8x8xf32> -> vector<8x8x8xf32>
    "tpu.trace_stop"() : () -> ()
    %60 = vector.shape_cast %59 : vector<8x8x8xf32> to vector<64x8xf32>
    %c0_22 = arith.constant 0 : index
    %c0_23 = arith.constant 0 : index
    %61 = vector.load %arg15[%c0_22, %c0_23] : memref<64x32xf32, #tpu.memory_space<vmem>>, vector<64x8xf32>
    tpu.vector_store %arg15[%c0_22, %c0_23], %60 {strides = array<i32>} : memref<64x32xf32, #tpu.memory_space<vmem>>, vector<64x8xf32>,
    %62 = vector.extract_strided_slice %29 {offsets = [0, 8], sizes = [64, 8], strides = [1, 1]} : vector<64x96xf32> to vector<64x8xf32>
    %63 = vector.shape_cast %62 : vector<64x8xf32> to vector<8x8x8xf32>
    %64 = arith.truncf %63 : vector<8x8x8xf32> to vector<8x8x8xbf16>
    %65 = vector.extract_strided_slice %29 {offsets = [0, 40], sizes = [64, 8], strides = [1, 1]} : vector<64x96xf32> to vector<64x8xf32>
    %66 = vector.shape_cast %65 : vector<64x8xf32> to vector<8x8x8xf32>
    %67 = arith.truncf %66 : vector<8x8x8xf32> to vector<8x8x8xbf16>
    %68 = vector.extract_strided_slice %29 {offsets = [0, 72], sizes = [64, 8], strides = [1, 1]} : vector<64x96xf32> to vector<64x8xf32>
    %69 = vector.shape_cast %68 : vector<64x8xf32> to vector<8x8x8xf32>
    %70 = arith.truncf %69 : vector<8x8x8xf32> to vector<8x8x8xbf16>
    "tpu.trace_start"() <{level = 10 : i32, message = "tqd,tkd->tqk"}> : () -> ()
    %cst_24 = arith.constant dense<0.000000e+00> : vector<8x8x8xf32>
    %71 = tpu.matmul %64, %67, %cst_24 {dimension_numbers = #tpu.dot_dimension_numbers<[2], [2], [1], [1], [0, 0, 0, 1, 1, 1], [0], [0]>} : vector<8x8x8xbf16>, vector<8x8x8xbf16>, vector<8x8x8xf32> -> vector<8x8x8xf32>
    "tpu.trace_stop"() : () -> ()
    %cst_25 = arith.constant 0.353553385 : f32
    %72 = vector.broadcast %cst_25 : f32 to vector<8x8x8xf32>
    %73 = arith.mulf %71, %72 : vector<8x8x8xf32>
    %74 = tpu.iota {dimensions = array<i32: 2>} : vector<8x8x8xi32>
    %c2_i32_26 = arith.constant 2 : i32
    %75 = vector.broadcast %c2_i32_26 : i32 to vector<8x8x8xi32>
    %76 = arith.cmpi slt, %74, %75 : vector<8x8x8xi32>
    %cst_27 = arith.constant -1.000000e+30 : f32
    %77 = vector.broadcast %cst_27 : f32 to vector<8x8x8xf32>
    %78 = arith.select %76, %73, %77 : vector<8x8x8xi1>, vector<8x8x8xf32>
    %cst_28 = arith.constant dense<0xFF800000> : vector<8x8xf32>
    %79 = vector.multi_reduction <maximumf>, %78, %cst_28 [2] : vector<8x8x8xf32> to vector<8x8xf32>
    %80 = vector.shape_cast %79 : vector<8x8xf32> to vector<8x8x1xf32>
    %81 = vector.broadcast %80 : vector<8x8x1xf32> to vector<8x8x8xf32>
    %82 = arith.subf %78, %81 : vector<8x8x8xf32>
    %83 = math.exp %82 : vector<8x8x8xf32>
    %cst_29 = arith.constant dense<0.000000e+00> : vector<8x8xf32>
    %84 = vector.multi_reduction <add>, %83, %cst_29 [2] : vector<8x8x8xf32> to vector<8x8xf32>
    %85 = vector.shape_cast %84 : vector<8x8xf32> to vector<8x8x1xf32>
    %cst_30 = arith.constant 1.000000e+00 : f32
    %86 = vector.broadcast %cst_30 : f32 to vector<8x8x1xf32>
    %87 = arith.divf %86, %85 : vector<8x8x1xf32>
    %88 = vector.broadcast %87 : vector<8x8x1xf32> to vector<8x8x8xf32>
    %89 = arith.mulf %83, %88 : vector<8x8x8xf32>
    %90 = arith.truncf %89 : vector<8x8x8xf32> to vector<8x8x8xbf16>
    "tpu.trace_start"() <{level = 10 : i32, message = "tqk,tkd->tqd"}> : () -> ()
    %cst_31 = arith.constant dense<0.000000e+00> : vector<8x8x8xf32>
    %91 = tpu.matmul %90, %70, %cst_31 {dimension_numbers = #tpu.dot_dimension_numbers<[2], [1], [1], [2], [0, 0, 0, 1, 1, 2], [0], [0]>} : vector<8x8x8xbf16>, vector<8x8x8xbf16>, vector<8x8x8xf32> -> vector<8x8x8xf32>
    "tpu.trace_stop"() : () -> ()
    %92 = vector.shape_cast %91 : vector<8x8x8xf32> to vector<64x8xf32>
    %c0_32 = arith.constant 0 : index
    %c8 = arith.constant 8 : index
    %93 = vector.load %arg15[%c0_32, %c8] : memref<64x32xf32, #tpu.memory_space<vmem>>, vector<64x8xf32>
    tpu.vector_store %arg15[%c0_32, %c8], %92 {strides = array<i32>} : memref<64x32xf32, #tpu.memory_space<vmem>>, vector<64x8xf32>,
    %94 = vector.extract_strided_slice %29 {offsets = [0, 16], sizes = [64, 8], strides = [1, 1]} : vector<64x96xf32> to vector<64x8xf32>
    %95 = vector.shape_cast %94 : vector<64x8xf32> to vector<8x8x8xf32>
    %96 = arith.truncf %95 : vector<8x8x8xf32> to vector<8x8x8xbf16>
    %97 = vector.extract_strided_slice %29 {offsets = [0, 48], sizes = [64, 8], strides = [1, 1]} : vector<64x96xf32> to vector<64x8xf32>
    %98 = vector.shape_cast %97 : vector<64x8xf32> to vector<8x8x8xf32>
    %99 = arith.truncf %98 : vector<8x8x8xf32> to vector<8x8x8xbf16>
    %100 = vector.extract_strided_slice %29 {offsets = [0, 80], sizes = [64, 8], strides = [1, 1]} : vector<64x96xf32> to vector<64x8xf32>
    %101 = vector.shape_cast %100 : vector<64x8xf32> to vector<8x8x8xf32>
    %102 = arith.truncf %101 : vector<8x8x8xf32> to vector<8x8x8xbf16>
    "tpu.trace_start"() <{level = 10 : i32, message = "tqd,tkd->tqk"}> : () -> ()
    %cst_33 = arith.constant dense<0.000000e+00> : vector<8x8x8xf32>
    %103 = tpu.matmul %96, %99, %cst_33 {dimension_numbers = #tpu.dot_dimension_numbers<[2], [2], [1], [1], [0, 0, 0, 1, 1, 1], [0], [0]>} : vector<8x8x8xbf16>, vector<8x8x8xbf16>, vector<8x8x8xf32> -> vector<8x8x8xf32>
    "tpu.trace_stop"() : () -> ()
    %cst_34 = arith.constant 0.353553385 : f32
    %104 = vector.broadcast %cst_34 : f32 to vector<8x8x8xf32>
    %105 = arith.mulf %103, %104 : vector<8x8x8xf32>
    %106 = tpu.iota {dimensions = array<i32: 2>} : vector<8x8x8xi32>
    %c2_i32_35 = arith.constant 2 : i32
    %107 = vector.broadcast %c2_i32_35 : i32 to vector<8x8x8xi32>
    %108 = arith.cmpi slt, %106, %107 : vector<8x8x8xi32>
    %cst_36 = arith.constant -1.000000e+30 : f32
    %109 = vector.broadcast %cst_36 : f32 to vector<8x8x8xf32>
    %110 = arith.select %108, %105, %109 : vector<8x8x8xi1>, vector<8x8x8xf32>
    %cst_37 = arith.constant dense<0xFF800000> : vector<8x8xf32>
    %111 = vector.multi_reduction <maximumf>, %110, %cst_37 [2] : vector<8x8x8xf32> to vector<8x8xf32>
    %112 = vector.shape_cast %111 : vector<8x8xf32> to vector<8x8x1xf32>
    %113 = vector.broadcast %112 : vector<8x8x1xf32> to vector<8x8x8xf32>
    %114 = arith.subf %110, %113 : vector<8x8x8xf32>
    %115 = math.exp %114 : vector<8x8x8xf32>
    %cst_38 = arith.constant dense<0.000000e+00> : vector<8x8xf32>
    %116 = vector.multi_reduction <add>, %115, %cst_38 [2] : vector<8x8x8xf32> to vector<8x8xf32>
    %117 = vector.shape_cast %116 : vector<8x8xf32> to vector<8x8x1xf32>
    %cst_39 = arith.constant 1.000000e+00 : f32
    %118 = vector.broadcast %cst_39 : f32 to vector<8x8x1xf32>
    %119 = arith.divf %118, %117 : vector<8x8x1xf32>
    %120 = vector.broadcast %119 : vector<8x8x1xf32> to vector<8x8x8xf32>
    %121 = arith.mulf %115, %120 : vector<8x8x8xf32>
    %122 = arith.truncf %121 : vector<8x8x8xf32> to vector<8x8x8xbf16>
    "tpu.trace_start"() <{level = 10 : i32, message = "tqk,tkd->tqd"}> : () -> ()
    %cst_40 = arith.constant dense<0.000000e+00> : vector<8x8x8xf32>
    %123 = tpu.matmul %122, %102, %cst_40 {dimension_numbers = #tpu.dot_dimension_numbers<[2], [1], [1], [2], [0, 0, 0, 1, 1, 2], [0], [0]>} : vector<8x8x8xbf16>, vector<8x8x8xbf16>, vector<8x8x8xf32> -> vector<8x8x8xf32>
    "tpu.trace_stop"() : () -> ()
    %124 = vector.shape_cast %123 : vector<8x8x8xf32> to vector<64x8xf32>
    %c0_41 = arith.constant 0 : index
    %c16 = arith.constant 16 : index
    %125 = vector.load %arg15[%c0_41, %c16] : memref<64x32xf32, #tpu.memory_space<vmem>>, vector<64x8xf32>
    tpu.vector_store %arg15[%c0_41, %c16], %124 {strides = array<i32>} : memref<64x32xf32, #tpu.memory_space<vmem>>, vector<64x8xf32>,
    %126 = vector.extract_strided_slice %29 {offsets = [0, 24], sizes = [64, 8], strides = [1, 1]} : vector<64x96xf32> to vector<64x8xf32>
    %127 = vector.shape_cast %126 : vector<64x8xf32> to vector<8x8x8xf32>
    %128 = arith.truncf %127 : vector<8x8x8xf32> to vector<8x8x8xbf16>
    %129 = vector.extract_strided_slice %29 {offsets = [0, 56], sizes = [64, 8], strides = [1, 1]} : vector<64x96xf32> to vector<64x8xf32>
    %130 = vector.shape_cast %129 : vector<64x8xf32> to vector<8x8x8xf32>
    %131 = arith.truncf %130 : vector<8x8x8xf32> to vector<8x8x8xbf16>
    %132 = vector.extract_strided_slice %29 {offsets = [0, 88], sizes = [64, 8], strides = [1, 1]} : vector<64x96xf32> to vector<64x8xf32>
    %133 = vector.shape_cast %132 : vector<64x8xf32> to vector<8x8x8xf32>
    %134 = arith.truncf %133 : vector<8x8x8xf32> to vector<8x8x8xbf16>
    "tpu.trace_start"() <{level = 10 : i32, message = "tqd,tkd->tqk"}> : () -> ()
    %cst_42 = arith.constant dense<0.000000e+00> : vector<8x8x8xf32>
    %135 = tpu.matmul %128, %131, %cst_42 {dimension_numbers = #tpu.dot_dimension_numbers<[2], [2], [1], [1], [0, 0, 0, 1, 1, 1], [0], [0]>} : vector<8x8x8xbf16>, vector<8x8x8xbf16>, vector<8x8x8xf32> -> vector<8x8x8xf32>
    "tpu.trace_stop"() : () -> ()
    %cst_43 = arith.constant 0.353553385 : f32
    %136 = vector.broadcast %cst_43 : f32 to vector<8x8x8xf32>
    %137 = arith.mulf %135, %136 : vector<8x8x8xf32>
    %138 = tpu.iota {dimensions = array<i32: 2>} : vector<8x8x8xi32>
    %c2_i32_44 = arith.constant 2 : i32
    %139 = vector.broadcast %c2_i32_44 : i32 to vector<8x8x8xi32>
    %140 = arith.cmpi slt, %138, %139 : vector<8x8x8xi32>
    %cst_45 = arith.constant -1.000000e+30 : f32
    %141 = vector.broadcast %cst_45 : f32 to vector<8x8x8xf32>
    %142 = arith.select %140, %137, %141 : vector<8x8x8xi1>, vector<8x8x8xf32>
    %cst_46 = arith.constant dense<0xFF800000> : vector<8x8xf32>
    %143 = vector.multi_reduction <maximumf>, %142, %cst_46 [2] : vector<8x8x8xf32> to vector<8x8xf32>
    %144 = vector.shape_cast %143 : vector<8x8xf32> to vector<8x8x1xf32>
    %145 = vector.broadcast %144 : vector<8x8x1xf32> to vector<8x8x8xf32>
    %146 = arith.subf %142, %145 : vector<8x8x8xf32>
    %147 = math.exp %146 : vector<8x8x8xf32>
    %cst_47 = arith.constant dense<0.000000e+00> : vector<8x8xf32>
    %148 = vector.multi_reduction <add>, %147, %cst_47 [2] : vector<8x8x8xf32> to vector<8x8xf32>
    %149 = vector.shape_cast %148 : vector<8x8xf32> to vector<8x8x1xf32>
    %cst_48 = arith.constant 1.000000e+00 : f32
    %150 = vector.broadcast %cst_48 : f32 to vector<8x8x1xf32>
    %151 = arith.divf %150, %149 : vector<8x8x1xf32>
    %152 = vector.broadcast %151 : vector<8x8x1xf32> to vector<8x8x8xf32>
    %153 = arith.mulf %147, %152 : vector<8x8x8xf32>
    %154 = arith.truncf %153 : vector<8x8x8xf32> to vector<8x8x8xbf16>
    "tpu.trace_start"() <{level = 10 : i32, message = "tqk,tkd->tqd"}> : () -> ()
    %cst_49 = arith.constant dense<0.000000e+00> : vector<8x8x8xf32>
    %155 = tpu.matmul %154, %134, %cst_49 {dimension_numbers = #tpu.dot_dimension_numbers<[2], [1], [1], [2], [0, 0, 0, 1, 1, 2], [0], [0]>} : vector<8x8x8xbf16>, vector<8x8x8xbf16>, vector<8x8x8xf32> -> vector<8x8x8xf32>
    "tpu.trace_stop"() : () -> ()
    %156 = vector.shape_cast %155 : vector<8x8x8xf32> to vector<64x8xf32>
    %c0_50 = arith.constant 0 : index
    %c24 = arith.constant 24 : index
    %157 = vector.load %arg15[%c0_50, %c24] : memref<64x32xf32, #tpu.memory_space<vmem>>, vector<64x8xf32>
    tpu.vector_store %arg15[%c0_50, %c24], %156 {strides = array<i32>} : memref<64x32xf32, #tpu.memory_space<vmem>>, vector<64x8xf32>,
    %c0_51 = arith.constant 0 : index
    %c0_52 = arith.constant 0 : index
    %158 = vector.load %arg15[%c0_51, %c0_52] : memref<64x32xf32, #tpu.memory_space<vmem>>, vector<64x32xf32>
    %159 = arith.truncf %158 : vector<64x32xf32> to vector<64x32xbf16>
    %c0_53 = arith.constant 0 : index
    %c0_54 = arith.constant 0 : index
    %160 = vector.load %arg6[%c0_53, %c0_54] : memref<32x32xbf16, #tpu.memory_space<vmem>>, vector<32x32xbf16>
    %cst_55 = arith.constant dense<0.000000e+00> : vector<64x32xf32>
    %161 = tpu.matmul %159, %160, %cst_55 {dimension_numbers = #tpu.dot_dimension_numbers<[1], [0], [0], [1], [0, 0, 1, 1], [], []>} : vector<64x32xbf16>, vector<32x32xbf16>, vector<64x32xf32> -> vector<64x32xf32>
    %c0_56 = arith.constant 0 : index
    %c0_57 = arith.constant 0 : index
    %162 = vector.load %arg7[%c0_56, %c0_57] : memref<1x32xf32, #tpu.memory_space<vmem>>, vector<1x32xf32>
    %163 = vector.broadcast %162 : vector<1x32xf32> to vector<64x32xf32>
    %164 = arith.addf %161, %163 : vector<64x32xf32>
    %165 = arith.addf %1, %164 : vector<64x32xf32>
    %c0_58 = arith.constant 0 : index
    %c0_59 = arith.constant 0 : index
    %166 = vector.load %arg8[%c0_58, %c0_59] : memref<1x32xf32, #tpu.memory_space<vmem>>, vector<1x32xf32>
    %c0_60 = arith.constant 0 : index
    %c0_61 = arith.constant 0 : index
    %167 = vector.load %arg9[%c0_60, %c0_61] : memref<1x32xf32, #tpu.memory_space<vmem>>, vector<1x32xf32>
    %cst_62 = arith.constant dense<0.000000e+00> : vector<64xf32>
    %168 = vector.multi_reduction <add>, %165, %cst_62 [1] : vector<64x32xf32> to vector<64xf32>
    %169 = vector.shape_cast %168 : vector<64xf32> to vector<64x1xf32>
    %cst_63 = arith.constant 3.200000e+01 : f32
    %170 = vector.broadcast %cst_63 : f32 to vector<64x1xf32>
    %171 = arith.divf %169, %170 : vector<64x1xf32>
    %172 = vector.broadcast %171 : vector<64x1xf32> to vector<64x32xf32>
    %173 = arith.subf %165, %172 : vector<64x32xf32>
    %174 = arith.mulf %173, %173 : vector<64x32xf32>
    %cst_64 = arith.constant dense<0.000000e+00> : vector<64xf32>
    %175 = vector.multi_reduction <add>, %174, %cst_64 [1] : vector<64x32xf32> to vector<64xf32>
    %176 = vector.shape_cast %175 : vector<64xf32> to vector<64x1xf32>
    %cst_65 = arith.constant 3.200000e+01 : f32
    %177 = vector.broadcast %cst_65 : f32 to vector<64x1xf32>
    %178 = arith.divf %176, %177 : vector<64x1xf32>
    %cst_66 = arith.constant 9.99999974E-6 : f32
    %179 = vector.broadcast %cst_66 : f32 to vector<64x1xf32>
    %180 = arith.addf %178, %179 : vector<64x1xf32>
    %181 = math.rsqrt %180 : vector<64x1xf32>
    %182 = vector.broadcast %181 : vector<64x1xf32> to vector<64x32xf32>
    %183 = arith.mulf %173, %182 : vector<64x32xf32>
    %184 = vector.broadcast %166 : vector<1x32xf32> to vector<64x32xf32>
    %185 = arith.mulf %183, %184 : vector<64x32xf32>
    %186 = vector.broadcast %167 : vector<1x32xf32> to vector<64x32xf32>
    %187 = arith.addf %185, %186 : vector<64x32xf32>
    %188 = arith.truncf %187 : vector<64x32xf32> to vector<64x32xbf16>
    %c0_67 = arith.constant 0 : index
    %c0_68 = arith.constant 0 : index
    %189 = vector.load %arg10[%c0_67, %c0_68] : memref<32x128xbf16, #tpu.memory_space<vmem>>, vector<32x128xbf16>
    %cst_69 = arith.constant dense<0.000000e+00> : vector<64x128xf32>
    %190 = tpu.matmul %188, %189, %cst_69 {dimension_numbers = #tpu.dot_dimension_numbers<[1], [0], [0], [1], [0, 0, 1, 1], [], []>} : vector<64x32xbf16>, vector<32x128xbf16>, vector<64x128xf32> -> vector<64x128xf32>
    %c0_70 = arith.constant 0 : index
    %c0_71 = arith.constant 0 : index
    %191 = vector.load %arg11[%c0_70, %c0_71] : memref<1x128xf32, #tpu.memory_space<vmem>>, vector<1x128xf32>
    %192 = vector.broadcast %191 : vector<1x128xf32> to vector<64x128xf32>
    %193 = arith.addf %190, %192 : vector<64x128xf32>
    %cst_72 = arith.constant 5.000000e-01 : f32
    %194 = vector.broadcast %cst_72 : f32 to vector<64x128xf32>
    %195 = arith.mulf %194, %193 : vector<64x128xf32>
    %cst_73 = arith.constant 4.471500e-02 : f32
    %196 = vector.broadcast %cst_73 : f32 to vector<64x128xf32>
    %197 = arith.mulf %196, %193 : vector<64x128xf32>
    %198 = arith.mulf %197, %193 : vector<64x128xf32>
    %199 = arith.mulf %198, %193 : vector<64x128xf32>
    %200 = arith.addf %193, %199 : vector<64x128xf32>
    %cst_74 = arith.constant 0.797884583 : f32
    %201 = vector.broadcast %cst_74 : f32 to vector<64x128xf32>
    %202 = arith.mulf %201, %200 : vector<64x128xf32>
    %203 = math.tanh %202 : vector<64x128xf32>
    %cst_75 = arith.constant 1.000000e+00 : f32
    %204 = vector.broadcast %cst_75 : f32 to vector<64x128xf32>
    %205 = arith.addf %204, %203 : vector<64x128xf32>
    %206 = arith.mulf %195, %205 : vector<64x128xf32>
    %207 = arith.truncf %206 : vector<64x128xf32> to vector<64x128xbf16>
    %c0_76 = arith.constant 0 : index
    %c0_77 = arith.constant 0 : index
    %208 = vector.load %arg12[%c0_76, %c0_77] : memref<128x32xbf16, #tpu.memory_space<vmem>>, vector<128x32xbf16>
    %cst_78 = arith.constant dense<0.000000e+00> : vector<64x32xf32>
    %209 = tpu.matmul %207, %208, %cst_78 {dimension_numbers = #tpu.dot_dimension_numbers<[1], [0], [0], [1], [0, 0, 1, 1], [], []>} : vector<64x128xbf16>, vector<128x32xbf16>, vector<64x32xf32> -> vector<64x32xf32>
    %c0_79 = arith.constant 0 : index
    %c0_80 = arith.constant 0 : index
    %210 = vector.load %arg13[%c0_79, %c0_80] : memref<1x32xf32, #tpu.memory_space<vmem>>, vector<1x32xf32>
    %211 = vector.broadcast %210 : vector<1x32xf32> to vector<64x32xf32>
    %212 = arith.addf %209, %211 : vector<64x32xf32>
    %213 = arith.addf %165, %212 : vector<64x32xf32>
    %214 = vector.shape_cast %213 : vector<64x32xf32> to vector<8x8x32xf32>
    %c0_81 = arith.constant 0 : index
    %c0_82 = arith.constant 0 : index
    %c0_83 = arith.constant 0 : index
    %215 = vector.load %arg14[%c0_81, %c0_82, %c0_83] : memref<8x8x32xf32, #tpu.memory_space<vmem>>, vector<8x8x32xf32>
    tpu.vector_store %arg14[%c0_81, %c0_82, %c0_83], %214 {strides = array<i32>} : memref<8x8x32xf32, #tpu.memory_space<vmem>>, vector<8x8x32xf32>,
    return
  }
  func.func @transform_0(%arg0: i32) -> (i32, i32, i32) {
    %c0_i32 = arith.constant 0 : i32
    %c0_i32_0 = arith.constant 0 : i32
    %c0_i32_1 = arith.constant 0 : i32
    return %arg0, %c0_i32, %c0_i32_0 : i32, i32, i32
  }
  func.func @transform_1(%arg0: i32) -> (i32, i32) {
    %c0_i32 = arith.constant 0 : i32
    %c0_i32_0 = arith.constant 0 : i32
    %c0_i32_1 = arith.constant 0 : i32
    return %c0_i32, %c0_i32_0 : i32, i32
  }
  func.func @transform_2(%arg0: i32) -> (i32, i32) {
    %c0_i32 = arith.constant 0 : i32
    %c0_i32_0 = arith.constant 0 : i32
    %c0_i32_1 = arith.constant 0 : i32
    return %c0_i32, %c0_i32_0 : i32, i32
  }
  func.func @transform_3(%arg0: i32) -> (i32, i32) {
    %c0_i32 = arith.constant 0 : i32
    %c0_i32_0 = arith.constant 0 : i32
    %c0_i32_1 = arith.constant 0 : i32
    return %c0_i32, %c0_i32_0 : i32, i32
  }
  func.func @transform_4(%arg0: i32) -> (i32, i32) {
    %c0_i32 = arith.constant 0 : i32
    %c0_i32_0 = arith.constant 0 : i32
    %c0_i32_1 = arith.constant 0 : i32
    return %c0_i32, %c0_i32_0 : i32, i32
  }
  func.func @transform_5(%arg0: i32) -> (i32, i32) {
    %c0_i32 = arith.constant 0 : i32
    %c0_i32_0 = arith.constant 0 : i32
    %c0_i32_1 = arith.constant 0 : i32
    return %c0_i32, %c0_i32_0 : i32, i32
  }
  func.func @transform_6(%arg0: i32) -> (i32, i32) {
    %c0_i32 = arith.constant 0 : i32
    %c0_i32_0 = arith.constant 0 : i32
    %c0_i32_1 = arith.constant 0 : i32
    return %c0_i32, %c0_i32_0 : i32, i32
  }
  func.func @transform_7(%arg0: i32) -> (i32, i32) {
    %c0_i32 = arith.constant 0 : i32
    %c0_i32_0 = arith.constant 0 : i32
    %c0_i32_1 = arith.constant 0 : i32
    return %c0_i32, %c0_i32_0 : i32, i32
  }
  func.func @transform_8(%arg0: i32) -> (i32, i32) {
    %c0_i32 = arith.constant 0 : i32
    %c0_i32_0 = arith.constant 0 : i32
    %c0_i32_1 = arith.constant 0 : i32
    return %c0_i32, %c0_i32_0 : i32, i32
  }
  func.func @transform_9(%arg0: i32) -> (i32, i32) {
    %c0_i32 = arith.constant 0 : i32
    %c0_i32_0 = arith.constant 0 : i32
    %c0_i32_1 = arith.constant 0 : i32
    return %c0_i32, %c0_i32_0 : i32, i32
  }
  func.func @transform_10(%arg0: i32) -> (i32, i32) {
    %c0_i32 = arith.constant 0 : i32
    %c0_i32_0 = arith.constant 0 : i32
    %c0_i32_1 = arith.constant 0 : i32
    return %c0_i32, %c0_i32_0 : i32, i32
  }
  func.func @transform_11(%arg0: i32) -> (i32, i32) {
    %c0_i32 = arith.constant 0 : i32
    %c0_i32_0 = arith.constant 0 : i32
    %c0_i32_1 = arith.constant 0 : i32
    return %c0_i32, %c0_i32_0 : i32, i32
  }
  func.func @transform_12(%arg0: i32) -> (i32, i32) {
    %c0_i32 = arith.constant 0 : i32
    %c0_i32_0 = arith.constant 0 : i32
    %c0_i32_1 = arith.constant 0 : i32
    return %c0_i32, %c0_i32_0 : i32, i32
  }
  func.func @transform_13(%arg0: i32) -> (i32, i32, i32) {
    %c0_i32 = arith.constant 0 : i32
    %c0_i32_0 = arith.constant 0 : i32
    %c0_i32_1 = arith.constant 0 : i32
    return %arg0, %c0_i32, %c0_i32_0 : i32, i32, i32
  }
}

</mosaic_0001>

<llo_original>
// kernel: _lambda_.5
$region0: #{_lambda_.5}
  #allocation0 [shape = 'u32[]', space=smem, size = 0x4, offset = 0x4, fixed_abs, tag = 'smem constant byte address 0x4 - core index']
  #allocation1 [shape = 'u32[144,128]{1,0:T(1,128)}', space=vmem, size = 0x12000, scoped, tag = 'internal scratch']
  %s0 = inlined_call_operand.vmem [shape: f32[64,32], index: 0, kind: input, shape index: {}]
  %s1 = inlined_call_operand.vmem [shape: f32[1,32], index: 1, kind: input, shape index: {}]
  %s2 = inlined_call_operand.vmem [shape: f32[1,32], index: 2, kind: input, shape index: {}]
  %s3 = inlined_call_operand.vmem [shape: bf16[32,128], index: 3, kind: input, shape index: {}]
  %s4 = inlined_call_operand.vmem [shape: f32[64,128], index: 4, kind: output, shape index: {}]
  %s5 = sld [smem:[#allocation0]]
  $region26: #{_lambda_.5} parent=0
    _
  %s7 = ssub.s32 1, %s5
  %s8 = scalar_select 0, %s7, %s5
  // Predicated region
  $region2: #{_lambda_.5} parent=0 // pred_check
    _
  $region3: #{_lambda_.5} parent=0 // pred_check_branch
    %10 = sbr.rel (0) target = $region5
  $region4: #{_lambda_.5} parent=0 // pred_region
    _
  $region5: #{_lambda_.5} parent=0 // pred_fallthru
    _
  // Predicated region
  $region6: #{_lambda_.5} parent=0 // pred_check
    _
  $region7: #{_lambda_.5} parent=0 // pred_check_branch
    %12 = sbr.rel (0) target = $region9
  $region8: #{_lambda_.5} parent=0 // pred_region
    _
  $region9: #{_lambda_.5} parent=0 // pred_fallthru
    _
  // Predicated region
  $region10: #{_lambda_.5} parent=0 // pred_check
    _
  $region11: #{_lambda_.5} parent=0 // pred_check_branch
    %14 = sbr.rel (0) target = $region13
  $region12: #{_lambda_.5} parent=0 // pred_region
    _
  $region13: #{_lambda_.5} parent=0 // pred_fallthru
    _
  // Predicated region
  $region14: #{_lambda_.5} parent=0 // pred_check
    _
  $region15: #{_lambda_.5} parent=0 // pred_check_branch
    %16 = sbr.rel (0) target = $region17
  $region16: #{_lambda_.5} parent=0 // pred_region
    _
  $region17: #{_lambda_.5} parent=0 // pred_fallthru
    _
  %v18 = vld [vmem:[%s0] sm:$0xff]
  %v19 = vld [vmem:[%s0 + $0x8] sm:$0xff]
  %v20 = vld [vmem:[%s0 + $0x10] sm:$0xff]
  %v21 = vld [vmem:[%s0 + $0x18] sm:$0xff]
  %v22 = vld [vmem:[%s0 + $0x20] sm:$0xff]
  %v23 = vld [vmem:[%s0 + $0x28] sm:$0xff]
  %v24 = vld [vmem:[%s0 + $0x30] sm:$0xff]
  %v25 = vld [vmem:[%s0 + $0x38] sm:$0xff]
  %v26 = vld [vmem:[%s1] sm:$0x1]
  %v27 = vld [vmem:[%s2] sm:$0x1]
  %vm28 = vcmask 261120
  %v29 = vsel %vm28, %v18, 0.0
  %30 = vadd.xlane.f32.xlu0 %v29
  %v31 = vpop.xlane.xlu0 %30
  %v32 = vsel %vm28, %v19, 0.0
  %33 = vadd.xlane.f32.xlu0 %v32
  %v34 = vpop.xlane.xlu0 %33
  %v35 = vsel %vm28, %v20, 0.0
  %36 = vadd.xlane.f32.xlu0 %v35
  %v37 = vpop.xlane.xlu0 %36
  %v38 = vsel %vm28, %v21, 0.0
  %39 = vadd.xlane.f32.xlu0 %v38
  %v40 = vpop.xlane.xlu0 %39
  %v41 = vsel %vm28, %v22, 0.0
  %42 = vadd.xlane.f32.xlu0 %v41
  %v43 = vpop.xlane.xlu0 %42
  %v44 = vsel %vm28, %v23, 0.0
  %45 = vadd.xlane.f32.xlu0 %v44
  %v46 = vpop.xlane.xlu0 %45
  %v47 = vsel %vm28, %v24, 0.0
  %48 = vadd.xlane.f32.xlu0 %v47
  %v49 = vpop.xlane.xlu0 %48
  %v50 = vsel %vm28, %v25, 0.0
  %51 = vadd.xlane.f32.xlu0 %v50
  %v52 = vpop.xlane.xlu0 %51
  %v53 = vrcp.pop 32.0
  %v54 = vmul.f32 %v31, %v53
  %v55 = vmul.f32 %v34, %v53
  %v56 = vmul.f32 %v37, %v53
  %v57 = vmul.f32 %v40, %v53
  %v58 = vmul.f32 %v43, %v53
  %v59 = vmul.f32 %v46, %v53
  %v60 = vmul.f32 %v49, %v53
  %v61 = vmul.f32 %v52, %v53
  %v62 = vsub.f32 %v18, %v54
  %v63 = vsub.f32 %v19, %v55
  %v64 = vsub.f32 %v20, %v56
  %v65 = vsub.f32 %v21, %v57
  %v66 = vsub.f32 %v22, %v58
  %v67 = vsub.f32 %v23, %v59
  %v68 = vsub.f32 %v24, %v60
  %v69 = vsub.f32 %v25, %v61
  %v70 = vmul.f32 %v62, %v62
  %v71 = vmul.f32 %v63, %v63
  %v72 = vmul.f32 %v64, %v64
  %v73 = vmul.f32 %v65, %v65
  %v74 = vmul.f32 %v66, %v66
  %v75 = vmul.f32 %v67, %v67
  %v76 = vmul.f32 %v68, %v68
  %v77 = vmul.f32 %v69, %v69
  %v78 = vsel %vm28, %v70, 0.0
  %79 = vadd.xlane.f32.xlu0 %v78
  %v80 = vpop.xlane.xlu0 %79
  %v81 = vsel %vm28, %v71, 0.0
  %82 = vadd.xlane.f32.xlu0 %v81
  %v83 = vpop.xlane.xlu0 %82
  %v84 = vsel %vm28, %v72, 0.0
  %85 = vadd.xlane.f32.xlu0 %v84
  %v86 = vpop.xlane.xlu0 %85
  %v87 = vsel %vm28, %v73, 0.0
  %88 = vadd.xlane.f32.xlu0 %v87
  %v89 = vpop.xlane.xlu0 %88
  %v90 = vsel %vm28, %v74, 0.0
  %91 = vadd.xlane.f32.xlu0 %v90
  %v92 = vpop.xlane.xlu0 %91
  %v93 = vsel %vm28, %v75, 0.0
  %94 = vadd.xlane.f32.xlu0 %v93
  %v95 = vpop.xlane.xlu0 %94
  %v96 = vsel %vm28, %v76, 0.0
  %97 = vadd.xlane.f32.xlu0 %v96
  %v98 = vpop.xlane.xlu0 %97
  %v99 = vsel %vm28, %v77, 0.0
  %100 = vadd.xlane.f32.xlu0 %v99
  %v101 = vpop.xlane.xlu0 %100
  %v102 = vmul.f32 %v80, %v53
  %v103 = vmul.f32 %v83, %v53
  %v104 = vmul.f32 %v86, %v53
  %v105 = vmul.f32 %v89, %v53
  %v106 = vmul.f32 %v92, %v53
  %v107 = vmul.f32 %v95, %v53
  %v108 = vmul.f32 %v98, %v53
  %v109 = vmul.f32 %v101, %v53
  %v110 = vadd.f32 %v102, 1e-05
  %v111 = vadd.f32 %v103, 1e-05
  %v112 = vadd.f32 %v104, 1e-05
  %v113 = vadd.f32 %v105, 1e-05
  %v114 = vadd.f32 %v106, 1e-05
  %v115 = vadd.f32 %v107, 1e-05
  %v116 = vadd.f32 %v108, 1e-05
  %v117 = vadd.f32 %v109, 1e-05
  %v118 = vrsqrt.pop %v110
  %v119 = vrsqrt.pop %v111
  %v120 = vrsqrt.pop %v112
  %v121 = vrsqrt.pop %v113
  %v122 = vrsqrt.pop %v114
  %v123 = vrsqrt.pop %v115
  %v124 = vrsqrt.pop %v116
  %v125 = vrsqrt.pop %v117
  %v126 = vmul.f32 %v62, %v118
  %v127 = vmul.f32 %v63, %v119
  %v128 = vmul.f32 %v64, %v120
  %v129 = vmul.f32 %v65, %v121
  %v130 = vmul.f32 %v66, %v122
  %v131 = vmul.f32 %v67, %v123
  %v132 = vmul.f32 %v68, %v124
  %v133 = vmul.f32 %v69, %v125
  %v135 = vlaneseq
  %v136 = vshrl.u32 %v135, 7
  %v137 = vsub.s32 0, %v136
  %v138 = vrot.slane %v26, %v137
  %v140 = vmul.f32 %v126, %v138
  %v141 = vmul.f32 %v127, %v138
  %v142 = vmul.f32 %v128, %v138
  %v143 = vmul.f32 %v129, %v138
  %v144 = vmul.f32 %v130, %v138
  %v145 = vmul.f32 %v131, %v138
  %v146 = vmul.f32 %v132, %v138
  %v147 = vmul.f32 %v133, %v138
  %v149 = vlaneseq
  %v150 = vshrl.u32 %v149, 7
  %v151 = vsub.s32 0, %v150
  %v152 = vrot.slane %v27, %v151
  %v154 = vadd.f32 %v140, %v152
  %v155 = vadd.f32 %v141, %v152
  %v156 = vadd.f32 %v142, %v152
  %v157 = vadd.f32 %v143, %v152
  %v158 = vadd.f32 %v144, %v152
  %v159 = vadd.f32 %v145, %v152
  %v160 = vadd.f32 %v146, %v152
  %v161 = vadd.f32 %v147, %v152
  %v162 = vpack.c.bf16 %v155, %v154
  %v163 = vpack.c.bf16 %v157, %v156
  %v164 = vpack.c.bf16 %v159, %v158
  %v165 = vpack.c.bf16 %v161, %v160
  %v166 = vld [vmem:[%s3] sm:$0xf]
  %v167 = vld [vmem:[%s3 + $0x4] sm:$0xf]
  %v168 = vld [vmem:[%s3 + $0x8] sm:$0xf]
  %v169 = vld [vmem:[%s3 + $0xc] sm:$0xf]
  %v174 = vunpack.c.l.b16 %v166
  %v175 = vunpack.c.l.b16 %v167
  %v176 = vunpack.c.l.b16 %v168
  %v177 = vunpack.c.l.b16 %v169
  %v178 = vpack.c.b16 %v175, %v174
  %v179 = vpack.c.b16 %v177, %v176
  %v183 = vsel %vm28, %v162, 0
  %v186 = vsel %vm28, %v163, 0
  %v189 = vsel %vm28, %v164, 0
  %v192 = vsel %vm28, %v165, 0
  %194 = vmatprep.subr.bf16.mxu0 0
  %195 = vmatpush1.bf16.msra.mxu0 0
  %196 = vmatprep.subr.bf16.mxu0 0
  %197 = vmatpush1.bf16.msra.mxu0 0
  %198 = vmatprep.subr.bf16.mxu0 0
  %199 = vmatpush1.bf16.msra.mxu0 0
  %200 = vmatprep.subr.bf16.mxu0 0
  %201 = vmatpush1.bf16.msra.mxu0 0
  %202 = vmatprep.subr.bf16.mxu0 0
  %203 = vmatpush1.bf16.msra.mxu0 0
  %204 = vmatprep.subr.bf16.mxu0 0
  %205 = vmatpush1.bf16.msra.mxu0 0
  %206 = vmatprep.subr.bf16.mxu0 0
  %207 = vmatpush1.bf16.msra.mxu0 %v179
  %208 = vmatprep.subr.bf16.mxu0 0
  %209 = vmatpush1.bf16.msra.mxu0 %v178
  %210 = vmatprep.subr.bf16.mxu0 0
  %211 = vmatpush2.bf16.msra.mxu0 0
  %212 = vmatprep.subr.bf16.mxu0 0
  %213 = vmatpush2.bf16.msra.mxu0 0
  %214 = vmatprep.subr.bf16.mxu0 0
  %215 = vmatpush2.bf16.msra.mxu0 0
  %216 = vmatprep.subr.bf16.mxu0 0
  %217 = vmatpush2.bf16.msra.mxu0 0
  %218 = vmatprep.subr.bf16.mxu0 0
  %219 = vmatpush2.bf16.msra.mxu0 0
  %220 = vmatprep.subr.bf16.mxu0 0
  %221 = vmatpush2.bf16.msra.mxu0 0
  %222 = vmatprep.subr.bf16.mxu0 0
  %223 = vmatpush2.bf16.msra.mxu0 0
  %224 = vmatprep.subr.bf16.mxu0 0
  %225 = vmatpush2.bf16.msra.mxu0 0
  %226 = vmatprep.mubr.bf16.mxu0 0
  %227 = vmatmul.mubr.bf16.gmra.mxu0 %v183
  %v228 = vpop.f32.mrf.mxu0
  %v229 = vadd.f32 0.0, %v228
  %v230 = vpop.f32.mrf.mxu0
  %v231 = vpop.f32.mrf.mxu0
  %v232 = vadd.f32 0.0, %v231
  %v233 = vpop.f32.mrf.mxu0
  %234 = vmatprep.mubr.bf16.mxu0 0
  %235 = vmatmul.mubr.bf16.gmra.mxu0 %v186
  %v236 = vpop.f32.mrf.mxu0
  %v237 = vadd.f32 0.0, %v236
  %v238 = vpop.f32.mrf.mxu0
  %v239 = vpop.f32.mrf.mxu0
  %v240 = vadd.f32 0.0, %v239
  %v241 = vpop.f32.mrf.mxu0
  %242 = vmatprep.mubr.bf16.mxu0 0
  %243 = vmatmul.mubr.bf16.gmra.mxu0 %v189
  %v244 = vpop.f32.mrf.mxu0
  %v245 = vadd.f32 0.0, %v244
  %v246 = vpop.f32.mrf.mxu0
  %v247 = vpop.f32.mrf.mxu0
  %v248 = vadd.f32 0.0, %v247
  %v249 = vpop.f32.mrf.mxu0
  %250 = vmatprep.mubr.bf16.mxu0 0
  %251 = vmatmul.mubr.bf16.gmra.mxu0 %v192
  %v252 = vpop.f32.mrf.mxu0
  %v253 = vadd.f32 0.0, %v252
  %v254 = vpop.f32.mrf.mxu0
  %v255 = vpop.f32.mrf.mxu0
  %v256 = vadd.f32 0.0, %v255
  %v257 = vpop.f32.mrf.mxu0
  %258 = vdwg.mxu0
  %259 = vst [vmem:[%s4] sm:$0xff] %v229
  %260 = vst [vmem:[%s4 + $0x8] sm:$0xff] %v232
  %261 = vst [vmem:[%s4 + $0x10] sm:$0xff] %v237
  %262 = vst [vmem:[%s4 + $0x18] sm:$0xff] %v240
  %263 = vst [vmem:[%s4 + $0x20] sm:$0xff] %v245
  %264 = vst [vmem:[%s4 + $0x28] sm:$0xff] %v248
  %265 = vst [vmem:[%s4 + $0x30] sm:$0xff] %v253
  %266 = vst [vmem:[%s4 + $0x38] sm:$0xff] %v256
  // Predicated region
  $region18: #{_lambda_.5} parent=0 // pred_check
    _
  $region19: #{_lambda_.5} parent=0 // pred_check_branch
    %268 = sbr.rel (0) target = $region21
  $region20: #{_lambda_.5} parent=0 // pred_region
    _
  $region21: #{_lambda_.5} parent=0 // pred_fallthru
    _
  // Predicated region
  $region22: #{_lambda_.5} parent=0 // pred_check
    _
  $region23: #{_lambda_.5} parent=0 // pred_check_branch
    %270 = sbr.rel (0) target = $region25
  $region24: #{_lambda_.5} parent=0 // pred_region
    _
  $region25: #{_lambda_.5} parent=0 // pred_fallthru
    _

// kernel: _lambda_.3
$region0: #{_lambda_.3}
  #allocation0 [shape = 'u32[]', space=smem, size = 0x4, offset = 0x4, fixed_abs, tag = 'smem constant byte address 0x4 - core index']
  #allocation1 [shape = 'u32[144,128]{1,0:T(1,128)}', space=vmem, size = 0x12000, scoped, tag = 'internal scratch']
  #allocation2 [shape = 'f32[64,32]{1,0:T(8,128)}', space=vmem, size = 0x8000, scoped, tag = 'scratch operand']
  %s0 = inlined_call_operand.vmem [shape: f32[8,8,32], index: 0, kind: input, shape index: {}]
  %s1 = inlined_call_operand.vmem [shape: f32[1,32], index: 1, kind: input, shape index: {}]
  %s2 = inlined_call_operand.vmem [shape: f32[1,32], index: 2, kind: input, shape index: {}]
  %s3 = inlined_call_operand.vmem [shape: bf16[32,96], index: 3, kind: input, shape index: {}]
  %s4 = inlined_call_operand.vmem [shape: f32[1,96], index: 4, kind: input, shape index: {}]
  %s5 = inlined_call_operand.vmem [shape: bf16[32,32], index: 5, kind: input, shape index: {}]
  %s6 = inlined_call_operand.vmem [shape: f32[1,32], index: 6, kind: input, shape index: {}]
  %s7 = inlined_call_operand.vmem [shape: f32[1,32], index: 7, kind: input, shape index: {}]
  %s8 = inlined_call_operand.vmem [shape: f32[1,32], index: 8, kind: input, shape index: {}]
  %s9 = inlined_call_operand.vmem [shape: bf16[32,128], index: 9, kind: input, shape index: {}]
  %s10 = inlined_call_operand.vmem [shape: f32[1,128], index: 10, kind: input, shape index: {}]
  %s11 = inlined_call_operand.vmem [shape: bf16[128,32], index: 11, kind: input, shape index: {}]
  %s12 = inlined_call_operand.vmem [shape: f32[1,32], index: 12, kind: input, shape index: {}]
  %s13 = inlined_call_operand.vmem [shape: f32[8,8,32], index: 13, kind: output, shape index: {}]
  %s14 = sld [smem:[#allocation0]]
  $region62: #{_lambda_.3} parent=0
    _
  %s16 = ssub.s32 1, %s14
  %s17 = scalar_select 0, %s16, %s14
  // Predicated region
  $region2: #{_lambda_.3} parent=0 // pred_check
    _
  $region3: #{_lambda_.3} parent=0 // pred_check_branch
    %19 = sbr.rel (0) target = $region5
  $region4: #{_lambda_.3} parent=0 // pred_region
    _
  $region5: #{_lambda_.3} parent=0 // pred_fallthru
    _
  // Predicated region
  $region6: #{_lambda_.3} parent=0 // pred_check
    _
  $region7: #{_lambda_.3} parent=0 // pred_check_branch
    %21 = sbr.rel (0) target = $region9
  $region8: #{_lambda_.3} parent=0 // pred_region
    _
  $region9: #{_lambda_.3} parent=0 // pred_fallthru
    _
  // Predicated region
  $region10: #{_lambda_.3} parent=0 // pred_check
    _
  $region11: #{_lambda_.3} parent=0 // pred_check_branch
    %23 = sbr.rel (0) target = $region13
  $region12: #{_lambda_.3} parent=0 // pred_region
    _
  $region13: #{_lambda_.3} parent=0 // pred_fallthru
    _
  // Predicated region
  $region14: #{_lambda_.3} parent=0 // pred_check
    _
  $region15: #{_lambda_.3} parent=0 // pred_check_branch
    %25 = sbr.rel (0) target = $region17
  $region16: #{_lambda_.3} parent=0 // pred_region
    _
  $region17: #{_lambda_.3} parent=0 // pred_fallthru
    _
  // Predicated region
  $region18: #{_lambda_.3} parent=0 // pred_check
    _
  $region19: #{_lambda_.3} parent=0 // pred_check_branch
    %27 = sbr.rel (0) target = $region21
  $region20: #{_lambda_.3} parent=0 // pred_region
    _
  $region21: #{_lambda_.3} parent=0 // pred_fallthru
    _
  // Predicated region
  $region22: #{_lambda_.3} parent=0 // pred_check
    _
  $region23: #{_lambda_.3} parent=0 // pred_check_branch
    %29 = sbr.rel (0) target = $region25
  $region24: #{_lambda_.3} parent=0 // pred_region
    _
  $region25: #{_lambda_.3} parent=0 // pred_fallthru
    _
  // Predicated region
  $region26: #{_lambda_.3} parent=0 // pred_check
    _
  $region27: #{_lambda_.3} parent=0 // pred_check_branch
    %31 = sbr.rel (0) target = $region29
  $region28: #{_lambda_.3} parent=0 // pred_region
    _
  $region29: #{_lambda_.3} parent=0 // pred_fallthru
    _
  // Predicated region
  $region30: #{_lambda_.3} parent=0 // pred_check
    _
  $region31: #{_lambda_.3} parent=0 // pred_check_branch
    %33 = sbr.rel (0) target = $region33
  $region32: #{_lambda_.3} parent=0 // pred_region
    _
  $region33: #{_lambda_.3} parent=0 // pred_fallthru
    _
  // Predicated region
  $region34: #{_lambda_.3} parent=0 // pred_check
    _
  $region35: #{_lambda_.3} parent=0 // pred_check_branch
    %35 = sbr.rel (0) target = $region37
  $region36: #{_lambda_.3} parent=0 // pred_region
    _
  $region37: #{_lambda_.3} parent=0 // pred_fallthru
    _
  // Predicated region
  $region38: #{_lambda_.3} parent=0 // pred_check
    _
  $region39: #{_lambda_.3} parent=0 // pred_check_branch
    %37 = sbr.rel (0) target = $region41
  $region40: #{_lambda_.3} parent=0 // pred_region
    _
  $region41: #{_lambda_.3} parent=0 // pred_fallthru
    _
  // Predicated region
  $region42: #{_lambda_.3} parent=0 // pred_check
    _
  $region43: #{_lambda_.3} parent=0 // pred_check_branch
    %39 = sbr.rel (0) target = $region45
  $region44: #{_lambda_.3} parent=0 // pred_region
    _
  $region45: #{_lambda_.3} parent=0 // pred_fallthru
    _
  // Predicated region
  $region46: #{_lambda_.3} parent=0 // pred_check
    _
  $region47: #{_lambda_.3} parent=0 // pred_check_branch
    %41 = sbr.rel (0) target = $region49
  $region48: #{_lambda_.3} parent=0 // pred_region
    _
  $region49: #{_lambda_.3} parent=0 // pred_fallthru
    _
  // Predicated region
  $region50: #{_lambda_.3} parent=0 // pred_check
    _
  $region51: #{_lambda_.3} parent=0 // pred_check_branch
    %43 = sbr.rel (0) target = $region53
  $region52: #{_lambda_.3} parent=0 // pred_region
    _
  $region53: #{_lambda_.3} parent=0 // pred_fallthru
    _
  %v45 = vld [vmem:[%s0] sm:$0xff]
  %v46 = vld [vmem:[%s0 + $0x8] sm:$0xff]
  %v47 = vld [vmem:[%s0 + $0x10] sm:$0xff]
  %v48 = vld [vmem:[%s0 + $0x18] sm:$0xff]
  %v49 = vld [vmem:[%s0 + $0x20] sm:$0xff]
  %v50 = vld [vmem:[%s0 + $0x28] sm:$0xff]
  %v51 = vld [vmem:[%s0 + $0x30] sm:$0xff]
  %v52 = vld [vmem:[%s0 + $0x38] sm:$0xff]
  %v53 = vld [vmem:[%s1] sm:$0x1]
  %v54 = vld [vmem:[%s2] sm:$0x1]
  %vm55 = vcmask 261120
  %v56 = vsel %vm55, %v45, 0.0
  %57 = vadd.xlane.f32.xlu0 %v56
  %v58 = vpop.xlane.xlu0 %57
  %v59 = vsel %vm55, %v46, 0.0
  %60 = vadd.xlane.f32.xlu0 %v59
  %v61 = vpop.xlane.xlu0 %60
  %v62 = vsel %vm55, %v47, 0.0
  %63 = vadd.xlane.f32.xlu0 %v62
  %v64 = vpop.xlane.xlu0 %63
  %v65 = vsel %vm55, %v48, 0.0
  %66 = vadd.xlane.f32.xlu0 %v65
  %v67 = vpop.xlane.xlu0 %66
  %v68 = vsel %vm55, %v49, 0.0
  %69 = vadd.xlane.f32.xlu0 %v68
  %v70 = vpop.xlane.xlu0 %69
  %v71 = vsel %vm55, %v50, 0.0
  %72 = vadd.xlane.f32.xlu0 %v71
  %v73 = vpop.xlane.xlu0 %72
  %v74 = vsel %vm55, %v51, 0.0
  %75 = vadd.xlane.f32.xlu0 %v74
  %v76 = vpop.xlane.xlu0 %75
  %v77 = vsel %vm55, %v52, 0.0
  %78 = vadd.xlane.f32.xlu0 %v77
  %v79 = vpop.xlane.xlu0 %78
  %v80 = vrcp.pop 32.0
  %v81 = vmul.f32 %v58, %v80
  %v82 = vmul.f32 %v61, %v80
  %v83 = vmul.f32 %v64, %v80
  %v84 = vmul.f32 %v67, %v80
  %v85 = vmul.f32 %v70, %v80
  %v86 = vmul.f32 %v73, %v80
  %v87 = vmul.f32 %v76, %v80
  %v88 = vmul.f32 %v79, %v80
  %v89 = vsub.f32 %v45, %v81
  %v90 = vsub.f32 %v46, %v82
  %v91 = vsub.f32 %v47, %v83
  %v92 = vsub.f32 %v48, %v84
  %v93 = vsub.f32 %v49, %v85
  %v94 = vsub.f32 %v50, %v86
  %v95 = vsub.f32 %v51, %v87
  %v96 = vsub.f32 %v52, %v88
  %v97 = vmul.f32 %v89, %v89
  %v98 = vmul.f32 %v90, %v90
  %v99 = vmul.f32 %v91, %v91
  %v100 = vmul.f32 %v92, %v92
  %v101 = vmul.f32 %v93, %v93
  %v102 = vmul.f32 %v94, %v94
  %v103 = vmul.f32 %v95, %v95
  %v104 = vmul.f32 %v96, %v96
  %v105 = vsel %vm55, %v97, 0.0
  %106 = vadd.xlane.f32.xlu0 %v105
  %v107 = vpop.xlane.xlu0 %106
  %v108 = vsel %vm55, %v98, 0.0
  %109 = vadd.xlane.f32.xlu0 %v108
  %v110 = vpop.xlane.xlu0 %109
  %v111 = vsel %vm55, %v99, 0.0
  %112 = vadd.xlane.f32.xlu0 %v111
  %v113 = vpop.xlane.xlu0 %112
  %v114 = vsel %vm55, %v100, 0.0
  %115 = vadd.xlane.f32.xlu0 %v114
  %v116 = vpop.xlane.xlu0 %115
  %v117 = vsel %vm55, %v101, 0.0
  %118 = vadd.xlane.f32.xlu0 %v117
  %v119 = vpop.xlane.xlu0 %118
  %v120 = vsel %vm55, %v102, 0.0
  %121 = vadd.xlane.f32.xlu0 %v120
  %v122 = vpop.xlane.xlu0 %121
  %v123 = vsel %vm55, %v103, 0.0
  %124 = vadd.xlane.f32.xlu0 %v123
  %v125 = vpop.xlane.xlu0 %124
  %v126 = vsel %vm55, %v104, 0.0
  %127 = vadd.xlane.f32.xlu0 %v126
  %v128 = vpop.xlane.xlu0 %127
  %v129 = vmul.f32 %v107, %v80
  %v130 = vmul.f32 %v110, %v80
  %v131 = vmul.f32 %v113, %v80
  %v132 = vmul.f32 %v116, %v80
  %v133 = vmul.f32 %v119, %v80
  %v134 = vmul.f32 %v122, %v80
  %v135 = vmul.f32 %v125, %v80
  %v136 = vmul.f32 %v128, %v80
  %v137 = vadd.f32 %v129, 1e-05
  %v138 = vadd.f32 %v130, 1e-05
  %v139 = vadd.f32 %v131, 1e-05
  %v140 = vadd.f32 %v132, 1e-05
  %v141 = vadd.f32 %v133, 1e-05
  %v142 = vadd.f32 %v134, 1e-05
  %v143 = vadd.f32 %v135, 1e-05
  %v144 = vadd.f32 %v136, 1e-05
  %v145 = vrsqrt.pop %v137
  %v146 = vrsqrt.pop %v138
  %v147 = vrsqrt.pop %v139
  %v148 = vrsqrt.pop %v140
  %v149 = vrsqrt.pop %v141
  %v150 = vrsqrt.pop %v142
  %v151 = vrsqrt.pop %v143
  %v152 = vrsqrt.pop %v144
  %v153 = vmul.f32 %v89, %v145
  %v154 = vmul.f32 %v90, %v146
  %v155 = vmul.f32 %v91, %v147
  %v156 = vmul.f32 %v92, %v148
  %v157 = vmul.f32 %v93, %v149
  %v158 = vmul.f32 %v94, %v150
  %v159 = vmul.f32 %v95, %v151
  %v160 = vmul.f32 %v96, %v152
  %v162 = vlaneseq
  %v163 = vshrl.u32 %v162, 7
  %v164 = vsub.s32 0, %v163
  %v165 = vrot.slane %v53, %v164
  %v167 = vmul.f32 %v153, %v165
  %v168 = vmul.f32 %v154, %v165
  %v169 = vmul.f32 %v155, %v165
  %v170 = vmul.f32 %v156, %v165
  %v171 = vmul.f32 %v157, %v165
  %v172 = vmul.f32 %v158, %v165
  %v173 = vmul.f32 %v159, %v165
  %v174 = vmul.f32 %v160, %v165
  %v176 = vlaneseq
  %v177 = vshrl.u32 %v176, 7
  %v178 = vsub.s32 0, %v177
  %v179 = vrot.slane %v54, %v178
  %v181 = vadd.f32 %v167, %v179
  %v182 = vadd.f32 %v168, %v179
  %v183 = vadd.f32 %v169, %v179
  %v184 = vadd.f32 %v170, %v179
  %v185 = vadd.f32 %v171, %v179
  %v186 = vadd.f32 %v172, %v179
  %v187 = vadd.f32 %v173, %v179
  %v188 = vadd.f32 %v174, %v179
  %v189 = vpack.c.bf16 %v182, %v181
  %v190 = vpack.c.bf16 %v184, %v183
  %v191 = vpack.c.bf16 %v186, %v185
  %v192 = vpack.c.bf16 %v188, %v187
  %v193 = vld [vmem:[%s3] sm:$0xf]
  %v194 = vld [vmem:[%s3 + $0x4] sm:$0xf]
  %v195 = vld [vmem:[%s3 + $0x8] sm:$0xf]
  %v196 = vld [vmem:[%s3 + $0xc] sm:$0xf]
  %v197 = vld [vmem:[%s4] sm:$0x1]
  %v199 = vlaneseq
  %v200 = vshrl.u32 %v199, 7
  %v201 = vsub.s32 0, %v200
  %v202 = vrot.slane %v197, %v201
  %v208 = vunpack.c.l.b16 %v193
  %v209 = vunpack.c.l.b16 %v194
  %v210 = vunpack.c.l.b16 %v195
  %v211 = vunpack.c.l.b16 %v196
  %v212 = vpack.c.b16 %v209, %v208
  %v213 = vpack.c.b16 %v211, %v210
  %v217 = vsel %vm55, %v189, 0
  %v220 = vsel %vm55, %v190, 0
  %v223 = vsel %vm55, %v191, 0
  %v226 = vsel %vm55, %v192, 0
  %228 = vmatprep.subr.bf16.mxu0 0
  %229 = vmatpush1.bf16.msra.mxu0 0
  %230 = vmatprep.subr.bf16.mxu0 0
  %231 = vmatpush1.bf16.msra.mxu0 0
  %232 = vmatprep.subr.bf16.mxu0 0
  %233 = vmatpush1.bf16.msra.mxu0 0
  %234 = vmatprep.subr.bf16.mxu0 0
  %235 = vmatpush1.bf16.msra.mxu0 0
  %236 = vmatprep.subr.bf16.mxu0 0
  %237 = vmatpush1.bf16.msra.mxu0 0
  %238 = vmatprep.subr.bf16.mxu0 0
  %239 = vmatpush1.bf16.msra.mxu0 0
  %240 = vmatprep.subr.bf16.mxu0 0
  %241 = vmatpush1.bf16.msra.mxu0 %v213
  %242 = vmatprep.subr.bf16.mxu0 0
  %243 = vmatpush1.bf16.msra.mxu0 %v212
  %244 = vmatprep.subr.bf16.mxu0 0
  %245 = vmatpush2.bf16.msra.mxu0 0
  %246 = vmatprep.subr.bf16.mxu0 0
  %247 = vmatpush2.bf16.msra.mxu0 0
  %248 = vmatprep.subr.bf16.mxu0 0
  %249 = vmatpush2.bf16.msra.mxu0 0
  %250 = vmatprep.subr.bf16.mxu0 0
  %251 = vmatpush2.bf16.msra.mxu0 0
  %252 = vmatprep.subr.bf16.mxu0 0
  %253 = vmatpush2.bf16.msra.mxu0 0
  %254 = vmatprep.subr.bf16.mxu0 0
  %255 = vmatpush2.bf16.msra.mxu0 0
  %256 = vmatprep.subr.bf16.mxu0 0
  %257 = vmatpush2.bf16.msra.mxu0 0
  %258 = vmatprep.subr.bf16.mxu0 0
  %259 = vmatpush2.bf16.msra.mxu0 0
  %260 = vmatprep.mubr.bf16.mxu0 0
  %261 = vmatmul.mubr.bf16.gmra.mxu0 %v217
  %v262 = vpop.f32.mrf.mxu0
  %v263 = vadd.f32 %v202, %v262
  %v264 = vpop.f32.mrf.mxu0
  %v265 = vpop.f32.mrf.mxu0
  %v266 = vadd.f32 %v202, %v265
  %v267 = vpop.f32.mrf.mxu0
  %268 = vmatprep.mubr.bf16.mxu0 0
  %269 = vmatmul.mubr.bf16.gmra.mxu0 %v220
  %v270 = vpop.f32.mrf.mxu0
  %v271 = vadd.f32 %v202, %v270
  %v272 = vpop.f32.mrf.mxu0
  %v273 = vpop.f32.mrf.mxu0
  %v274 = vadd.f32 %v202, %v273
  %v275 = vpop.f32.mrf.mxu0
  %276 = vmatprep.mubr.bf16.mxu0 0
  %277 = vmatmul.mubr.bf16.gmra.mxu0 %v223
  %v278 = vpop.f32.mrf.mxu0
  %v279 = vadd.f32 %v202, %v278
  %v280 = vpop.f32.mrf.mxu0
  %v281 = vpop.f32.mrf.mxu0
  %v282 = vadd.f32 %v202, %v281
  %v283 = vpop.f32.mrf.mxu0
  %284 = vmatprep.mubr.bf16.mxu0 0
  %285 = vmatmul.mubr.bf16.gmra.mxu0 %v226
  %v286 = vpop.f32.mrf.mxu0
  %v287 = vadd.f32 %v202, %v286
  %v288 = vpop.f32.mrf.mxu0
  %v289 = vpop.f32.mrf.mxu0
  %v290 = vadd.f32 %v202, %v289
  %v291 = vpop.f32.mrf.mxu0
  %292 = vdwg.mxu0
  %v293 = vpack.c.bf16 %v263, %v263
  %v294 = vpack.c.bf16 %v266, %v266
  %v295 = vpack.c.bf16 %v271, %v271
  %v296 = vpack.c.bf16 %v274, %v274
  %v297 = vpack.c.bf16 %v279, %v279
  %v298 = vpack.c.bf16 %v282, %v282
  %v299 = vpack.c.bf16 %v287, %v287
  %v300 = vpack.c.bf16 %v290, %v290
  %302 = vrot.lane.b32.xlu0 %v293, 96
  %v303 = vpop.permute.xlu0 %302
  %vm304 = vcmask 64512
  %v306 = vsel %vm304, %v293, 0
  %v309 = vsel %vm304, %v303, 0
  %311 = vmatprep.subr.bf16.mxu0 0
  %312 = vmatpush1.bf16.xpose.msra.mxu0 0
  %313 = vmatprep.subr.bf16.mxu0 0
  %314 = vmatpush1.bf16.xpose.msra.mxu0 0
  %315 = vmatprep.subr.bf16.mxu0 0
  %316 = vmatpush1.bf16.xpose.msra.mxu0 0
  %317 = vmatprep.subr.bf16.mxu0 0
  %318 = vmatpush1.bf16.xpose.msra.mxu0 0
  %319 = vmatprep.subr.bf16.mxu0 0
  %320 = vmatpush1.bf16.xpose.msra.mxu0 0
  %321 = vmatprep.subr.bf16.mxu0 0
  %322 = vmatpush1.bf16.xpose.msra.mxu0 0
  %323 = vmatprep.subr.bf16.mxu0 0
  %324 = vmatpush1.bf16.xpose.msra.mxu0 0
  %325 = vmatprep.subr.bf16.mxu0 0
  %326 = vmatpush1.bf16.xpose.msra.mxu0 %v309
  %327 = vmatprep.subr.bf16.mxu0 0
  %328 = vmatpush2.bf16.xpose.msra.mxu0 0
  %329 = vmatprep.subr.bf16.mxu0 0
  %330 = vmatpush2.bf16.xpose.msra.mxu0 0
  %331 = vmatprep.subr.bf16.mxu0 0
  %332 = vmatpush2.bf16.xpose.msra.mxu0 0
  %333 = vmatprep.subr.bf16.mxu0 0
  %334 = vmatpush2.bf16.xpose.msra.mxu0 0
  %335 = vmatprep.subr.bf16.mxu0 0
  %336 = vmatpush2.bf16.xpose.msra.mxu0 0
  %337 = vmatprep.subr.bf16.mxu0 0
  %338 = vmatpush2.bf16.xpose.msra.mxu0 0
  %339 = vmatprep.subr.bf16.mxu0 0
  %340 = vmatpush2.bf16.xpose.msra.mxu0 0
  %341 = vmatprep.subr.bf16.mxu0 0
  %342 = vmatpush2.bf16.xpose.msra.mxu0 0
  %343 = vmatprep.mubr.bf16.mxu0 0
  %344 = vmatmul.mubr.bf16.gmra.mxu0 %v306
  %v345 = vpop.f32.mrf.mxu0
  %v346 = vadd.f32 0.0, %v345
  %v347 = vpop.f32.mrf.mxu0
  %v348 = vpop.f32.mrf.mxu0
  %v349 = vpop.f32.mrf.mxu0
  %350 = vdwg.mxu0
  %352 = vrot.lane.b32.xlu0 %v294, 96
  %v353 = vpop.permute.xlu0 %352
  %v355 = vsel %vm304, %v294, 0
  %v358 = vsel %vm304, %v353, 0
  %360 = vmatprep.subr.bf16.mxu0 0
  %361 = vmatpush1.bf16.xpose.msra.mxu0 0
  %362 = vmatprep.subr.bf16.mxu0 0
  %363 = vmatpush1.bf16.xpose.msra.mxu0 0
  %364 = vmatprep.subr.bf16.mxu0 0
  %365 = vmatpush1.bf16.xpose.msra.mxu0 0
  %366 = vmatprep.subr.bf16.mxu0 0
  %367 = vmatpush1.bf16.xpose.msra.mxu0 0
  %368 = vmatprep.subr.bf16.mxu0 0
  %369 = vmatpush1.bf16.xpose.msra.mxu0 0
  %370 = vmatprep.subr.bf16.mxu0 0
  %371 = vmatpush1.bf16.xpose.msra.mxu0 0
  %372 = vmatprep.subr.bf16.mxu0 0
  %373 = vmatpush1.bf16.xpose.msra.mxu0 0
  %374 = vmatprep.subr.bf16.mxu0 0
  %375 = vmatpush1.bf16.xpose.msra.mxu0 %v358
  %376 = vmatprep.subr.bf16.mxu0 0
  %377 = vmatpush2.bf16.xpose.msra.mxu0 0
  %378 = vmatprep.subr.bf16.mxu0 0
  %379 = vmatpush2.bf16.xpose.msra.mxu0 0
  %380 = vmatprep.subr.bf16.mxu0 0
  %381 = vmatpush2.bf16.xpose.msra.mxu0 0
  %382 = vmatprep.subr.bf16.mxu0 0
  %383 = vmatpush2.bf16.xpose.msra.mxu0 0
  %384 = vmatprep.subr.bf16.mxu0 0
  %385 = vmatpush2.bf16.xpose.msra.mxu0 0
  %386 = vmatprep.subr.bf16.mxu0 0
  %387 = vmatpush2.bf16.xpose.msra.mxu0 0
  %388 = vmatprep.subr.bf16.mxu0 0
  %389 = vmatpush2.bf16.xpose.msra.mxu0 0
  %390 = vmatprep.subr.bf16.mxu0 0
  %391 = vmatpush2.bf16.xpose.msra.mxu0 0
  %392 = vmatprep.mubr.bf16.mxu0 0
  %393 = vmatmul.mubr.bf16.gmra.mxu0 %v355
  %v394 = vpop.f32.mrf.mxu0
  %v395 = vadd.f32 0.0, %v394
  %v396 = vpop.f32.mrf.mxu0
  %v397 = vpop.f32.mrf.mxu0
  %v398 = vpop.f32.mrf.mxu0
  %399 = vdwg.mxu0
  %401 = vrot.lane.b32.xlu0 %v295, 96
  %v402 = vpop.permute.xlu0 %401
  %v404 = vsel %vm304, %v295, 0
  %v407 = vsel %vm304, %v402, 0
  %409 = vmatprep.subr.bf16.mxu0 0
  %410 = vmatpush1.bf16.xpose.msra.mxu0 0
  %411 = vmatprep.subr.bf16.mxu0 0
  %412 = vmatpush1.bf16.xpose.msra.mxu0 0
  %413 = vmatprep.subr.bf16.mxu0 0
  %414 = vmatpush1.bf16.xpose.msra.mxu0 0
  %415 = vmatprep.subr.bf16.mxu0 0
  %416 = vmatpush1.bf16.xpose.msra.mxu0 0
  %417 = vmatprep.subr.bf16.mxu0 0
  %418 = vmatpush1.bf16.xpose.msra.mxu0 0
  %419 = vmatprep.subr.bf16.mxu0 0
  %420 = vmatpush1.bf16.xpose.msra.mxu0 0
  %421 = vmatprep.subr.bf16.mxu0 0
  %422 = vmatpush1.bf16.xpose.msra.mxu0 0
  %423 = vmatprep.subr.bf16.mxu0 0
  %424 = vmatpush1.bf16.xpose.msra.mxu0 %v407
  %425 = vmatprep.subr.bf16.mxu0 0
  %426 = vmatpush2.bf16.xpose.msra.mxu0 0
  %427 = vmatprep.subr.bf16.mxu0 0
  %428 = vmatpush2.bf16.xpose.msra.mxu0 0
  %429 = vmatprep.subr.bf16.mxu0 0
  %430 = vmatpush2.bf16.xpose.msra.mxu0 0
  %431 = vmatprep.subr.bf16.mxu0 0
  %432 = vmatpush2.bf16.xpose.msra.mxu0 0
  %433 = vmatprep.subr.bf16.mxu0 0
  %434 = vmatpush2.bf16.xpose.msra.mxu0 0
  %435 = vmatprep.subr.bf16.mxu0 0
  %436 = vmatpush2.bf16.xpose.msra.mxu0 0
  %437 = vmatprep.subr.bf16.mxu0 0
  %438 = vmatpush2.bf16.xpose.msra.mxu0 0
  %439 = vmatprep.subr.bf16.mxu0 0
  %440 = vmatpush2.bf16.xpose.msra.mxu0 0
  %441 = vmatprep.mubr.bf16.mxu0 0
  %442 = vmatmul.mubr.bf16.gmra.mxu0 %v404
  %v443 = vpop.f32.mrf.mxu0
  %v444 = vadd.f32 0.0, %v443
  %v445 = vpop.f32.mrf.mxu0
  %v446 = vpop.f32.mrf.mxu0
  %v447 = vpop.f32.mrf.mxu0
  %448 = vdwg.mxu0
  %450 = vrot.lane.b32.xlu0 %v296, 96
  %v451 = vpop.permute.xlu0 %450
  %v453 = vsel %vm304, %v296, 0
  %v456 = vsel %vm304, %v451, 0
  %458 = vmatprep.subr.bf16.mxu0 0
  %459 = vmatpush1.bf16.xpose.msra.mxu0 0
  %460 = vmatprep.subr.bf16.mxu0 0
  %461 = vmatpush1.bf16.xpose.msra.mxu0 0
  %462 = vmatprep.subr.bf16.mxu0 0
  %463 = vmatpush1.bf16.xpose.msra.mxu0 0
  %464 = vmatprep.subr.bf16.mxu0 0
  %465 = vmatpush1.bf16.xpose.msra.mxu0 0
  %466 = vmatprep.subr.bf16.mxu0 0
  %467 = vmatpush1.bf16.xpose.msra.mxu0 0
  %468 = vmatprep.subr.bf16.mxu0 0
  %469 = vmatpush1.bf16.xpose.msra.mxu0 0
  %470 = vmatprep.subr.bf16.mxu0 0
  %471 = vmatpush1.bf16.xpose.msra.mxu0 0
  %472 = vmatprep.subr.bf16.mxu0 0
  %473 = vmatpush1.bf16.xpose.msra.mxu0 %v456
  %474 = vmatprep.subr.bf16.mxu0 0
  %475 = vmatpush2.bf16.xpose.msra.mxu0 0
  %476 = vmatprep.subr.bf16.mxu0 0
  %477 = vmatpush2.bf16.xpose.msra.mxu0 0
  %478 = vmatprep.subr.bf16.mxu0 0
  %479 = vmatpush2.bf16.xpose.msra.mxu0 0
  %480 = vmatprep.subr.bf16.mxu0 0
  %481 = vmatpush2.bf16.xpose.msra.mxu0 0
  %482 = vmatprep.subr.bf16.mxu0 0
  %483 = vmatpush2.bf16.xpose.msra.mxu0 0
  %484 = vmatprep.subr.bf16.mxu0 0
  %485 = vmatpush2.bf16.xpose.msra.mxu0 0
  %486 = vmatprep.subr.bf16.mxu0 0
  %487 = vmatpush2.bf16.xpose.msra.mxu0 0
  %488 = vmatprep.subr.bf16.mxu0 0
  %489 = vmatpush2.bf16.xpose.msra.mxu0 0
  %490 = vmatprep.mubr.bf16.mxu0 0
  %491 = vmatmul.mubr.bf16.gmra.mxu0 %v453
  %v492 = vpop.f32.mrf.mxu0
  %v493 = vadd.f32 0.0, %v492
  %v494 = vpop.f32.mrf.mxu0
  %v495 = vpop.f32.mrf.mxu0
  %v496 = vpop.f32.mrf.mxu0
  %497 = vdwg.mxu0
  %499 = vrot.lane.b32.xlu0 %v297, 96
  %v500 = vpop.permute.xlu0 %499
  %v502 = vsel %vm304, %v297, 0
  %v505 = vsel %vm304, %v500, 0
  %507 = vmatprep.subr.bf16.mxu0 0
  %508 = vmatpush1.bf16.xpose.msra.mxu0 0
  %509 = vmatprep.subr.bf16.mxu0 0
  %510 = vmatpush1.bf16.xpose.msra.mxu0 0
  %511 = vmatprep.subr.bf16.mxu0 0
  %512 = vmatpush1.bf16.xpose.msra.mxu0 0
  %513 = vmatprep.subr.bf16.mxu0 0
  %514 = vmatpush1.bf16.xpose.msra.mxu0 0
  %515 = vmatprep.subr.bf16.mxu0 0
  %516 = vmatpush1.bf16.xpose.msra.mxu0 0
  %517 = vmatprep.subr.bf16.mxu0 0
  %518 = vmatpush1.bf16.xpose.msra.mxu0 0
  %519 = vmatprep.subr.bf16.mxu0 0
  %520 = vmatpush1.bf16.xpose.msra.mxu0 0
  %521 = vmatprep.subr.bf16.mxu0 0
  %522 = vmatpush1.bf16.xpose.msra.mxu0 %v505
  %523 = vmatprep.subr.bf16.mxu0 0
  %524 = vmatpush2.bf16.xpose.msra.mxu0 0
  %525 = vmatprep.subr.bf16.mxu0 0
  %526 = vmatpush2.bf16.xpose.msra.mxu0 0
  %527 = vmatprep.subr.bf16.mxu0 0
  %528 = vmatpush2.bf16.xpose.msra.mxu0 0
  %529 = vmatprep.subr.bf16.mxu0 0
  %530 = vmatpush2.bf16.xpose.msra.mxu0 0
  %531 = vmatprep.subr.bf16.mxu0 0
  %532 = vmatpush2.bf16.xpose.msra.mxu0 0
  %533 = vmatprep.subr.bf16.mxu0 0
  %534 = vmatpush2.bf16.xpose.msra.mxu0 0
  %535 = vmatprep.subr.bf16.mxu0 0
  %536 = vmatpush2.bf16.xpose.msra.mxu0 0
  %537 = vmatprep.subr.bf16.mxu0 0
  %538 = vmatpush2.bf16.xpose.msra.mxu0 0
  %539 = vmatprep.mubr.bf16.mxu0 0
  %540 = vmatmul.mubr.bf16.gmra.mxu0 %v502
  %v541 = vpop.f32.mrf.mxu0
  %v542 = vadd.f32 0.0, %v541
  %v543 = vpop.f32.mrf.mxu0
  %v544 = vpop.f32.mrf.mxu0
  %v545 = vpop.f32.mrf.mxu0
  %546 = vdwg.mxu0
  %548 = vrot.lane.b32.xlu0 %v298, 96
  %v549 = vpop.permute.xlu0 %548
  %v551 = vsel %vm304, %v298, 0
  %v554 = vsel %vm304, %v549, 0
  %556 = vmatprep.subr.bf16.mxu0 0
  %557 = vmatpush1.bf16.xpose.msra.mxu0 0
  %558 = vmatprep.subr.bf16.mxu0 0
  %559 = vmatpush1.bf16.xpose.msra.mxu0 0
  %560 = vmatprep.subr.bf16.mxu0 0
  %561 = vmatpush1.bf16.xpose.msra.mxu0 0
  %562 = vmatprep.subr.bf16.mxu0 0
  %563 = vmatpush1.bf16.xpose.msra.mxu0 0
  %564 = vmatprep.subr.bf16.mxu0 0
  %565 = vmatpush1.bf16.xpose.msra.mxu0 0
  %566 = vmatprep.subr.bf16.mxu0 0
  %567 = vmatpush1.bf16.xpose.msra.mxu0 0
  %568 = vmatprep.subr.bf16.mxu0 0
  %569 = vmatpush1.bf16.xpose.msra.mxu0 0
  %570 = vmatprep.subr.bf16.mxu0 0
  %571 = vmatpush1.bf16.xpose.msra.mxu0 %v554
  %572 = vmatprep.subr.bf16.mxu0 0
  %573 = vmatpush2.bf16.xpose.msra.mxu0 0
  %574 = vmatprep.subr.bf16.mxu0 0
  %575 = vmatpush2.bf16.xpose.msra.mxu0 0
  %576 = vmatprep.subr.bf16.mxu0 0
  %577 = vmatpush2.bf16.xpose.msra.mxu0 0
  %578 = vmatprep.subr.bf16.mxu0 0
  %579 = vmatpush2.bf16.xpose.msra.mxu0 0
  %580 = vmatprep.subr.bf16.mxu0 0
  %581 = vmatpush2.bf16.xpose.msra.mxu0 0
  %582 = vmatprep.subr.bf16.mxu0 0
  %583 = vmatpush2.bf16.xpose.msra.mxu0 0
  %584 = vmatprep.subr.bf16.mxu0 0
  %585 = vmatpush2.bf16.xpose.msra.mxu0 0
  %586 = vmatprep.subr.bf16.mxu0 0
  %587 = vmatpush2.bf16.xpose.msra.mxu0 0
  %588 = vmatprep.mubr.bf16.mxu0 0
  %589 = vmatmul.mubr.bf16.gmra.mxu0 %v551
  %v590 = vpop.f32.mrf.mxu0
  %v591 = vadd.f32 0.0, %v590
  %v592 = vpop.f32.mrf.mxu0
  %v593 = vpop.f32.mrf.mxu0
  %v594 = vpop.f32.mrf.mxu0
  %595 = vdwg.mxu0
  %597 = vrot.lane.b32.xlu0 %v299, 96
  %v598 = vpop.permute.xlu0 %597
  %v600 = vsel %vm304, %v299, 0
  %v603 = vsel %vm304, %v598, 0
  %605 = vmatprep.subr.bf16.mxu0 0
  %606 = vmatpush1.bf16.xpose.msra.mxu0 0
  %607 = vmatprep.subr.bf16.mxu0 0
  %608 = vmatpush1.bf16.xpose.msra.mxu0 0
  %609 = vmatprep.subr.bf16.mxu0 0
  %610 = vmatpush1.bf16.xpose.msra.mxu0 0
  %611 = vmatprep.subr.bf16.mxu0 0
  %612 = vmatpush1.bf16.xpose.msra.mxu0 0
  %613 = vmatprep.subr.bf16.mxu0 0
  %614 = vmatpush1.bf16.xpose.msra.mxu0 0
  %615 = vmatprep.subr.bf16.mxu0 0
  %616 = vmatpush1.bf16.xpose.msra.mxu0 0
  %617 = vmatprep.subr.bf16.mxu0 0
  %618 = vmatpush1.bf16.xpose.msra.mxu0 0
  %619 = vmatprep.subr.bf16.mxu0 0
  %620 = vmatpush1.bf16.xpose.msra.mxu0 %v603
  %621 = vmatprep.subr.bf16.mxu0 0
  %622 = vmatpush2.bf16.xpose.msra.mxu0 0
  %623 = vmatprep.subr.bf16.mxu0 0
  %624 = vmatpush2.bf16.xpose.msra.mxu0 0
  %625 = vmatprep.subr.bf16.mxu0 0
  %626 = vmatpush2.bf16.xpose.msra.mxu0 0
  %627 = vmatprep.subr.bf16.mxu0 0
  %628 = vmatpush2.bf16.xpose.msra.mxu0 0
  %629 = vmatprep.subr.bf16.mxu0 0
  %630 = vmatpush2.bf16.xpose.msra.mxu0 0
  %631 = vmatprep.subr.bf16.mxu0 0
  %632 = vmatpush2.bf16.xpose.msra.mxu0 0
  %633 = vmatprep.subr.bf16.mxu0 0
  %634 = vmatpush2.bf16.xpose.msra.mxu0 0
  %635 = vmatprep.subr.bf16.mxu0 0
  %636 = vmatpush2.bf16.xpose.msra.mxu0 0
  %637 = vmatprep.mubr.bf16.mxu0 0
  %638 = vmatmul.mubr.bf16.gmra.mxu0 %v600
  %v639 = vpop.f32.mrf.mxu0
  %v640 = vadd.f32 0.0, %v639
  %v641 = vpop.f32.mrf.mxu0
  %v642 = vpop.f32.mrf.mxu0
  %v643 = vpop.f32.mrf.mxu0
  %644 = vdwg.mxu0
  %646 = vrot.lane.b32.xlu0 %v300, 96
  %v647 = vpop.permute.xlu0 %646
  %v649 = vsel %vm304, %v300, 0
  %v652 = vsel %vm304, %v647, 0
  %654 = vmatprep.subr.bf16.mxu0 0
  %655 = vmatpush1.bf16.xpose.msra.mxu0 0
  %656 = vmatprep.subr.bf16.mxu0 0
  %657 = vmatpush1.bf16.xpose.msra.mxu0 0
  %658 = vmatprep.subr.bf16.mxu0 0
  %659 = vmatpush1.bf16.xpose.msra.mxu0 0
  %660 = vmatprep.subr.bf16.mxu0 0
  %661 = vmatpush1.bf16.xpose.msra.mxu0 0
  %662 = vmatprep.subr.bf16.mxu0 0
  %663 = vmatpush1.bf16.xpose.msra.mxu0 0
  %664 = vmatprep.subr.bf16.mxu0 0
  %665 = vmatpush1.bf16.xpose.msra.mxu0 0
  %666 = vmatprep.subr.bf16.mxu0 0
  %667 = vmatpush1.bf16.xpose.msra.mxu0 0
  %668 = vmatprep.subr.bf16.mxu0 0
  %669 = vmatpush1.bf16.xpose.msra.mxu0 %v652
  %670 = vmatprep.subr.bf16.mxu0 0
  %671 = vmatpush2.bf16.xpose.msra.mxu0 0
  %672 = vmatprep.subr.bf16.mxu0 0
  %673 = vmatpush2.bf16.xpose.msra.mxu0 0
  %674 = vmatprep.subr.bf16.mxu0 0
  %675 = vmatpush2.bf16.xpose.msra.mxu0 0
  %676 = vmatprep.subr.bf16.mxu0 0
  %677 = vmatpush2.bf16.xpose.msra.mxu0 0
  %678 = vmatprep.subr.bf16.mxu0 0
  %679 = vmatpush2.bf16.xpose.msra.mxu0 0
  %680 = vmatprep.subr.bf16.mxu0 0
  %681 = vmatpush2.bf16.xpose.msra.mxu0 0
  %682 = vmatprep.subr.bf16.mxu0 0
  %683 = vmatpush2.bf16.xpose.msra.mxu0 0
  %684 = vmatprep.subr.bf16.mxu0 0
  %685 = vmatpush2.bf16.xpose.msra.mxu0 0
  %686 = vmatprep.mubr.bf16.mxu0 0
  %687 = vmatmul.mubr.bf16.gmra.mxu0 %v649
  %v688 = vpop.f32.mrf.mxu0
  %v689 = vadd.f32 0.0, %v688
  %v690 = vpop.f32.mrf.mxu0
  %v691 = vpop.f32.mrf.mxu0
  %v692 = vpop.f32.mrf.mxu0
  %693 = vdwg.mxu0
  %v694 = vmul.f32 %v346, 0.35355338
  %v695 = vmul.f32 %v395, 0.35355338
  %v696 = vmul.f32 %v444, 0.35355338
  %v697 = vmul.f32 %v493, 0.35355338
  %v698 = vmul.f32 %v542, 0.35355338
  %v699 = vmul.f32 %v591, 0.35355338
  %v700 = vmul.f32 %v640, 0.35355338
  %v701 = vmul.f32 %v689, 0.35355338
  %v702 = vlaneseq
  %v703 = vand.u32 %v702, 127
  %vm704 = vcmp.lt.s32.totalorder %v703, 2
  %v705 = vsel %vm704, %v694, -1e+30
  %v706 = vsel %vm704, %v695, -1e+30
  %v707 = vsel %vm704, %v696, -1e+30
  %v708 = vsel %vm704, %v697, -1e+30
  %v709 = vsel %vm704, %v698, -1e+30
  %v710 = vsel %vm704, %v699, -1e+30
  %v711 = vsel %vm704, %v700, -1e+30
  %v712 = vsel %vm704, %v701, -1e+30
  %v713 = vsel %vm304, %v705, -inf
  %714 = vmax.xlane.f32.xlu0 %v713
  %v715 = vpop.xlane.xlu0 %714
  %v716 = vsel %vm304, %v706, -inf
  %717 = vmax.xlane.f32.xlu0 %v716
  %v718 = vpop.xlane.xlu0 %717
  %v719 = vsel %vm304, %v707, -inf
  %720 = vmax.xlane.f32.xlu0 %v719
  %v721 = vpop.xlane.xlu0 %720
  %v722 = vsel %vm304, %v708, -inf
  %723 = vmax.xlane.f32.xlu0 %v722
  %v724 = vpop.xlane.xlu0 %723
  %v725 = vsel %vm304, %v709, -inf
  %726 = vmax.xlane.f32.xlu0 %v725
  %v727 = vpop.xlane.xlu0 %726
  %v728 = vsel %vm304, %v710, -inf
  %729 = vmax.xlane.f32.xlu0 %v728
  %v730 = vpop.xlane.xlu0 %729
  %v731 = vsel %vm304, %v711, -inf
  %732 = vmax.xlane.f32.xlu0 %v731
  %v733 = vpop.xlane.xlu0 %732
  %v734 = vsel %vm304, %v712, -inf
  %735 = vmax.xlane.f32.xlu0 %v734
  %v736 = vpop.xlane.xlu0 %735
  %v737 = vsub.f32 %v705, %v715
  %v738 = vsub.f32 %v706, %v718
  %v739 = vsub.f32 %v707, %v721
  %v740 = vsub.f32 %v708, %v724
  %v741 = vsub.f32 %v709, %v727
  %v742 = vsub.f32 %v710, %v730
  %v743 = vsub.f32 %v711, %v733
  %v744 = vsub.f32 %v712, %v736
  %v745 = vmul.f32 %v737, 1.442695
  %v746 = vpow.pop %v745
  %v747 = vmul.f32 %v738, 1.442695
  %v748 = vpow.pop %v747
  %v749 = vmul.f32 %v739, 1.442695
  %v750 = vpow.pop %v749
  %v751 = vmul.f32 %v740, 1.442695
  %v752 = vpow.pop %v751
  %v753 = vmul.f32 %v741, 1.442695
  %v754 = vpow.pop %v753
  %v755 = vmul.f32 %v742, 1.442695
  %v756 = vpow.pop %v755
  %v757 = vmul.f32 %v743, 1.442695
  %v758 = vpow.pop %v757
  %v759 = vmul.f32 %v744, 1.442695
  %v760 = vpow.pop %v759
  %v761 = vsel %vm304, %v746, 0.0
  %762 = vadd.xlane.f32.xlu0 %v761
  %v763 = vpop.xlane.xlu0 %762
  %v764 = vsel %vm304, %v748, 0.0
  %765 = vadd.xlane.f32.xlu0 %v764
  %v766 = vpop.xlane.xlu0 %765
  %v767 = vsel %vm304, %v750, 0.0
  %768 = vadd.xlane.f32.xlu0 %v767
  %v769 = vpop.xlane.xlu0 %768
  %v770 = vsel %vm304, %v752, 0.0
  %771 = vadd.xlane.f32.xlu0 %v770
  %v772 = vpop.xlane.xlu0 %771
  %v773 = vsel %vm304, %v754, 0.0
  %774 = vadd.xlane.f32.xlu0 %v773
  %v775 = vpop.xlane.xlu0 %774
  %v776 = vsel %vm304, %v756, 0.0
  %777 = vadd.xlane.f32.xlu0 %v776
  %v778 = vpop.xlane.xlu0 %777
  %v779 = vsel %vm304, %v758, 0.0
  %780 = vadd.xlane.f32.xlu0 %v779
  %v781 = vpop.xlane.xlu0 %780
  %v782 = vsel %vm304, %v760, 0.0
  %783 = vadd.xlane.f32.xlu0 %v782
  %v784 = vpop.xlane.xlu0 %783
  %v785 = vrcp.pop %v763
  %v786 = vmul.f32 1.0, %v785
  %v787 = vrcp.pop %v766
  %v788 = vmul.f32 1.0, %v787
  %v789 = vrcp.pop %v769
  %v790 = vmul.f32 1.0, %v789
  %v791 = vrcp.pop %v772
  %v792 = vmul.f32 1.0, %v791
  %v793 = vrcp.pop %v775
  %v794 = vmul.f32 1.0, %v793
  %v795 = vrcp.pop %v778
  %v796 = vmul.f32 1.0, %v795
  %v797 = vrcp.pop %v781
  %v798 = vmul.f32 1.0, %v797
  %v799 = vrcp.pop %v784
  %v800 = vmul.f32 1.0, %v799
  %v801 = vmul.f32 %v746, %v786
  %v802 = vmul.f32 %v748, %v788
  %v803 = vmul.f32 %v750, %v790
  %v804 = vmul.f32 %v752, %v792
  %v805 = vmul.f32 %v754, %v794
  %v806 = vmul.f32 %v756, %v796
  %v807 = vmul.f32 %v758, %v798
  %v808 = vmul.f32 %v760, %v800
  %v809 = vpack.c.bf16 %v801, %v801
  %v810 = vpack.c.bf16 %v802, %v802
  %v811 = vpack.c.bf16 %v803, %v803
  %v812 = vpack.c.bf16 %v804, %v804
  %v813 = vpack.c.bf16 %v805, %v805
  %v814 = vpack.c.bf16 %v806, %v806
  %v815 = vpack.c.bf16 %v807, %v807
  %v816 = vpack.c.bf16 %v808, %v808
  %817 = vrot.lane.b32.xlu0 %v293, 64
  %v818 = vpop.permute.xlu0 %817
  %v820 = vsel %vm304, %v809, 0
  %vm822 = vcmask 1043456
  %v824 = vsel %vm822, %v818, 0
  %826 = vmatprep.subr.bf16.mxu0 0
  %827 = vmatpush1.bf16.msra.mxu0 0
  %828 = vmatprep.subr.bf16.mxu0 0
  %829 = vmatpush1.bf16.msra.mxu0 0
  %830 = vmatprep.subr.bf16.mxu0 0
  %831 = vmatpush1.bf16.msra.mxu0 0
  %832 = vmatprep.subr.bf16.mxu0 0
  %833 = vmatpush1.bf16.msra.mxu0 0
  %834 = vmatprep.subr.bf16.mxu0 0
  %835 = vmatpush1.bf16.msra.mxu0 0
  %836 = vmatprep.subr.bf16.mxu0 0
  %837 = vmatpush1.bf16.msra.mxu0 0
  %838 = vmatprep.subr.bf16.mxu0 0
  %839 = vmatpush1.bf16.msra.mxu0 0
  %840 = vmatprep.subr.bf16.mxu0 0
  %841 = vmatpush1.bf16.msra.mxu0 %v824
  %842 = vmatprep.subr.bf16.mxu0 0
  %843 = vmatpush2.bf16.msra.mxu0 0
  %844 = vmatprep.subr.bf16.mxu0 0
  %845 = vmatpush2.bf16.msra.mxu0 0
  %846 = vmatprep.subr.bf16.mxu0 0
  %847 = vmatpush2.bf16.msra.mxu0 0
  %848 = vmatprep.subr.bf16.mxu0 0
  %849 = vmatpush2.bf16.msra.mxu0 0
  %850 = vmatprep.subr.bf16.mxu0 0
  %851 = vmatpush2.bf16.msra.mxu0 0
  %852 = vmatprep.subr.bf16.mxu0 0
  %853 = vmatpush2.bf16.msra.mxu0 0
  %854 = vmatprep.subr.bf16.mxu0 0
  %855 = vmatpush2.bf16.msra.mxu0 0
  %856 = vmatprep.subr.bf16.mxu0 0
  %857 = vmatpush2.bf16.msra.mxu0 0
  %858 = vmatprep.mubr.bf16.mxu0 0
  %859 = vmatmul.mubr.bf16.gmra.mxu0 %v820
  %v860 = vpop.f32.mrf.mxu0
  %v861 = vadd.f32 0.0, %v860
  %v862 = vpop.f32.mrf.mxu0
  %v863 = vpop.f32.mrf.mxu0
  %v864 = vpop.f32.mrf.mxu0
  %865 = vdwg.mxu0
  %866 = vrot.lane.b32.xlu0 %v294, 64
  %v867 = vpop.permute.xlu0 %866
  %v869 = vsel %vm304, %v810, 0
  %v872 = vsel %vm822, %v867, 0
  %874 = vmatprep.subr.bf16.mxu0 0
  %875 = vmatpush1.bf16.msra.mxu0 0
  %876 = vmatprep.subr.bf16.mxu0 0
  %877 = vmatpush1.bf16.msra.mxu0 0
  %878 = vmatprep.subr.bf16.mxu0 0
  %879 = vmatpush1.bf16.msra.mxu0 0
  %880 = vmatprep.subr.bf16.mxu0 0
  %881 = vmatpush1.bf16.msra.mxu0 0
  %882 = vmatprep.subr.bf16.mxu0 0
  %883 = vmatpush1.bf16.msra.mxu0 0
  %884 = vmatprep.subr.bf16.mxu0 0
  %885 = vmatpush1.bf16.msra.mxu0 0
  %886 = vmatprep.subr.bf16.mxu0 0
  %887 = vmatpush1.bf16.msra.mxu0 0
  %888 = vmatprep.subr.bf16.mxu0 0
  %889 = vmatpush1.bf16.msra.mxu0 %v872
  %890 = vmatprep.subr.bf16.mxu0 0
  %891 = vmatpush2.bf16.msra.mxu0 0
  %892 = vmatprep.subr.bf16.mxu0 0
  %893 = vmatpush2.bf16.msra.mxu0 0
  %894 = vmatprep.subr.bf16.mxu0 0
  %895 = vmatpush2.bf16.msra.mxu0 0
  %896 = vmatprep.subr.bf16.mxu0 0
  %897 = vmatpush2.bf16.msra.mxu0 0
  %898 = vmatprep.subr.bf16.mxu0 0
  %899 = vmatpush2.bf16.msra.mxu0 0
  %900 = vmatprep.subr.bf16.mxu0 0
  %901 = vmatpush2.bf16.msra.mxu0 0
  %902 = vmatprep.subr.bf16.mxu0 0
  %903 = vmatpush2.bf16.msra.mxu0 0
  %904 = vmatprep.subr.bf16.mxu0 0
  %905 = vmatpush2.bf16.msra.mxu0 0
  %906 = vmatprep.mubr.bf16.mxu0 0
  %907 = vmatmul.mubr.bf16.gmra.mxu0 %v869
  %v908 = vpop.f32.mrf.mxu0
  %v909 = vadd.f32 0.0, %v908
  %v910 = vpop.f32.mrf.mxu0
  %v911 = vpop.f32.mrf.mxu0
  %v912 = vpop.f32.mrf.mxu0
  %913 = vdwg.mxu0
  %914 = vrot.lane.b32.xlu0 %v295, 64
  %v915 = vpop.permute.xlu0 %914
  %v917 = vsel %vm304, %v811, 0
  %v920 = vsel %vm822, %v915, 0
  %922 = vmatprep.subr.bf16.mxu0 0
  %923 = vmatpush1.bf16.msra.mxu0 0
  %924 = vmatprep.subr.bf16.mxu0 0
  %925 = vmatpush1.bf16.msra.mxu0 0
  %926 = vmatprep.subr.bf16.mxu0 0
  %927 = vmatpush1.bf16.msra.mxu0 0
  %928 = vmatprep.subr.bf16.mxu0 0
  %929 = vmatpush1.bf16.msra.mxu0 0
  %930 = vmatprep.subr.bf16.mxu0 0
  %931 = vmatpush1.bf16.msra.mxu0 0
  %932 = vmatprep.subr.bf16.mxu0 0
  %933 = vmatpush1.bf16.msra.mxu0 0
  %934 = vmatprep.subr.bf16.mxu0 0
  %935 = vmatpush1.bf16.msra.mxu0 0
  %936 = vmatprep.subr.bf16.mxu0 0
  %937 = vmatpush1.bf16.msra.mxu0 %v920
  %938 = vmatprep.subr.bf16.mxu0 0
  %939 = vmatpush2.bf16.msra.mxu0 0
  %940 = vmatprep.subr.bf16.mxu0 0
  %941 = vmatpush2.bf16.msra.mxu0 0
  %942 = vmatprep.subr.bf16.mxu0 0
  %943 = vmatpush2.bf16.msra.mxu0 0
  %944 = vmatprep.subr.bf16.mxu0 0
  %945 = vmatpush2.bf16.msra.mxu0 0
  %946 = vmatprep.subr.bf16.mxu0 0
  %947 = vmatpush2.bf16.msra.mxu0 0
  %948 = vmatprep.subr.bf16.mxu0 0
  %949 = vmatpush2.bf16.msra.mxu0 0
  %950 = vmatprep.subr.bf16.mxu0 0
  %951 = vmatpush2.bf16.msra.mxu0 0
  %952 = vmatprep.subr.bf16.mxu0 0
  %953 = vmatpush2.bf16.msra.mxu0 0
  %954 = vmatprep.mubr.bf16.mxu0 0
  %955 = vmatmul.mubr.bf16.gmra.mxu0 %v917
  %v956 = vpop.f32.mrf.mxu0
  %v957 = vadd.f32 0.0, %v956
  %v958 = vpop.f32.mrf.mxu0
  %v959 = vpop.f32.mrf.mxu0
  %v960 = vpop.f32.mrf.mxu0
  %961 = vdwg.mxu0
  %962 = vrot.lane.b32.xlu0 %v296, 64
  %v963 = vpop.permute.xlu0 %962
  %v965 = vsel %vm304, %v812, 0
  %v968 = vsel %vm822, %v963, 0
  %970 = vmatprep.subr.bf16.mxu0 0
  %971 = vmatpush1.bf16.msra.mxu0 0
  %972 = vmatprep.subr.bf16.mxu0 0
  %973 = vmatpush1.bf16.msra.mxu0 0
  %974 = vmatprep.subr.bf16.mxu0 0
  %975 = vmatpush1.bf16.msra.mxu0 0
  %976 = vmatprep.subr.bf16.mxu0 0
  %977 = vmatpush1.bf16.msra.mxu0 0
  %978 = vmatprep.subr.bf16.mxu0 0
  %979 = vmatpush1.bf16.msra.mxu0 0
  %980 = vmatprep.subr.bf16.mxu0 0
  %981 = vmatpush1.bf16.msra.mxu0 0
  %982 = vmatprep.subr.bf16.mxu0 0
  %983 = vmatpush1.bf16.msra.mxu0 0
  %984 = vmatprep.subr.bf16.mxu0 0
  %985 = vmatpush1.bf16.msra.mxu0 %v968
  %986 = vmatprep.subr.bf16.mxu0 0
  %987 = vmatpush2.bf16.msra.mxu0 0
  %988 = vmatprep.subr.bf16.mxu0 0
  %989 = vmatpush2.bf16.msra.mxu0 0
  %990 = vmatprep.subr.bf16.mxu0 0
  %991 = vmatpush2.bf16.msra.mxu0 0
  %992 = vmatprep.subr.bf16.mxu0 0
  %993 = vmatpush2.bf16.msra.mxu0 0
  %994 = vmatprep.subr.bf16.mxu0 0
  %995 = vmatpush2.bf16.msra.mxu0 0
  %996 = vmatprep.subr.bf16.mxu0 0
  %997 = vmatpush2.bf16.msra.mxu0 0
  %998 = vmatprep.subr.bf16.mxu0 0
  %999 = vmatpush2.bf16.msra.mxu0 0
  %1000 = vmatprep.subr.bf16.mxu0 0
  %1001 = vmatpush2.bf16.msra.mxu0 0
  %1002 = vmatprep.mubr.bf16.mxu0 0
  %1003 = vmatmul.mubr.bf16.gmra.mxu0 %v965
  %v1004 = vpop.f32.mrf.mxu0
  %v1005 = vadd.f32 0.0, %v1004
  %v1006 = vpop.f32.mrf.mxu0
  %v1007 = vpop.f32.mrf.mxu0
  %v1008 = vpop.f32.mrf.mxu0
  %1009 = vdwg.mxu0
  %1010 = vrot.lane.b32.xlu0 %v297, 64
  %v1011 = vpop.permute.xlu0 %1010
  %v1013 = vsel %vm304, %v813, 0
  %v1016 = vsel %vm822, %v1011, 0
  %1018 = vmatprep.subr.bf16.mxu0 0
  %1019 = vmatpush1.bf16.msra.mxu0 0
  %1020 = vmatprep.subr.bf16.mxu0 0
  %1021 = vmatpush1.bf16.msra.mxu0 0
  %1022 = vmatprep.subr.bf16.mxu0 0
  %1023 = vmatpush1.bf16.msra.mxu0 0
  %1024 = vmatprep.subr.bf16.mxu0 0
  %1025 = vmatpush1.bf16.msra.mxu0 0
  %1026 = vmatprep.subr.bf16.mxu0 0
  %1027 = vmatpush1.bf16.msra.mxu0 0
  %1028 = vmatprep.subr.bf16.mxu0 0
  %1029 = vmatpush1.bf16.msra.mxu0 0
  %1030 = vmatprep.subr.bf16.mxu0 0
  %1031 = vmatpush1.bf16.msra.mxu0 0
  %1032 = vmatprep.subr.bf16.mxu0 0
  %1033 = vmatpush1.bf16.msra.mxu0 %v1016
  %1034 = vmatprep.subr.bf16.mxu0 0
  %1035 = vmatpush2.bf16.msra.mxu0 0
  %1036 = vmatprep.subr.bf16.mxu0 0
  %1037 = vmatpush2.bf16.msra.mxu0 0
  %1038 = vmatprep.subr.bf16.mxu0 0
  %1039 = vmatpush2.bf16.msra.mxu0 0
  %1040 = vmatprep.subr.bf16.mxu0 0
  %1041 = vmatpush2.bf16.msra.mxu0 0
  %1042 = vmatprep.subr.bf16.mxu0 0
  %1043 = vmatpush2.bf16.msra.mxu0 0
  %1044 = vmatprep.subr.bf16.mxu0 0
  %1045 = vmatpush2.bf16.msra.mxu0 0
  %1046 = vmatprep.subr.bf16.mxu0 0
  %1047 = vmatpush2.bf16.msra.mxu0 0
  %1048 = vmatprep.subr.bf16.mxu0 0
  %1049 = vmatpush2.bf16.msra.mxu0 0
  %1050 = vmatprep.mubr.bf16.mxu0 0
  %1051 = vmatmul.mubr.bf16.gmra.mxu0 %v1013
  %v1052 = vpop.f32.mrf.mxu0
  %v1053 = vadd.f32 0.0, %v1052
  %v1054 = vpop.f32.mrf.mxu0
  %v1055 = vpop.f32.mrf.mxu0
  %v1056 = vpop.f32.mrf.mxu0
  %1057 = vdwg.mxu0
  %1058 = vrot.lane.b32.xlu0 %v298, 64
  %v1059 = vpop.permute.xlu0 %1058
  %v1061 = vsel %vm304, %v814, 0
  %v1064 = vsel %vm822, %v1059, 0
  %1066 = vmatprep.subr.bf16.mxu0 0
  %1067 = vmatpush1.bf16.msra.mxu0 0
  %1068 = vmatprep.subr.bf16.mxu0 0
  %1069 = vmatpush1.bf16.msra.mxu0 0
  %1070 = vmatprep.subr.bf16.mxu0 0
  %1071 = vmatpush1.bf16.msra.mxu0 0
  %1072 = vmatprep.subr.bf16.mxu0 0
  %1073 = vmatpush1.bf16.msra.mxu0 0
  %1074 = vmatprep.subr.bf16.mxu0 0
  %1075 = vmatpush1.bf16.msra.mxu0 0
  %1076 = vmatprep.subr.bf16.mxu0 0
  %1077 = vmatpush1.bf16.msra.mxu0 0
  %1078 = vmatprep.subr.bf16.mxu0 0
  %1079 = vmatpush1.bf16.msra.mxu0 0
  %1080 = vmatprep.subr.bf16.mxu0 0
  %1081 = vmatpush1.bf16.msra.mxu0 %v1064
  %1082 = vmatprep.subr.bf16.mxu0 0
  %1083 = vmatpush2.bf16.msra.mxu0 0
  %1084 = vmatprep.subr.bf16.mxu0 0
  %1085 = vmatpush2.bf16.msra.mxu0 0
  %1086 = vmatprep.subr.bf16.mxu0 0
  %1087 = vmatpush2.bf16.msra.mxu0 0
  %1088 = vmatprep.subr.bf16.mxu0 0
  %1089 = vmatpush2.bf16.msra.mxu0 0
  %1090 = vmatprep.subr.bf16.mxu0 0
  %1091 = vmatpush2.bf16.msra.mxu0 0
  %1092 = vmatprep.subr.bf16.mxu0 0
  %1093 = vmatpush2.bf16.msra.mxu0 0
  %1094 = vmatprep.subr.bf16.mxu0 0
  %1095 = vmatpush2.bf16.msra.mxu0 0
  %1096 = vmatprep.subr.bf16.mxu0 0
  %1097 = vmatpush2.bf16.msra.mxu0 0
  %1098 = vmatprep.mubr.bf16.mxu0 0
  %1099 = vmatmul.mubr.bf16.gmra.mxu0 %v1061
  %v1100 = vpop.f32.mrf.mxu0
  %v1101 = vadd.f32 0.0, %v1100
  %v1102 = vpop.f32.mrf.mxu0
  %v1103 = vpop.f32.mrf.mxu0
  %v1104 = vpop.f32.mrf.mxu0
  %1105 = vdwg.mxu0
  %1106 = vrot.lane.b32.xlu0 %v299, 64
  %v1107 = vpop.permute.xlu0 %1106
  %v1109 = vsel %vm304, %v815, 0
  %v1112 = vsel %vm822, %v1107, 0
  %1114 = vmatprep.subr.bf16.mxu0 0
  %1115 = vmatpush1.bf16.msra.mxu0 0
  %1116 = vmatprep.subr.bf16.mxu0 0
  %1117 = vmatpush1.bf16.msra.mxu0 0
  %1118 = vmatprep.subr.bf16.mxu0 0
  %1119 = vmatpush1.bf16.msra.mxu0 0
  %1120 = vmatprep.subr.bf16.mxu0 0
  %1121 = vmatpush1.bf16.msra.mxu0 0
  %1122 = vmatprep.subr.bf16.mxu0 0
  %1123 = vmatpush1.bf16.msra.mxu0 0
  %1124 = vmatprep.subr.bf16.mxu0 0
  %1125 = vmatpush1.bf16.msra.mxu0 0
  %1126 = vmatprep.subr.bf16.mxu0 0
  %1127 = vmatpush1.bf16.msra.mxu0 0
  %1128 = vmatprep.subr.bf16.mxu0 0
  %1129 = vmatpush1.bf16.msra.mxu0 %v1112
  %1130 = vmatprep.subr.bf16.mxu0 0
  %1131 = vmatpush2.bf16.msra.mxu0 0
  %1132 = vmatprep.subr.bf16.mxu0 0
  %1133 = vmatpush2.bf16.msra.mxu0 0
  %1134 = vmatprep.subr.bf16.mxu0 0
  %1135 = vmatpush2.bf16.msra.mxu0 0
  %1136 = vmatprep.subr.bf16.mxu0 0
  %1137 = vmatpush2.bf16.msra.mxu0 0
  %1138 = vmatprep.subr.bf16.mxu0 0
  %1139 = vmatpush2.bf16.msra.mxu0 0
  %1140 = vmatprep.subr.bf16.mxu0 0
  %1141 = vmatpush2.bf16.msra.mxu0 0
  %1142 = vmatprep.subr.bf16.mxu0 0
  %1143 = vmatpush2.bf16.msra.mxu0 0
  %1144 = vmatprep.subr.bf16.mxu0 0
  %1145 = vmatpush2.bf16.msra.mxu0 0
  %1146 = vmatprep.mubr.bf16.mxu0 0
  %1147 = vmatmul.mubr.bf16.gmra.mxu0 %v1109
  %v1148 = vpop.f32.mrf.mxu0
  %v1149 = vadd.f32 0.0, %v1148
  %v1150 = vpop.f32.mrf.mxu0
  %v1151 = vpop.f32.mrf.mxu0
  %v1152 = vpop.f32.mrf.mxu0
  %1153 = vdwg.mxu0
  %1154 = vrot.lane.b32.xlu0 %v300, 64
  %v1155 = vpop.permute.xlu0 %1154
  %v1157 = vsel %vm304, %v816, 0
  %v1160 = vsel %vm822, %v1155, 0
  %1162 = vmatprep.subr.bf16.mxu0 0
  %1163 = vmatpush1.bf16.msra.mxu0 0
  %1164 = vmatprep.subr.bf16.mxu0 0
  %1165 = vmatpush1.bf16.msra.mxu0 0
  %1166 = vmatprep.subr.bf16.mxu0 0
  %1167 = vmatpush1.bf16.msra.mxu0 0
  %1168 = vmatprep.subr.bf16.mxu0 0
  %1169 = vmatpush1.bf16.msra.mxu0 0
  %1170 = vmatprep.subr.bf16.mxu0 0
  %1171 = vmatpush1.bf16.msra.mxu0 0
  %1172 = vmatprep.subr.bf16.mxu0 0
  %1173 = vmatpush1.bf16.msra.mxu0 0
  %1174 = vmatprep.subr.bf16.mxu0 0
  %1175 = vmatpush1.bf16.msra.mxu0 0
  %1176 = vmatprep.subr.bf16.mxu0 0
  %1177 = vmatpush1.bf16.msra.mxu0 %v1160
  %1178 = vmatprep.subr.bf16.mxu0 0
  %1179 = vmatpush2.bf16.msra.mxu0 0
  %1180 = vmatprep.subr.bf16.mxu0 0
  %1181 = vmatpush2.bf16.msra.mxu0 0
  %1182 = vmatprep.subr.bf16.mxu0 0
  %1183 = vmatpush2.bf16.msra.mxu0 0
  %1184 = vmatprep.subr.bf16.mxu0 0
  %1185 = vmatpush2.bf16.msra.mxu0 0
  %1186 = vmatprep.subr.bf16.mxu0 0
  %1187 = vmatpush2.bf16.msra.mxu0 0
  %1188 = vmatprep.subr.bf16.mxu0 0
  %1189 = vmatpush2.bf16.msra.mxu0 0
  %1190 = vmatprep.subr.bf16.mxu0 0
  %1191 = vmatpush2.bf16.msra.mxu0 0
  %1192 = vmatprep.subr.bf16.mxu0 0
  %1193 = vmatpush2.bf16.msra.mxu0 0
  %1194 = vmatprep.mubr.bf16.mxu0 0
  %1195 = vmatmul.mubr.bf16.gmra.mxu0 %v1157
  %v1196 = vpop.f32.mrf.mxu0
  %v1197 = vadd.f32 0.0, %v1196
  %v1198 = vpop.f32.mrf.mxu0
  %v1199 = vpop.f32.mrf.mxu0
  %v1200 = vpop.f32.mrf.mxu0
  %1201 = vdwg.mxu0
  %1202 = vst.msk [vmem:[#allocation2] sm:$0xff] %vm304, %v861
  %1203 = vst.msk [vmem:[#allocation2 + $0x8] sm:$0xff] %vm304, %v909
  %1204 = vst.msk [vmem:[#allocation2 + $0x10] sm:$0xff] %vm304, %v957
  %1205 = vst.msk [vmem:[#allocation2 + $0x18] sm:$0xff] %vm304, %v1005
  %1206 = vst.msk [vmem:[#allocation2 + $0x20] sm:$0xff] %vm304, %v1053
  %1207 = vst.msk [vmem:[#allocation2 + $0x28] sm:$0xff] %vm304, %v1101
  %1208 = vst.msk [vmem:[#allocation2 + $0x30] sm:$0xff] %vm304, %v1149
  %1209 = vst.msk [vmem:[#allocation2 + $0x38] sm:$0xff] %vm304, %v1197
  %1210 = vrot.lane.b32.xlu0 %v293, 120
  %v1211 = vpop.permute.xlu0 %1210
  %1212 = vrot.lane.b32.xlu0 %v293, 88
  %v1213 = vpop.permute.xlu0 %1212
  %v1215 = vsel %vm304, %v1211, 0
  %v1218 = vsel %vm304, %v1213, 0
  %1220 = vmatprep.subr.bf16.mxu0 0
  %1221 = vmatpush1.bf16.xpose.msra.mxu0 0
  %1222 = vmatprep.subr.bf16.mxu0 0
  %1223 = vmatpush1.bf16.xpose.msra.mxu0 0
  %1224 = vmatprep.subr.bf16.mxu0 0
  %1225 = vmatpush1.bf16.xpose.msra.mxu0 0
  %1226 = vmatprep.subr.bf16.mxu0 0
  %1227 = vmatpush1.bf16.xpose.msra.mxu0 0
  %1228 = vmatprep.subr.bf16.mxu0 0
  %1229 = vmatpush1.bf16.xpose.msra.mxu0 0
  %1230 = vmatprep.subr.bf16.mxu0 0
  %1231 = vmatpush1.bf16.xpose.msra.mxu0 0
  %1232 = vmatprep.subr.bf16.mxu0 0
  %1233 = vmatpush1.bf16.xpose.msra.mxu0 0
  %1234 = vmatprep.subr.bf16.mxu0 0
  %1235 = vmatpush1.bf16.xpose.msra.mxu0 %v1218
  %1236 = vmatprep.subr.bf16.mxu0 0
  %1237 = vmatpush2.bf16.xpose.msra.mxu0 0
  %1238 = vmatprep.subr.bf16.mxu0 0
  %1239 = vmatpush2.bf16.xpose.msra.mxu0 0
  %1240 = vmatprep.subr.bf16.mxu0 0
  %1241 = vmatpush2.bf16.xpose.msra.mxu0 0
  %1242 = vmatprep.subr.bf16.mxu0 0
  %1243 = vmatpush2.bf16.xpose.msra.mxu0 0
  %1244 = vmatprep.subr.bf16.mxu0 0
  %1245 = vmatpush2.bf16.xpose.msra.mxu0 0
  %1246 = vmatprep.subr.bf16.mxu0 0
  %1247 = vmatpush2.bf16.xpose.msra.mxu0 0
  %1248 = vmatprep.subr.bf16.mxu0 0
  %1249 = vmatpush2.bf16.xpose.msra.mxu0 0
  %1250 = vmatprep.subr.bf16.mxu0 0
  %1251 = vmatpush2.bf16.xpose.msra.mxu0 0
  %1252 = vmatprep.mubr.bf16.mxu0 0
  %1253 = vmatmul.mubr.bf16.gmra.mxu0 %v1215
  %v1254 = vpop.f32.mrf.mxu0
  %v1255 = vadd.f32 0.0, %v1254
  %v1256 = vpop.f32.mrf.mxu0
  %v1257 = vpop.f32.mrf.mxu0
  %v1258 = vpop.f32.mrf.mxu0
  %1259 = vdwg.mxu0
  %1260 = vrot.lane.b32.xlu0 %v294, 120
  %v1261 = vpop.permute.xlu0 %1260
  %1262 = vrot.lane.b32.xlu0 %v294, 88
  %v1263 = vpop.permute.xlu0 %1262
  %v1265 = vsel %vm304, %v1261, 0
  %v1268 = vsel %vm304, %v1263, 0
  %1270 = vmatprep.subr.bf16.mxu0 0
  %1271 = vmatpush1.bf16.xpose.msra.mxu0 0
  %1272 = vmatprep.subr.bf16.mxu0 0
  %1273 = vmatpush1.bf16.xpose.msra.mxu0 0
  %1274 = vmatprep.subr.bf16.mxu0 0
  %1275 = vmatpush1.bf16.xpose.msra.mxu0 0
  %1276 = vmatprep.subr.bf16.mxu0 0
  %1277 = vmatpush1.bf16.xpose.msra.mxu0 0
  %1278 = vmatprep.subr.bf16.mxu0 0
  %1279 = vmatpush1.bf16.xpose.msra.mxu0 0
  %1280 = vmatprep.subr.bf16.mxu0 0
  %1281 = vmatpush1.bf16.xpose.msra.mxu0 0
  %1282 = vmatprep.subr.bf16.mxu0 0
  %1283 = vmatpush1.bf16.xpose.msra.mxu0 0
  %1284 = vmatprep.subr.bf16.mxu0 0
  %1285 = vmatpush1.bf16.xpose.msra.mxu0 %v1268
  %1286 = vmatprep.subr.bf16.mxu0 0
  %1287 = vmatpush2.bf16.xpose.msra.mxu0 0
  %1288 = vmatprep.subr.bf16.mxu0 0
  %1289 = vmatpush2.bf16.xpose.msra.mxu0 0
  %1290 = vmatprep.subr.bf16.mxu0 0
  %1291 = vmatpush2.bf16.xpose.msra.mxu0 0
  %1292 = vmatprep.subr.bf16.mxu0 0
  %1293 = vmatpush2.bf16.xpose.msra.mxu0 0
  %1294 = vmatprep.subr.bf16.mxu0 0
  %1295 = vmatpush2.bf16.xpose.msra.mxu0 0
  %1296 = vmatprep.subr.bf16.mxu0 0
  %1297 = vmatpush2.bf16.xpose.msra.mxu0 0
  %1298 = vmatprep.subr.bf16.mxu0 0
  %1299 = vmatpush2.bf16.xpose.msra.mxu0 0
  %1300 = vmatprep.subr.bf16.mxu0 0
  %1301 = vmatpush2.bf16.xpose.msra.mxu0 0
  %1302 = vmatprep.mubr.bf16.mxu0 0
  %1303 = vmatmul.mubr.bf16.gmra.mxu0 %v1265
  %v1304 = vpop.f32.mrf.mxu0
  %v1305 = vadd.f32 0.0, %v1304
  %v1306 = vpop.f32.mrf.mxu0
  %v1307 = vpop.f32.mrf.mxu0
  %v1308 = vpop.f32.mrf.mxu0
  %1309 = vdwg.mxu0
  %1310 = vrot.lane.b32.xlu0 %v295, 120
  %v1311 = vpop.permute.xlu0 %1310
  %1312 = vrot.lane.b32.xlu0 %v295, 88
  %v1313 = vpop.permute.xlu0 %1312
  %v1315 = vsel %vm304, %v1311, 0
  %v1318 = vsel %vm304, %v1313, 0
  %1320 = vmatprep.subr.bf16.mxu0 0
  %1321 = vmatpush1.bf16.xpose.msra.mxu0 0
  %1322 = vmatprep.subr.bf16.mxu0 0
  %1323 = vmatpush1.bf16.xpose.msra.mxu0 0
  %1324 = vmatprep.subr.bf16.mxu0 0
  %1325 = vmatpush1.bf16.xpose.msra.mxu0 0
  %1326 = vmatprep.subr.bf16.mxu0 0
  %1327 = vmatpush1.bf16.xpose.msra.mxu0 0
  %1328 = vmatprep.subr.bf16.mxu0 0
  %1329 = vmatpush1.bf16.xpose.msra.mxu0 0
  %1330 = vmatprep.subr.bf16.mxu0 0
  %1331 = vmatpush1.bf16.xpose.msra.mxu0 0
  %1332 = vmatprep.subr.bf16.mxu0 0
  %1333 = vmatpush1.bf16.xpose.msra.mxu0 0
  %1334 = vmatprep.subr.bf16.mxu0 0
  %1335 = vmatpush1.bf16.xpose.msra.mxu0 %v1318
  %1336 = vmatprep.subr.bf16.mxu0 0
  %1337 = vmatpush2.bf16.xpose.msra.mxu0 0
  %1338 = vmatprep.subr.bf16.mxu0 0
  %1339 = vmatpush2.bf16.xpose.msra.mxu0 0
  %1340 = vmatprep.subr.bf16.mxu0 0
  %1341 = vmatpush2.bf16.xpose.msra.mxu0 0
  %1342 = vmatprep.subr.bf16.mxu0 0
  %1343 = vmatpush2.bf16.xpose.msra.mxu0 0
  %1344 = vmatprep.subr.bf16.mxu0 0
  %1345 = vmatpush2.bf16.xpose.msra.mxu0 0
  %1346 = vmatprep.subr.bf16.mxu0 0
  %1347 = vmatpush2.bf16.xpose.msra.mxu0 0
  %1348 = vmatprep.subr.bf16.mxu0 0
  %1349 = vmatpush2.bf16.xpose.msra.mxu0 0
  %1350 = vmatprep.subr.bf16.mxu0 0
  %1351 = vmatpush2.bf16.xpose.msra.mxu0 0
  %1352 = vmatprep.mubr.bf16.mxu0 0
  %1353 = vmatmul.mubr.bf16.gmra.mxu0 %v1315
  %v1354 = vpop.f32.mrf.mxu0
  %v1355 = vadd.f32 0.0, %v1354
  %v1356 = vpop.f32.mrf.mxu0
  %v1357 = vpop.f32.mrf.mxu0
  %v1358 = vpop.f32.mrf.mxu0
  %1359 = vdwg.mxu0
  %1360 = vrot.lane.b32.xlu0 %v296, 120
  %v1361 = vpop.permute.xlu0 %1360
  %1362 = vrot.lane.b32.xlu0 %v296, 88
  %v1363 = vpop.permute.xlu0 %1362
  %v1365 = vsel %vm304, %v1361, 0
  %v1368 = vsel %vm304, %v1363, 0
  %1370 = vmatprep.subr.bf16.mxu0 0
  %1371 = vmatpush1.bf16.xpose.msra.mxu0 0
  %1372 = vmatprep.subr.bf16.mxu0 0
  %1373 = vmatpush1.bf16.xpose.msra.mxu0 0
  %1374 = vmatprep.subr.bf16.mxu0 0
  %1375 = vmatpush1.bf16.xpose.msra.mxu0 0
  %1376 = vmatprep.subr.bf16.mxu0 0
  %1377 = vmatpush1.bf16.xpose.msra.mxu0 0
  %1378 = vmatprep.subr.bf16.mxu0 0
  %1379 = vmatpush1.bf16.xpose.msra.mxu0 0
  %1380 = vmatprep.subr.bf16.mxu0 0
  %1381 = vmatpush1.bf16.xpose.msra.mxu0 0
  %1382 = vmatprep.subr.bf16.mxu0 0
  %1383 = vmatpush1.bf16.xpose.msra.mxu0 0
  %1384 = vmatprep.subr.bf16.mxu0 0
  %1385 = vmatpush1.bf16.xpose.msra.mxu0 %v1368
  %1386 = vmatprep.subr.bf16.mxu0 0
  %1387 = vmatpush2.bf16.xpose.msra.mxu0 0
  %1388 = vmatprep.subr.bf16.mxu0 0
  %1389 = vmatpush2.bf16.xpose.msra.mxu0 0
  %1390 = vmatprep.subr.bf16.mxu0 0
  %1391 = vmatpush2.bf16.xpose.msra.mxu0 0
  %1392 = vmatprep.subr.bf16.mxu0 0
  %1393 = vmatpush2.bf16.xpose.msra.mxu0 0
  %1394 = vmatprep.subr.bf16.mxu0 0
  %1395 = vmatpush2.bf16.xpose.msra.mxu0 0
  %1396 = vmatprep.subr.bf16.mxu0 0
  %1397 = vmatpush2.bf16.xpose.msra.mxu0 0
  %1398 = vmatprep.subr.bf16.mxu0 0
  %1399 = vmatpush2.bf16.xpose.msra.mxu0 0
  %1400 = vmatprep.subr.bf16.mxu0 0
  %1401 = vmatpush2.bf16.xpose.msra.mxu0 0
  %1402 = vmatprep.mubr.bf16.mxu0 0
  %1403 = vmatmul.mubr.bf16.gmra.mxu0 %v1365
  %v1404 = vpop.f32.mrf.mxu0
  %v1405 = vadd.f32 0.0, %v1404
  %v1406 = vpop.f32.mrf.mxu0
  %v1407 = vpop.f32.mrf.mxu0
  %v1408 = vpop.f32.mrf.mxu0
  %1409 = vdwg.mxu0
  %1410 = vrot.lane.b32.xlu0 %v297, 120
  %v1411 = vpop.permute.xlu0 %1410
  %1412 = vrot.lane.b32.xlu0 %v297, 88
  %v1413 = vpop.permute.xlu0 %1412
  %v1415 = vsel %vm304, %v1411, 0
  %v1418 = vsel %vm304, %v1413, 0
  %1420 = vmatprep.subr.bf16.mxu0 0
  %1421 = vmatpush1.bf16.xpose.msra.mxu0 0
  %1422 = vmatprep.subr.bf16.mxu0 0
  %1423 = vmatpush1.bf16.xpose.msra.mxu0 0
  %1424 = vmatprep.subr.bf16.mxu0 0
  %1425 = vmatpush1.bf16.xpose.msra.mxu0 0
  %1426 = vmatprep.subr.bf16.mxu0 0
  %1427 = vmatpush1.bf16.xpose.msra.mxu0 0
  %1428 = vmatprep.subr.bf16.mxu0 0
  %1429 = vmatpush1.bf16.xpose.msra.mxu0 0
  %1430 = vmatprep.subr.bf16.mxu0 0
  %1431 = vmatpush1.bf16.xpose.msra.mxu0 0
  %1432 = vmatprep.subr.bf16.mxu0 0
  %1433 = vmatpush1.bf16.xpose.msra.mxu0 0
  %1434 = vmatprep.subr.bf16.mxu0 0
  %1435 = vmatpush1.bf16.xpose.msra.mxu0 %v1418
  %1436 = vmatprep.subr.bf16.mxu0 0
  %1437 = vmatpush2.bf16.xpose.msra.mxu0 0
  %1438 = vmatprep.subr.bf16.mxu0 0
  %1439 = vmatpush2.bf16.xpose.msra.mxu0 0
  %1440 = vmatprep.subr.bf16.mxu0 0
  %1441 = vmatpush2.bf16.xpose.msra.mxu0 0
  %1442 = vmatprep.subr.bf16.mxu0 0
  %1443 = vmatpush2.bf16.xpose.msra.mxu0 0
  %1444 = vmatprep.subr.bf16.mxu0 0
  %1445 = vmatpush2.bf16.xpose.msra.mxu0 0
  %1446 = vmatprep.subr.bf16.mxu0 0
  %1447 = vmatpush2.bf16.xpose.msra.mxu0 0
  %1448 = vmatprep.subr.bf16.mxu0 0
  %1449 = vmatpush2.bf16.xpose.msra.mxu0 0
  %1450 = vmatprep.subr.bf16.mxu0 0
  %1451 = vmatpush2.bf16.xpose.msra.mxu0 0
  %1452 = vmatprep.mubr.bf16.mxu0 0
  %1453 = vmatmul.mubr.bf16.gmra.mxu0 %v1415
  %v1454 = vpop.f32.mrf.mxu0
  %v1455 = vadd.f32 0.0, %v1454
  %v1456 = vpop.f32.mrf.mxu0
  %v1457 = vpop.f32.mrf.mxu0
  %v1458 = vpop.f32.mrf.mxu0
  %1459 = vdwg.mxu0
  %1460 = vrot.lane.b32.xlu0 %v298, 120
  %v1461 = vpop.permute.xlu0 %1460
  %1462 = vrot.lane.b32.xlu0 %v298, 88
  %v1463 = vpop.permute.xlu0 %1462
  %v1465 = vsel %vm304, %v1461, 0
  %v1468 = vsel %vm304, %v1463, 0
  %1470 = vmatprep.subr.bf16.mxu0 0
  %1471 = vmatpush1.bf16.xpose.msra.mxu0 0
  %1472 = vmatprep.subr.bf16.mxu0 0
  %1473 = vmatpush1.bf16.xpose.msra.mxu0 0
  %1474 = vmatprep.subr.bf16.mxu0 0
  %1475 = vmatpush1.bf16.xpose.msra.mxu0 0
  %1476 = vmatprep.subr.bf16.mxu0 0
  %1477 = vmatpush1.bf16.xpose.msra.mxu0 0
  %1478 = vmatprep.subr.bf16.mxu0 0
  %1479 = vmatpush1.bf16.xpose.msra.mxu0 0
  %1480 = vmatprep.subr.bf16.mxu0 0
  %1481 = vmatpush1.bf16.xpose.msra.mxu0 0
  %1482 = vmatprep.subr.bf16.mxu0 0
  %1483 = vmatpush1.bf16.xpose.msra.mxu0 0
  %1484 = vmatprep.subr.bf16.mxu0 0
  %1485 = vmatpush1.bf16.xpose.msra.mxu0 %v1468
  %1486 = vmatprep.subr.bf16.mxu0 0
  %1487 = vmatpush2.bf16.xpose.msra.mxu0 0
  %1488 = vmatprep.subr.bf16.mxu0 0
  %1489 = vmatpush2.bf16.xpose.msra.mxu0 0
  %1490 = vmatprep.subr.bf16.mxu0 0
  %1491 = vmatpush2.bf16.xpose.msra.mxu0 0
  %1492 = vmatprep.subr.bf16.mxu0 0
  %1493 = vmatpush2.bf16.xpose.msra.mxu0 0
  %1494 = vmatprep.subr.bf16.mxu0 0
  %1495 = vmatpush2.bf16.xpose.msra.mxu0 0
  %1496 = vmatprep.subr.bf16.mxu0 0
  %1497 = vmatpush2.bf16.xpose.msra.mxu0 0
  %1498 = vmatprep.subr.bf16.mxu0 0
  %1499 = vmatpush2.bf16.xpose.msra.mxu0 0
  %1500 = vmatprep.subr.bf16.mxu0 0
  %1501 = vmatpush2.bf16.xpose.msra.mxu0 0
  %1502 = vmatprep.mubr.bf16.mxu0 0
  %1503 = vmatmul.mubr.bf16.gmra.mxu0 %v1465
  %v1504 = vpop.f32.mrf.mxu0
  %v1505 = vadd.f32 0.0, %v1504
  %v1506 = vpop.f32.mrf.mxu0
  %v1507 = vpop.f32.mrf.mxu0
  %v1508 = vpop.f32.mrf.mxu0
  %1509 = vdwg.mxu0
  %1510 = vrot.lane.b32.xlu0 %v299, 120
  %v1511 = vpop.permute.xlu0 %1510
  %1512 = vrot.lane.b32.xlu0 %v299, 88
  %v1513 = vpop.permute.xlu0 %1512
  %v1515 = vsel %vm304, %v1511, 0
  %v1518 = vsel %vm304, %v1513, 0
  %1520 = vmatprep.subr.bf16.mxu0 0
  %1521 = vmatpush1.bf16.xpose.msra.mxu0 0
  %1522 = vmatprep.subr.bf16.mxu0 0
  %1523 = vmatpush1.bf16.xpose.msra.mxu0 0
  %1524 = vmatprep.subr.bf16.mxu0 0
  %1525 = vmatpush1.bf16.xpose.msra.mxu0 0
  %1526 = vmatprep.subr.bf16.mxu0 0
  %1527 = vmatpush1.bf16.xpose.msra.mxu0 0
  %1528 = vmatprep.subr.bf16.mxu0 0
  %1529 = vmatpush1.bf16.xpose.msra.mxu0 0
  %1530 = vmatprep.subr.bf16.mxu0 0
  %1531 = vmatpush1.bf16.xpose.msra.mxu0 0
  %1532 = vmatprep.subr.bf16.mxu0 0
  %1533 = vmatpush1.bf16.xpose.msra.mxu0 0
  %1534 = vmatprep.subr.bf16.mxu0 0
  %1535 = vmatpush1.bf16.xpose.msra.mxu0 %v1518
  %1536 = vmatprep.subr.bf16.mxu0 0
  %1537 = vmatpush2.bf16.xpose.msra.mxu0 0
  %1538 = vmatprep.subr.bf16.mxu0 0
  %1539 = vmatpush2.bf16.xpose.msra.mxu0 0
  %1540 = vmatprep.subr.bf16.mxu0 0
  %1541 = vmatpush2.bf16.xpose.msra.mxu0 0
  %1542 = vmatprep.subr.bf16.mxu0 0
  %1543 = vmatpush2.bf16.xpose.msra.mxu0 0
  %1544 = vmatprep.subr.bf16.mxu0 0
  %1545 = vmatpush2.bf16.xpose.msra.mxu0 0
  %1546 = vmatprep.subr.bf16.mxu0 0
  %1547 = vmatpush2.bf16.xpose.msra.mxu0 0
  %1548 = vmatprep.subr.bf16.mxu0 0
  %1549 = vmatpush2.bf16.xpose.msra.mxu0 0
  %1550 = vmatprep.subr.bf16.mxu0 0
  %1551 = vmatpush2.bf16.xpose.msra.mxu0 0
  %1552 = vmatprep.mubr.bf16.mxu0 0
  %1553 = vmatmul.mubr.bf16.gmra.mxu0 %v1515
  %v1554 = vpop.f32.mrf.mxu0
  %v1555 = vadd.f32 0.0, %v1554
  %v1556 = vpop.f32.mrf.mxu0
  %v1557 = vpop.f32.mrf.mxu0
  %v1558 = vpop.f32.mrf.mxu0
  %1559 = vdwg.mxu0
  %1560 = vrot.lane.b32.xlu0 %v300, 120
  %v1561 = vpop.permute.xlu0 %1560
  %1562 = vrot.lane.b32.xlu0 %v300, 88
  %v1563 = vpop.permute.xlu0 %1562
  %v1565 = vsel %vm304, %v1561, 0
  %v1568 = vsel %vm304, %v1563, 0
  %1570 = vmatprep.subr.bf16.mxu0 0
  %1571 = vmatpush1.bf16.xpose.msra.mxu0 0
  %1572 = vmatprep.subr.bf16.mxu0 0
  %1573 = vmatpush1.bf16.xpose.msra.mxu0 0
  %1574 = vmatprep.subr.bf16.mxu0 0
  %1575 = vmatpush1.bf16.xpose.msra.mxu0 0
  %1576 = vmatprep.subr.bf16.mxu0 0
  %1577 = vmatpush1.bf16.xpose.msra.mxu0 0
  %1578 = vmatprep.subr.bf16.mxu0 0
  %1579 = vmatpush1.bf16.xpose.msra.mxu0 0
  %1580 = vmatprep.subr.bf16.mxu0 0
  %1581 = vmatpush1.bf16.xpose.msra.mxu0 0
  %1582 = vmatprep.subr.bf16.mxu0 0
  %1583 = vmatpush1.bf16.xpose.msra.mxu0 0
  %1584 = vmatprep.subr.bf16.mxu0 0
  %1585 = vmatpush1.bf16.xpose.msra.mxu0 %v1568
  %1586 = vmatprep.subr.bf16.mxu0 0
  %1587 = vmatpush2.bf16.xpose.msra.mxu0 0
  %1588 = vmatprep.subr.bf16.mxu0 0
  %1589 = vmatpush2.bf16.xpose.msra.mxu0 0
  %1590 = vmatprep.subr.bf16.mxu0 0
  %1591 = vmatpush2.bf16.xpose.msra.mxu0 0
  %1592 = vmatprep.subr.bf16.mxu0 0
  %1593 = vmatpush2.bf16.xpose.msra.mxu0 0
  %1594 = vmatprep.subr.bf16.mxu0 0
  %1595 = vmatpush2.bf16.xpose.msra.mxu0 0
  %1596 = vmatprep.subr.bf16.mxu0 0
  %1597 = vmatpush2.bf16.xpose.msra.mxu0 0
  %1598 = vmatprep.subr.bf16.mxu0 0
  %1599 = vmatpush2.bf16.xpose.msra.mxu0 0
  %1600 = vmatprep.subr.bf16.mxu0 0
  %1601 = vmatpush2.bf16.xpose.msra.mxu0 0
  %1602 = vmatprep.mubr.bf16.mxu0 0
  %1603 = vmatmul.mubr.bf16.gmra.mxu0 %v1565
  %v1604 = vpop.f32.mrf.mxu0
  %v1605 = vadd.f32 0.0, %v1604
  %v1606 = vpop.f32.mrf.mxu0
  %v1607 = vpop.f32.mrf.mxu0
  %v1608 = vpop.f32.mrf.mxu0
  %1609 = vdwg.mxu0
  %v1610 = vmul.f32 %v1255, 0.35355338
  %v1611 = vmul.f32 %v1305, 0.35355338
  %v1612 = vmul.f32 %v1355, 0.35355338
  %v1613 = vmul.f32 %v1405, 0.35355338
  %v1614 = vmul.f32 %v1455, 0.35355338
  %v1615 = vmul.f32 %v1505, 0.35355338
  %v1616 = vmul.f32 %v1555, 0.35355338
  %v1617 = vmul.f32 %v1605, 0.35355338
  %v1618 = vsel %vm704, %v1610, -1e+30
  %v1619 = vsel %vm704, %v1611, -1e+30
  %v1620 = vsel %vm704, %v1612, -1e+30
  %v1621 = vsel %vm704, %v1613, -1e+30
  %v1622 = vsel %vm704, %v1614, -1e+30
  %v1623 = vsel %vm704, %v1615, -1e+30
  %v1624 = vsel %vm704, %v1616, -1e+30
  %v1625 = vsel %vm704, %v1617, -1e+30
  %v1626 = vsel %vm304, %v1618, -inf
  %1627 = vmax.xlane.f32.xlu0 %v1626
  %v1628 = vpop.xlane.xlu0 %1627
  %v1629 = vsel %vm304, %v1619, -inf
  %1630 = vmax.xlane.f32.xlu0 %v1629
  %v1631 = vpop.xlane.xlu0 %1630
  %v1632 = vsel %vm304, %v1620, -inf
  %1633 = vmax.xlane.f32.xlu0 %v1632
  %v1634 = vpop.xlane.xlu0 %1633
  %v1635 = vsel %vm304, %v1621, -inf
  %1636 = vmax.xlane.f32.xlu0 %v1635
  %v1637 = vpop.xlane.xlu0 %1636
  %v1638 = vsel %vm304, %v1622, -inf
  %1639 = vmax.xlane.f32.xlu0 %v1638
  %v1640 = vpop.xlane.xlu0 %1639
  %v1641 = vsel %vm304, %v1623, -inf
  %1642 = vmax.xlane.f32.xlu0 %v1641
  %v1643 = vpop.xlane.xlu0 %1642
  %v1644 = vsel %vm304, %v1624, -inf
  %1645 = vmax.xlane.f32.xlu0 %v1644
  %v1646 = vpop.xlane.xlu0 %1645
  %v1647 = vsel %vm304, %v1625, -inf
  %1648 = vmax.xlane.f32.xlu0 %v1647
  %v1649 = vpop.xlane.xlu0 %1648
  %v1650 = vsub.f32 %v1618, %v1628
  %v1651 = vsub.f32 %v1619, %v1631
  %v1652 = vsub.f32 %v1620, %v1634
  %v1653 = vsub.f32 %v1621, %v1637
  %v1654 = vsub.f32 %v1622, %v1640
  %v1655 = vsub.f32 %v1623, %v1643
  %v1656 = vsub.f32 %v1624, %v1646
  %v1657 = vsub.f32 %v1625, %v1649
  %v1658 = vmul.f32 %v1650, 1.442695
  %v1659 = vpow.pop %v1658
  %v1660 = vmul.f32 %v1651, 1.442695
  %v1661 = vpow.pop %v1660
  %v1662 = vmul.f32 %v1652, 1.442695
  %v1663 = vpow.pop %v1662
  %v1664 = vmul.f32 %v1653, 1.442695
  %v1665 = vpow.pop %v1664
  %v1666 = vmul.f32 %v1654, 1.442695
  %v1667 = vpow.pop %v1666
  %v1668 = vmul.f32 %v1655, 1.442695
  %v1669 = vpow.pop %v1668
  %v1670 = vmul.f32 %v1656, 1.442695
  %v1671 = vpow.pop %v1670
  %v1672 = vmul.f32 %v1657, 1.442695
  %v1673 = vpow.pop %v1672
  %v1674 = vsel %vm304, %v1659, 0.0
  %1675 = vadd.xlane.f32.xlu0 %v1674
  %v1676 = vpop.xlane.xlu0 %1675
  %v1677 = vsel %vm304, %v1661, 0.0
  %1678 = vadd.xlane.f32.xlu0 %v1677
  %v1679 = vpop.xlane.xlu0 %1678
  %v1680 = vsel %vm304, %v1663, 0.0
  %1681 = vadd.xlane.f32.xlu0 %v1680
  %v1682 = vpop.xlane.xlu0 %1681
  %v1683 = vsel %vm304, %v1665, 0.0
  %1684 = vadd.xlane.f32.xlu0 %v1683
  %v1685 = vpop.xlane.xlu0 %1684
  %v1686 = vsel %vm304, %v1667, 0.0
  %1687 = vadd.xlane.f32.xlu0 %v1686
  %v1688 = vpop.xlane.xlu0 %1687
  %v1689 = vsel %vm304, %v1669, 0.0
  %1690 = vadd.xlane.f32.xlu0 %v1689
  %v1691 = vpop.xlane.xlu0 %1690
  %v1692 = vsel %vm304, %v1671, 0.0
  %1693 = vadd.xlane.f32.xlu0 %v1692
  %v1694 = vpop.xlane.xlu0 %1693
  %v1695 = vsel %vm304, %v1673, 0.0
  %1696 = vadd.xlane.f32.xlu0 %v1695
  %v1697 = vpop.xlane.xlu0 %1696
  %v1698 = vrcp.pop %v1676
  %v1699 = vmul.f32 1.0, %v1698
  %v1700 = vrcp.pop %v1679
  %v1701 = vmul.f32 1.0, %v1700
  %v1702 = vrcp.pop %v1682
  %v1703 = vmul.f32 1.0, %v1702
  %v1704 = vrcp.pop %v1685
  %v1705 = vmul.f32 1.0, %v1704
  %v1706 = vrcp.pop %v1688
  %v1707 = vmul.f32 1.0, %v1706
  %v1708 = vrcp.pop %v1691
  %v1709 = vmul.f32 1.0, %v1708
  %v1710 = vrcp.pop %v1694
  %v1711 = vmul.f32 1.0, %v1710
  %v1712 = vrcp.pop %v1697
  %v1713 = vmul.f32 1.0, %v1712
  %v1714 = vmul.f32 %v1659, %v1699
  %v1715 = vmul.f32 %v1661, %v1701
  %v1716 = vmul.f32 %v1663, %v1703
  %v1717 = vmul.f32 %v1665, %v1705
  %v1718 = vmul.f32 %v1667, %v1707
  %v1719 = vmul.f32 %v1669, %v1709
  %v1720 = vmul.f32 %v1671, %v1711
  %v1721 = vmul.f32 %v1673, %v1713
  %v1722 = vpack.c.bf16 %v1714, %v1714
  %v1723 = vpack.c.bf16 %v1715, %v1715
  %v1724 = vpack.c.bf16 %v1716, %v1716
  %v1725 = vpack.c.bf16 %v1717, %v1717
  %v1726 = vpack.c.bf16 %v1718, %v1718
  %v1727 = vpack.c.bf16 %v1719, %v1719
  %v1728 = vpack.c.bf16 %v1720, %v1720
  %v1729 = vpack.c.bf16 %v1721, %v1721
  %1730 = vrot.lane.b32.xlu0 %v293, 56
  %v1731 = vpop.permute.xlu0 %1730
  %v1733 = vsel %vm304, %v1722, 0
  %v1736 = vsel %vm822, %v1731, 0
  %1738 = vmatprep.subr.bf16.mxu0 0
  %1739 = vmatpush1.bf16.msra.mxu0 0
  %1740 = vmatprep.subr.bf16.mxu0 0
  %1741 = vmatpush1.bf16.msra.mxu0 0
  %1742 = vmatprep.subr.bf16.mxu0 0
  %1743 = vmatpush1.bf16.msra.mxu0 0
  %1744 = vmatprep.subr.bf16.mxu0 0
  %1745 = vmatpush1.bf16.msra.mxu0 0
  %1746 = vmatprep.subr.bf16.mxu0 0
  %1747 = vmatpush1.bf16.msra.mxu0 0
  %1748 = vmatprep.subr.bf16.mxu0 0
  %1749 = vmatpush1.bf16.msra.mxu0 0
  %1750 = vmatprep.subr.bf16.mxu0 0
  %1751 = vmatpush1.bf16.msra.mxu0 0
  %1752 = vmatprep.subr.bf16.mxu0 0
  %1753 = vmatpush1.bf16.msra.mxu0 %v1736
  %1754 = vmatprep.subr.bf16.mxu0 0
  %1755 = vmatpush2.bf16.msra.mxu0 0
  %1756 = vmatprep.subr.bf16.mxu0 0
  %1757 = vmatpush2.bf16.msra.mxu0 0
  %1758 = vmatprep.subr.bf16.mxu0 0
  %1759 = vmatpush2.bf16.msra.mxu0 0
  %1760 = vmatprep.subr.bf16.mxu0 0
  %1761 = vmatpush2.bf16.msra.mxu0 0
  %1762 = vmatprep.subr.bf16.mxu0 0
  %1763 = vmatpush2.bf16.msra.mxu0 0
  %1764 = vmatprep.subr.bf16.mxu0 0
  %1765 = vmatpush2.bf16.msra.mxu0 0
  %1766 = vmatprep.subr.bf16.mxu0 0
  %1767 = vmatpush2.bf16.msra.mxu0 0
  %1768 = vmatprep.subr.bf16.mxu0 0
  %1769 = vmatpush2.bf16.msra.mxu0 0
  %1770 = vmatprep.mubr.bf16.mxu0 0
  %1771 = vmatmul.mubr.bf16.gmra.mxu0 %v1733
  %v1772 = vpop.f32.mrf.mxu0
  %v1773 = vadd.f32 0.0, %v1772
  %v1774 = vpop.f32.mrf.mxu0
  %v1775 = vpop.f32.mrf.mxu0
  %v1776 = vpop.f32.mrf.mxu0
  %1777 = vdwg.mxu0
  %1778 = vrot.lane.b32.xlu0 %v294, 56
  %v1779 = vpop.permute.xlu0 %1778
  %v1781 = vsel %vm304, %v1723, 0
  %v1784 = vsel %vm822, %v1779, 0
  %1786 = vmatprep.subr.bf16.mxu0 0
  %1787 = vmatpush1.bf16.msra.mxu0 0
  %1788 = vmatprep.subr.bf16.mxu0 0
  %1789 = vmatpush1.bf16.msra.mxu0 0
  %1790 = vmatprep.subr.bf16.mxu0 0
  %1791 = vmatpush1.bf16.msra.mxu0 0
  %1792 = vmatprep.subr.bf16.mxu0 0
  %1793 = vmatpush1.bf16.msra.mxu0 0
  %1794 = vmatprep.subr.bf16.mxu0 0
  %1795 = vmatpush1.bf16.msra.mxu0 0
  %1796 = vmatprep.subr.bf16.mxu0 0
  %1797 = vmatpush1.bf16.msra.mxu0 0
  %1798 = vmatprep.subr.bf16.mxu0 0
  %1799 = vmatpush1.bf16.msra.mxu0 0
  %1800 = vmatprep.subr.bf16.mxu0 0
  %1801 = vmatpush1.bf16.msra.mxu0 %v1784
  %1802 = vmatprep.subr.bf16.mxu0 0
  %1803 = vmatpush2.bf16.msra.mxu0 0
  %1804 = vmatprep.subr.bf16.mxu0 0
  %1805 = vmatpush2.bf16.msra.mxu0 0
  %1806 = vmatprep.subr.bf16.mxu0 0
  %1807 = vmatpush2.bf16.msra.mxu0 0
  %1808 = vmatprep.subr.bf16.mxu0 0
  %1809 = vmatpush2.bf16.msra.mxu0 0
  %1810 = vmatprep.subr.bf16.mxu0 0
  %1811 = vmatpush2.bf16.msra.mxu0 0
  %1812 = vmatprep.subr.bf16.mxu0 0
  %1813 = vmatpush2.bf16.msra.mxu0 0
  %1814 = vmatprep.subr.bf16.mxu0 0
  %1815 = vmatpush2.bf16.msra.mxu0 0
  %1816 = vmatprep.subr.bf16.mxu0 0
  %1817 = vmatpush2.bf16.msra.mxu0 0
  %1818 = vmatprep.mubr.bf16.mxu0 0
  %1819 = vmatmul.mubr.bf16.gmra.mxu0 %v1781
  %v1820 = vpop.f32.mrf.mxu0
  %v1821 = vadd.f32 0.0, %v1820
  %v1822 = vpop.f32.mrf.mxu0
  %v1823 = vpop.f32.mrf.mxu0
  %v1824 = vpop.f32.mrf.mxu0
  %1825 = vdwg.mxu0
  %1826 = vrot.lane.b32.xlu0 %v295, 56
  %v1827 = vpop.permute.xlu0 %1826
  %v1829 = vsel %vm304, %v1724, 0
  %v1832 = vsel %vm822, %v1827, 0
  %1834 = vmatprep.subr.bf16.mxu0 0
  %1835 = vmatpush1.bf16.msra.mxu0 0
  %1836 = vmatprep.subr.bf16.mxu0 0
  %1837 = vmatpush1.bf16.msra.mxu0 0
  %1838 = vmatprep.subr.bf16.mxu0 0
  %1839 = vmatpush1.bf16.msra.mxu0 0
  %1840 = vmatprep.subr.bf16.mxu0 0
  %1841 = vmatpush1.bf16.msra.mxu0 0
  %1842 = vmatprep.subr.bf16.mxu0 0
  %1843 = vmatpush1.bf16.msra.mxu0 0
  %1844 = vmatprep.subr.bf16.mxu0 0
  %1845 = vmatpush1.bf16.msra.mxu0 0
  %1846 = vmatprep.subr.bf16.mxu0 0
  %1847 = vmatpush1.bf16.msra.mxu0 0
  %1848 = vmatprep.subr.bf16.mxu0 0
  %1849 = vmatpush1.bf16.msra.mxu0 %v1832
  %1850 = vmatprep.subr.bf16.mxu0 0
  %1851 = vmatpush2.bf16.msra.mxu0 0
  %1852 = vmatprep.subr.bf16.mxu0 0
  %1853 = vmatpush2.bf16.msra.mxu0 0
  %1854 = vmatprep.subr.bf16.mxu0 0
  %1855 = vmatpush2.bf16.msra.mxu0 0
  %1856 = vmatprep.subr.bf16.mxu0 0
  %1857 = vmatpush2.bf16.msra.mxu0 0
  %1858 = vmatprep.subr.bf16.mxu0 0
  %1859 = vmatpush2.bf16.msra.mxu0 0
  %1860 = vmatprep.subr.bf16.mxu0 0
  %1861 = vmatpush2.bf16.msra.mxu0 0
  %1862 = vmatprep.subr.bf16.mxu0 0
  %1863 = vmatpush2.bf16.msra.mxu0 0
  %1864 = vmatprep.subr.bf16.mxu0 0
  %1865 = vmatpush2.bf16.msra.mxu0 0
  %1866 = vmatprep.mubr.bf16.mxu0 0
  %1867 = vmatmul.mubr.bf16.gmra.mxu0 %v1829
  %v1868 = vpop.f32.mrf.mxu0
  %v1869 = vadd.f32 0.0, %v1868
  %v1870 = vpop.f32.mrf.mxu0
  %v1871 = vpop.f32.mrf.mxu0
  %v1872 = vpop.f32.mrf.mxu0
  %1873 = vdwg.mxu0
  %1874 = vrot.lane.b32.xlu0 %v296, 56
  %v1875 = vpop.permute.xlu0 %1874
  %v1877 = vsel %vm304, %v1725, 0
  %v1880 = vsel %vm822, %v1875, 0
  %1882 = vmatprep.subr.bf16.mxu0 0
  %1883 = vmatpush1.bf16.msra.mxu0 0
  %1884 = vmatprep.subr.bf16.mxu0 0
  %1885 = vmatpush1.bf16.msra.mxu0 0
  %1886 = vmatprep.subr.bf16.mxu0 0
  %1887 = vmatpush1.bf16.msra.mxu0 0
  %1888 = vmatprep.subr.bf16.mxu0 0
  %1889 = vmatpush1.bf16.msra.mxu0 0
  %1890 = vmatprep.subr.bf16.mxu0 0
  %1891 = vmatpush1.bf16.msra.mxu0 0
  %1892 = vmatprep.subr.bf16.mxu0 0
  %1893 = vmatpush1.bf16.msra.mxu0 0
  %1894 = vmatprep.subr.bf16.mxu0 0
  %1895 = vmatpush1.bf16.msra.mxu0 0
  %1896 = vmatprep.subr.bf16.mxu0 0
  %1897 = vmatpush1.bf16.msra.mxu0 %v1880
  %1898 = vmatprep.subr.bf16.mxu0 0
  %1899 = vmatpush2.bf16.msra.mxu0 0
  %1900 = vmatprep.subr.bf16.mxu0 0
  %1901 = vmatpush2.bf16.msra.mxu0 0
  %1902 = vmatprep.subr.bf16.mxu0 0
  %1903 = vmatpush2.bf16.msra.mxu0 0
  %1904 = vmatprep.subr.bf16.mxu0 0
  %1905 = vmatpush2.bf16.msra.mxu0 0
  %1906 = vmatprep.subr.bf16.mxu0 0
  %1907 = vmatpush2.bf16.msra.mxu0 0
  %1908 = vmatprep.subr.bf16.mxu0 0
  %1909 = vmatpush2.bf16.msra.mxu0 0
  %1910 = vmatprep.subr.bf16.mxu0 0
  %1911 = vmatpush2.bf16.msra.mxu0 0
  %1912 = vmatprep.subr.bf16.mxu0 0
  %1913 = vmatpush2.bf16.msra.mxu0 0
  %1914 = vmatprep.mubr.bf16.mxu0 0
  %1915 = vmatmul.mubr.bf16.gmra.mxu0 %v1877
  %v1916 = vpop.f32.mrf.mxu0
  %v1917 = vadd.f32 0.0, %v1916
  %v1918 = vpop.f32.mrf.mxu0
  %v1919 = vpop.f32.mrf.mxu0
  %v1920 = vpop.f32.mrf.mxu0
  %1921 = vdwg.mxu0
  %1922 = vrot.lane.b32.xlu0 %v297, 56
  %v1923 = vpop.permute.xlu0 %1922
  %v1925 = vsel %vm304, %v1726, 0
  %v1928 = vsel %vm822, %v1923, 0
  %1930 = vmatprep.subr.bf16.mxu0 0
  %1931 = vmatpush1.bf16.msra.mxu0 0
  %1932 = vmatprep.subr.bf16.mxu0 0
  %1933 = vmatpush1.bf16.msra.mxu0 0
  %1934 = vmatprep.subr.bf16.mxu0 0
  %1935 = vmatpush1.bf16.msra.mxu0 0
  %1936 = vmatprep.subr.bf16.mxu0 0
  %1937 = vmatpush1.bf16.msra.mxu0 0
  %1938 = vmatprep.subr.bf16.mxu0 0
  %1939 = vmatpush1.bf16.msra.mxu0 0
  %1940 = vmatprep.subr.bf16.mxu0 0
  %1941 = vmatpush1.bf16.msra.mxu0 0
  %1942 = vmatprep.subr.bf16.mxu0 0
  %1943 = vmatpush1.bf16.msra.mxu0 0
  %1944 = vmatprep.subr.bf16.mxu0 0
  %1945 = vmatpush1.bf16.msra.mxu0 %v1928
  %1946 = vmatprep.subr.bf16.mxu0 0
  %1947 = vmatpush2.bf16.msra.mxu0 0
  %1948 = vmatprep.subr.bf16.mxu0 0
  %1949 = vmatpush2.bf16.msra.mxu0 0
  %1950 = vmatprep.subr.bf16.mxu0 0
  %1951 = vmatpush2.bf16.msra.mxu0 0
  %1952 = vmatprep.subr.bf16.mxu0 0
  %1953 = vmatpush2.bf16.msra.mxu0 0
  %1954 = vmatprep.subr.bf16.mxu0 0
  %1955 = vmatpush2.bf16.msra.mxu0 0
  %1956 = vmatprep.subr.bf16.mxu0 0
  %1957 = vmatpush2.bf16.msra.mxu0 0
  %1958 = vmatprep.subr.bf16.mxu0 0
  %1959 = vmatpush2.bf16.msra.mxu0 0
  %1960 = vmatprep.subr.bf16.mxu0 0
  %1961 = vmatpush2.bf16.msra.mxu0 0
  %1962 = vmatprep.mubr.bf16.mxu0 0
  %1963 = vmatmul.mubr.bf16.gmra.mxu0 %v1925
  %v1964 = vpop.f32.mrf.mxu0
  %v1965 = vadd.f32 0.0, %v1964
  %v1966 = vpop.f32.mrf.mxu0
  %v1967 = vpop.f32.mrf.mxu0
  %v1968 = vpop.f32.mrf.mxu0
  %1969 = vdwg.mxu0
  %1970 = vrot.lane.b32.xlu0 %v298, 56
  %v1971 = vpop.permute.xlu0 %1970
  %v1973 = vsel %vm304, %v1727, 0
  %v1976 = vsel %vm822, %v1971, 0
  %1978 = vmatprep.subr.bf16.mxu0 0
  %1979 = vmatpush1.bf16.msra.mxu0 0
  %1980 = vmatprep.subr.bf16.mxu0 0
  %1981 = vmatpush1.bf16.msra.mxu0 0
  %1982 = vmatprep.subr.bf16.mxu0 0
  %1983 = vmatpush1.bf16.msra.mxu0 0
  %1984 = vmatprep.subr.bf16.mxu0 0
  %1985 = vmatpush1.bf16.msra.mxu0 0
  %1986 = vmatprep.subr.bf16.mxu0 0
  %1987 = vmatpush1.bf16.msra.mxu0 0
  %1988 = vmatprep.subr.bf16.mxu0 0
  %1989 = vmatpush1.bf16.msra.mxu0 0
  %1990 = vmatprep.subr.bf16.mxu0 0
  %1991 = vmatpush1.bf16.msra.mxu0 0
  %1992 = vmatprep.subr.bf16.mxu0 0
  %1993 = vmatpush1.bf16.msra.mxu0 %v1976
  %1994 = vmatprep.subr.bf16.mxu0 0
  %1995 = vmatpush2.bf16.msra.mxu0 0
  %1996 = vmatprep.subr.bf16.mxu0 0
  %1997 = vmatpush2.bf16.msra.mxu0 0
  %1998 = vmatprep.subr.bf16.mxu0 0
  %1999 = vmatpush2.bf16.msra.mxu0 0
  %2000 = vmatprep.subr.bf16.mxu0 0
  %2001 = vmatpush2.bf16.msra.mxu0 0
  %2002 = vmatprep.subr.bf16.mxu0 0
  %2003 = vmatpush2.bf16.msra.mxu0 0
  %2004 = vmatprep.subr.bf16.mxu0 0
  %2005 = vmatpush2.bf16.msra.mxu0 0
  %2006 = vmatprep.subr.bf16.mxu0 0
  %2007 = vmatpush2.bf16.msra.mxu0 0
  %2008 = vmatprep.subr.bf16.mxu0 0
  %2009 = vmatpush2.bf16.msra.mxu0 0
  %2010 = vmatprep.mubr.bf16.mxu0 0
  %2011 = vmatmul.mubr.bf16.gmra.mxu0 %v1973
  %v2012 = vpop.f32.mrf.mxu0
  %v2013 = vadd.f32 0.0, %v2012
  %v2014 = vpop.f32.mrf.mxu0
  %v2015 = vpop.f32.mrf.mxu0
  %v2016 = vpop.f32.mrf.mxu0
  %2017 = vdwg.mxu0
  %2018 = vrot.lane.b32.xlu0 %v299, 56
  %v2019 = vpop.permute.xlu0 %2018
  %v2021 = vsel %vm304, %v1728, 0
  %v2024 = vsel %vm822, %v2019, 0
  %2026 = vmatprep.subr.bf16.mxu0 0
  %2027 = vmatpush1.bf16.msra.mxu0 0
  %2028 = vmatprep.subr.bf16.mxu0 0
  %2029 = vmatpush1.bf16.msra.mxu0 0
  %2030 = vmatprep.subr.bf16.mxu0 0
  %2031 = vmatpush1.bf16.msra.mxu0 0
  %2032 = vmatprep.subr.bf16.mxu0 0
  %2033 = vmatpush1.bf16.msra.mxu0 0
  %2034 = vmatprep.subr.bf16.mxu0 0
  %2035 = vmatpush1.bf16.msra.mxu0 0
  %2036 = vmatprep.subr.bf16.mxu0 0
  %2037 = vmatpush1.bf16.msra.mxu0 0
  %2038 = vmatprep.subr.bf16.mxu0 0
  %2039 = vmatpush1.bf16.msra.mxu0 0
  %2040 = vmatprep.subr.bf16.mxu0 0
  %2041 = vmatpush1.bf16.msra.mxu0 %v2024
  %2042 = vmatprep.subr.bf16.mxu0 0
  %2043 = vmatpush2.bf16.msra.mxu0 0
  %2044 = vmatprep.subr.bf16.mxu0 0
  %2045 = vmatpush2.bf16.msra.mxu0 0
  %2046 = vmatprep.subr.bf16.mxu0 0
  %2047 = vmatpush2.bf16.msra.mxu0 0
  %2048 = vmatprep.subr.bf16.mxu0 0
  %2049 = vmatpush2.bf16.msra.mxu0 0
  %2050 = vmatprep.subr.bf16.mxu0 0
  %2051 = vmatpush2.bf16.msra.mxu0 0
  %2052 = vmatprep.subr.bf16.mxu0 0
  %2053 = vmatpush2.bf16.msra.mxu0 0
  %2054 = vmatprep.subr.bf16.mxu0 0
  %2055 = vmatpush2.bf16.msra.mxu0 0
  %2056 = vmatprep.subr.bf16.mxu0 0
  %2057 = vmatpush2.bf16.msra.mxu0 0
  %2058 = vmatprep.mubr.bf16.mxu0 0
  %2059 = vmatmul.mubr.bf16.gmra.mxu0 %v2021
  %v2060 = vpop.f32.mrf.mxu0
  %v2061 = vadd.f32 0.0, %v2060
  %v2062 = vpop.f32.mrf.mxu0
  %v2063 = vpop.f32.mrf.mxu0
  %v2064 = vpop.f32.mrf.mxu0
  %2065 = vdwg.mxu0
  %2066 = vrot.lane.b32.xlu0 %v300, 56
  %v2067 = vpop.permute.xlu0 %2066
  %v2069 = vsel %vm304, %v1729, 0
  %v2072 = vsel %vm822, %v2067, 0
  %2074 = vmatprep.subr.bf16.mxu0 0
  %2075 = vmatpush1.bf16.msra.mxu0 0
  %2076 = vmatprep.subr.bf16.mxu0 0
  %2077 = vmatpush1.bf16.msra.mxu0 0
  %2078 = vmatprep.subr.bf16.mxu0 0
  %2079 = vmatpush1.bf16.msra.mxu0 0
  %2080 = vmatprep.subr.bf16.mxu0 0
  %2081 = vmatpush1.bf16.msra.mxu0 0
  %2082 = vmatprep.subr.bf16.mxu0 0
  %2083 = vmatpush1.bf16.msra.mxu0 0
  %2084 = vmatprep.subr.bf16.mxu0 0
  %2085 = vmatpush1.bf16.msra.mxu0 0
  %2086 = vmatprep.subr.bf16.mxu0 0
  %2087 = vmatpush1.bf16.msra.mxu0 0
  %2088 = vmatprep.subr.bf16.mxu0 0
  %2089 = vmatpush1.bf16.msra.mxu0 %v2072
  %2090 = vmatprep.subr.bf16.mxu0 0
  %2091 = vmatpush2.bf16.msra.mxu0 0
  %2092 = vmatprep.subr.bf16.mxu0 0
  %2093 = vmatpush2.bf16.msra.mxu0 0
  %2094 = vmatprep.subr.bf16.mxu0 0
  %2095 = vmatpush2.bf16.msra.mxu0 0
  %2096 = vmatprep.subr.bf16.mxu0 0
  %2097 = vmatpush2.bf16.msra.mxu0 0
  %2098 = vmatprep.subr.bf16.mxu0 0
  %2099 = vmatpush2.bf16.msra.mxu0 0
  %2100 = vmatprep.subr.bf16.mxu0 0
  %2101 = vmatpush2.bf16.msra.mxu0 0
  %2102 = vmatprep.subr.bf16.mxu0 0
  %2103 = vmatpush2.bf16.msra.mxu0 0
  %2104 = vmatprep.subr.bf16.mxu0 0
  %2105 = vmatpush2.bf16.msra.mxu0 0
  %2106 = vmatprep.mubr.bf16.mxu0 0
  %2107 = vmatmul.mubr.bf16.gmra.mxu0 %v2069
  %v2108 = vpop.f32.mrf.mxu0
  %v2109 = vadd.f32 0.0, %v2108
  %v2110 = vpop.f32.mrf.mxu0
  %v2111 = vpop.f32.mrf.mxu0
  %v2112 = vpop.f32.mrf.mxu0
  %2113 = vdwg.mxu0
  %2122 = vrot.lane.b32.xlu0 %v1773, 8
  %v2123 = vpop.permute.xlu0 %2122
  %2124 = vrot.lane.b32.xlu0 %v1821, 8
  %v2125 = vpop.permute.xlu0 %2124
  %2126 = vrot.lane.b32.xlu0 %v1869, 8
  %v2127 = vpop.permute.xlu0 %2126
  %2128 = vrot.lane.b32.xlu0 %v1917, 8
  %v2129 = vpop.permute.xlu0 %2128
  %2130 = vrot.lane.b32.xlu0 %v1965, 8
  %v2131 = vpop.permute.xlu0 %2130
  %2132 = vrot.lane.b32.xlu0 %v2013, 8
  %v2133 = vpop.permute.xlu0 %2132
  %2134 = vrot.lane.b32.xlu0 %v2061, 8
  %v2135 = vpop.permute.xlu0 %2134
  %2136 = vrot.lane.b32.xlu0 %v2109, 8
  %v2137 = vpop.permute.xlu0 %2136
  %vm2146 = vcmask 130112
  %2147 = vst.msk [vmem:[#allocation2] sm:$0xff] %vm2146, %v2123
  %2148 = vst.msk [vmem:[#allocation2 + $0x8] sm:$0xff] %vm2146, %v2125
  %2149 = vst.msk [vmem:[#allocation2 + $0x10] sm:$0xff] %vm2146, %v2127
  %2150 = vst.msk [vmem:[#allocation2 + $0x18] sm:$0xff] %vm2146, %v2129
  %2151 = vst.msk [vmem:[#allocation2 + $0x20] sm:$0xff] %vm2146, %v2131
  %2152 = vst.msk [vmem:[#allocation2 + $0x28] sm:$0xff] %vm2146, %v2133
  %2153 = vst.msk [vmem:[#allocation2 + $0x30] sm:$0xff] %vm2146, %v2135
  %2154 = vst.msk [vmem:[#allocation2 + $0x38] sm:$0xff] %vm2146, %v2137
  %2155 = vrot.lane.b32.xlu0 %v293, 112
  %v2156 = vpop.permute.xlu0 %2155
  %2157 = vrot.lane.b32.xlu0 %v293, 80
  %v2158 = vpop.permute.xlu0 %2157
  %v2160 = vsel %vm304, %v2156, 0
  %v2163 = vsel %vm304, %v2158, 0
  %2165 = vmatprep.subr.bf16.mxu0 0
  %2166 = vmatpush1.bf16.xpose.msra.mxu0 0
  %2167 = vmatprep.subr.bf16.mxu0 0
  %2168 = vmatpush1.bf16.xpose.msra.mxu0 0
  %2169 = vmatprep.subr.bf16.mxu0 0
  %2170 = vmatpush1.bf16.xpose.msra.mxu0 0
  %2171 = vmatprep.subr.bf16.mxu0 0
  %2172 = vmatpush1.bf16.xpose.msra.mxu0 0
  %2173 = vmatprep.subr.bf16.mxu0 0
  %2174 = vmatpush1.bf16.xpose.msra.mxu0 0
  %2175 = vmatprep.subr.bf16.mxu0 0
  %2176 = vmatpush1.bf16.xpose.msra.mxu0 0
  %2177 = vmatprep.subr.bf16.mxu0 0
  %2178 = vmatpush1.bf16.xpose.msra.mxu0 0
  %2179 = vmatprep.subr.bf16.mxu0 0
  %2180 = vmatpush1.bf16.xpose.msra.mxu0 %v2163
  %2181 = vmatprep.subr.bf16.mxu0 0
  %2182 = vmatpush2.bf16.xpose.msra.mxu0 0
  %2183 = vmatprep.subr.bf16.mxu0 0
  %2184 = vmatpush2.bf16.xpose.msra.mxu0 0
  %2185 = vmatprep.subr.bf16.mxu0 0
  %2186 = vmatpush2.bf16.xpose.msra.mxu0 0
  %2187 = vmatprep.subr.bf16.mxu0 0
  %2188 = vmatpush2.bf16.xpose.msra.mxu0 0
  %2189 = vmatprep.subr.bf16.mxu0 0
  %2190 = vmatpush2.bf16.xpose.msra.mxu0 0
  %2191 = vmatprep.subr.bf16.mxu0 0
  %2192 = vmatpush2.bf16.xpose.msra.mxu0 0
  %2193 = vmatprep.subr.bf16.mxu0 0
  %2194 = vmatpush2.bf16.xpose.msra.mxu0 0
  %2195 = vmatprep.subr.bf16.mxu0 0
  %2196 = vmatpush2.bf16.xpose.msra.mxu0 0
  %2197 = vmatprep.mubr.bf16.mxu0 0
  %2198 = vmatmul.mubr.bf16.gmra.mxu0 %v2160
  %v2199 = vpop.f32.mrf.mxu0
  %v2200 = vadd.f32 0.0, %v2199
  %v2201 = vpop.f32.mrf.mxu0
  %v2202 = vpop.f32.mrf.mxu0
  %v2203 = vpop.f32.mrf.mxu0
  %2204 = vdwg.mxu0
  %2205 = vrot.lane.b32.xlu0 %v294, 112
  %v2206 = vpop.permute.xlu0 %2205
  %2207 = vrot.lane.b32.xlu0 %v294, 80
  %v2208 = vpop.permute.xlu0 %2207
  %v2210 = vsel %vm304, %v2206, 0
  %v2213 = vsel %vm304, %v2208, 0
  %2215 = vmatprep.subr.bf16.mxu0 0
  %2216 = vmatpush1.bf16.xpose.msra.mxu0 0
  %2217 = vmatprep.subr.bf16.mxu0 0
  %2218 = vmatpush1.bf16.xpose.msra.mxu0 0
  %2219 = vmatprep.subr.bf16.mxu0 0
  %2220 = vmatpush1.bf16.xpose.msra.mxu0 0
  %2221 = vmatprep.subr.bf16.mxu0 0
  %2222 = vmatpush1.bf16.xpose.msra.mxu0 0
  %2223 = vmatprep.subr.bf16.mxu0 0
  %2224 = vmatpush1.bf16.xpose.msra.mxu0 0
  %2225 = vmatprep.subr.bf16.mxu0 0
  %2226 = vmatpush1.bf16.xpose.msra.mxu0 0
  %2227 = vmatprep.subr.bf16.mxu0 0
  %2228 = vmatpush1.bf16.xpose.msra.mxu0 0
  %2229 = vmatprep.subr.bf16.mxu0 0
  %2230 = vmatpush1.bf16.xpose.msra.mxu0 %v2213
  %2231 = vmatprep.subr.bf16.mxu0 0
  %2232 = vmatpush2.bf16.xpose.msra.mxu0 0
  %2233 = vmatprep.subr.bf16.mxu0 0
  %2234 = vmatpush2.bf16.xpose.msra.mxu0 0
  %2235 = vmatprep.subr.bf16.mxu0 0
  %2236 = vmatpush2.bf16.xpose.msra.mxu0 0
  %2237 = vmatprep.subr.bf16.mxu0 0
  %2238 = vmatpush2.bf16.xpose.msra.mxu0 0
  %2239 = vmatprep.subr.bf16.mxu0 0
  %2240 = vmatpush2.bf16.xpose.msra.mxu0 0
  %2241 = vmatprep.subr.bf16.mxu0 0
  %2242 = vmatpush2.bf16.xpose.msra.mxu0 0
  %2243 = vmatprep.subr.bf16.mxu0 0
  %2244 = vmatpush2.bf16.xpose.msra.mxu0 0
  %2245 = vmatprep.subr.bf16.mxu0 0
  %2246 = vmatpush2.bf16.xpose.msra.mxu0 0
  %2247 = vmatprep.mubr.bf16.mxu0 0
  %2248 = vmatmul.mubr.bf16.gmra.mxu0 %v2210
  %v2249 = vpop.f32.mrf.mxu0
  %v2250 = vadd.f32 0.0, %v2249
  %v2251 = vpop.f32.mrf.mxu0
  %v2252 = vpop.f32.mrf.mxu0
  %v2253 = vpop.f32.mrf.mxu0
  %2254 = vdwg.mxu0
  %2255 = vrot.lane.b32.xlu0 %v295, 112
  %v2256 = vpop.permute.xlu0 %2255
  %2257 = vrot.lane.b32.xlu0 %v295, 80
  %v2258 = vpop.permute.xlu0 %2257
  %v2260 = vsel %vm304, %v2256, 0
  %v2263 = vsel %vm304, %v2258, 0
  %2265 = vmatprep.subr.bf16.mxu0 0
  %2266 = vmatpush1.bf16.xpose.msra.mxu0 0
  %2267 = vmatprep.subr.bf16.mxu0 0
  %2268 = vmatpush1.bf16.xpose.msra.mxu0 0
  %2269 = vmatprep.subr.bf16.mxu0 0
  %2270 = vmatpush1.bf16.xpose.msra.mxu0 0
  %2271 = vmatprep.subr.bf16.mxu0 0
  %2272 = vmatpush1.bf16.xpose.msra.mxu0 0
  %2273 = vmatprep.subr.bf16.mxu0 0
  %2274 = vmatpush1.bf16.xpose.msra.mxu0 0
  %2275 = vmatprep.subr.bf16.mxu0 0
  %2276 = vmatpush1.bf16.xpose.msra.mxu0 0
  %2277 = vmatprep.subr.bf16.mxu0 0
  %2278 = vmatpush1.bf16.xpose.msra.mxu0 0
  %2279 = vmatprep.subr.bf16.mxu0 0
  %2280 = vmatpush1.bf16.xpose.msra.mxu0 %v2263
  %2281 = vmatprep.subr.bf16.mxu0 0
  %2282 = vmatpush2.bf16.xpose.msra.mxu0 0
  %2283 = vmatprep.subr.bf16.mxu0 0
  %2284 = vmatpush2.bf16.xpose.msra.mxu0 0
  %2285 = vmatprep.subr.bf16.mxu0 0
  %2286 = vmatpush2.bf16.xpose.msra.mxu0 0
  %2287 = vmatprep.subr.bf16.mxu0 0
  %2288 = vmatpush2.bf16.xpose.msra.mxu0 0
  %2289 = vmatprep.subr.bf16.mxu0 0
  %2290 = vmatpush2.bf16.xpose.msra.mxu0 0
  %2291 = vmatprep.subr.bf16.mxu0 0
  %2292 = vmatpush2.bf16.xpose.msra.mxu0 0
  %2293 = vmatprep.subr.bf16.mxu0 0
  %2294 = vmatpush2.bf16.xpose.msra.mxu0 0
  %2295 = vmatprep.subr.bf16.mxu0 0
  %2296 = vmatpush2.bf16.xpose.msra.mxu0 0
  %2297 = vmatprep.mubr.bf16.mxu0 0
  %2298 = vmatmul.mubr.bf16.gmra.mxu0 %v2260
  %v2299 = vpop.f32.mrf.mxu0
  %v2300 = vadd.f32 0.0, %v2299
  %v2301 = vpop.f32.mrf.mxu0
  %v2302 = vpop.f32.mrf.mxu0
  %v2303 = vpop.f32.mrf.mxu0
  %2304 = vdwg.mxu0
  %2305 = vrot.lane.b32.xlu0 %v296, 112
  %v2306 = vpop.permute.xlu0 %2305
  %2307 = vrot.lane.b32.xlu0 %v296, 80
  %v2308 = vpop.permute.xlu0 %2307
  %v2310 = vsel %vm304, %v2306, 0
  %v2313 = vsel %vm304, %v2308, 0
  %2315 = vmatprep.subr.bf16.mxu0 0
  %2316 = vmatpush1.bf16.xpose.msra.mxu0 0
  %2317 = vmatprep.subr.bf16.mxu0 0
  %2318 = vmatpush1.bf16.xpose.msra.mxu0 0
  %2319 = vmatprep.subr.bf16.mxu0 0
  %2320 = vmatpush1.bf16.xpose.msra.mxu0 0
  %2321 = vmatprep.subr.bf16.mxu0 0
  %2322 = vmatpush1.bf16.xpose.msra.mxu0 0
  %2323 = vmatprep.subr.bf16.mxu0 0
  %2324 = vmatpush1.bf16.xpose.msra.mxu0 0
  %2325 = vmatprep.subr.bf16.mxu0 0
  %2326 = vmatpush1.bf16.xpose.msra.mxu0 0
  %2327 = vmatprep.subr.bf16.mxu0 0
  %2328 = vmatpush1.bf16.xpose.msra.mxu0 0
  %2329 = vmatprep.subr.bf16.mxu0 0
  %2330 = vmatpush1.bf16.xpose.msra.mxu0 %v2313
  %2331 = vmatprep.subr.bf16.mxu0 0
  %2332 = vmatpush2.bf16.xpose.msra.mxu0 0
  %2333 = vmatprep.subr.bf16.mxu0 0
  %2334 = vmatpush2.bf16.xpose.msra.mxu0 0
  %2335 = vmatprep.subr.bf16.mxu0 0
  %2336 = vmatpush2.bf16.xpose.msra.mxu0 0
  %2337 = vmatprep.subr.bf16.mxu0 0
  %2338 = vmatpush2.bf16.xpose.msra.mxu0 0
  %2339 = vmatprep.subr.bf16.mxu0 0
  %2340 = vmatpush2.bf16.xpose.msra.mxu0 0
  %2341 = vmatprep.subr.bf16.mxu0 0
  %2342 = vmatpush2.bf16.xpose.msra.mxu0 0
  %2343 = vmatprep.subr.bf16.mxu0 0
  %2344 = vmatpush2.bf16.xpose.msra.mxu0 0
  %2345 = vmatprep.subr.bf16.mxu0 0
  %2346 = vmatpush2.bf16.xpose.msra.mxu0 0
  %2347 = vmatprep.mubr.bf16.mxu0 0
  %2348 = vmatmul.mubr.bf16.gmra.mxu0 %v2310
  %v2349 = vpop.f32.mrf.mxu0
  %v2350 = vadd.f32 0.0, %v2349
  %v2351 = vpop.f32.mrf.mxu0
  %v2352 = vpop.f32.mrf.mxu0
  %v2353 = vpop.f32.mrf.mxu0
  %2354 = vdwg.mxu0
  %2355 = vrot.lane.b32.xlu0 %v297, 112
  %v2356 = vpop.permute.xlu0 %2355
  %2357 = vrot.lane.b32.xlu0 %v297, 80
  %v2358 = vpop.permute.xlu0 %2357
  %v2360 = vsel %vm304, %v2356, 0
  %v2363 = vsel %vm304, %v2358, 0
  %2365 = vmatprep.subr.bf16.mxu0 0
  %2366 = vmatpush1.bf16.xpose.msra.mxu0 0
  %2367 = vmatprep.subr.bf16.mxu0 0
  %2368 = vmatpush1.bf16.xpose.msra.mxu0 0
  %2369 = vmatprep.subr.bf16.mxu0 0
  %2370 = vmatpush1.bf16.xpose.msra.mxu0 0
  %2371 = vmatprep.subr.bf16.mxu0 0
  %2372 = vmatpush1.bf16.xpose.msra.mxu0 0
  %2373 = vmatprep.subr.bf16.mxu0 0
  %2374 = vmatpush1.bf16.xpose.msra.mxu0 0
  %2375 = vmatprep.subr.bf16.mxu0 0
  %2376 = vmatpush1.bf16.xpose.msra.mxu0 0
  %2377 = vmatprep.subr.bf16.mxu0 0
  %2378 = vmatpush1.bf16.xpose.msra.mxu0 0
  %2379 = vmatprep.subr.bf16.mxu0 0
  %2380 = vmatpush1.bf16.xpose.msra.mxu0 %v2363
  %2381 = vmatprep.subr.bf16.mxu0 0
  %2382 = vmatpush2.bf16.xpose.msra.mxu0 0
  %2383 = vmatprep.subr.bf16.mxu0 0
  %2384 = vmatpush2.bf16.xpose.msra.mxu0 0
  %2385 = vmatprep.subr.bf16.mxu0 0
  %2386 = vmatpush2.bf16.xpose.msra.mxu0 0
  %2387 = vmatprep.subr.bf16.mxu0 0
  %2388 = vmatpush2.bf16.xpose.msra.mxu0 0
  %2389 = vmatprep.subr.bf16.mxu0 0
  %2390 = vmatpush2.bf16.xpose.msra.mxu0 0
  %2391 = vmatprep.subr.bf16.mxu0 0
  %2392 = vmatpush2.bf16.xpose.msra.mxu0 0
  %2393 = vmatprep.subr.bf16.mxu0 0
  %2394 = vmatpush2.bf16.xpose.msra.mxu0 0
  %2395 = vmatprep.subr.bf16.mxu0 0
  %2396 = vmatpush2.bf16.xpose.msra.mxu0 0
  %2397 = vmatprep.mubr.bf16.mxu0 0
  %2398 = vmatmul.mubr.bf16.gmra.mxu0 %v2360
  %v2399 = vpop.f32.mrf.mxu0
  %v2400 = vadd.f32 0.0, %v2399
  %v2401 = vpop.f32.mrf.mxu0
  %v2402 = vpop.f32.mrf.mxu0
  %v2403 = vpop.f32.mrf.mxu0
  %2404 = vdwg.mxu0
  %2405 = vrot.lane.b32.xlu0 %v298, 112
  %v2406 = vpop.permute.xlu0 %2405
  %2407 = vrot.lane.b32.xlu0 %v298, 80
  %v2408 = vpop.permute.xlu0 %2407
  %v2410 = vsel %vm304, %v2406, 0
  %v2413 = vsel %vm304, %v2408, 0
  %2415 = vmatprep.subr.bf16.mxu0 0
  %2416 = vmatpush1.bf16.xpose.msra.mxu0 0
  %2417 = vmatprep.subr.bf16.mxu0 0
  %2418 = vmatpush1.bf16.xpose.msra.mxu0 0
  %2419 = vmatprep.subr.bf16.mxu0 0
  %2420 = vmatpush1.bf16.xpose.msra.mxu0 0
  %2421 = vmatprep.subr.bf16.mxu0 0
  %2422 = vmatpush1.bf16.xpose.msra.mxu0 0
  %2423 = vmatprep.subr.bf16.mxu0 0
  %2424 = vmatpush1.bf16.xpose.msra.mxu0 0
  %2425 = vmatprep.subr.bf16.mxu0 0
  %2426 = vmatpush1.bf16.xpose.msra.mxu0 0
  %2427 = vmatprep.subr.bf16.mxu0 0
  %2428 = vmatpush1.bf16.xpose.msra.mxu0 0
  %2429 = vmatprep.subr.bf16.mxu0 0
  %2430 = vmatpush1.bf16.xpose.msra.mxu0 %v2413
  %2431 = vmatprep.subr.bf16.mxu0 0
  %2432 = vmatpush2.bf16.xpose.msra.mxu0 0
  %2433 = vmatprep.subr.bf16.mxu0 0
  %2434 = vmatpush2.bf16.xpose.msra.mxu0 0
  %2435 = vmatprep.subr.bf16.mxu0 0
  %2436 = vmatpush2.bf16.xpose.msra.mxu0 0
  %2437 = vmatprep.subr.bf16.mxu0 0
  %2438 = vmatpush2.bf16.xpose.msra.mxu0 0
  %2439 = vmatprep.subr.bf16.mxu0 0
  %2440 = vmatpush2.bf16.xpose.msra.mxu0 0
  %2441 = vmatprep.subr.bf16.mxu0 0
  %2442 = vmatpush2.bf16.xpose.msra.mxu0 0
  %2443 = vmatprep.subr.bf16.mxu0 0
  %2444 = vmatpush2.bf16.xpose.msra.mxu0 0
  %2445 = vmatprep.subr.bf16.mxu0 0
  %2446 = vmatpush2.bf16.xpose.msra.mxu0 0
  %2447 = vmatprep.mubr.bf16.mxu0 0
  %2448 = vmatmul.mubr.bf16.gmra.mxu0 %v2410
  %v2449 = vpop.f32.mrf.mxu0
  %v2450 = vadd.f32 0.0, %v2449
  %v2451 = vpop.f32.mrf.mxu0
  %v2452 = vpop.f32.mrf.mxu0
  %v2453 = vpop.f32.mrf.mxu0
  %2454 = vdwg.mxu0
  %2455 = vrot.lane.b32.xlu0 %v299, 112
  %v2456 = vpop.permute.xlu0 %2455
  %2457 = vrot.lane.b32.xlu0 %v299, 80
  %v2458 = vpop.permute.xlu0 %2457
  %v2460 = vsel %vm304, %v2456, 0
  %v2463 = vsel %vm304, %v2458, 0
  %2465 = vmatprep.subr.bf16.mxu0 0
  %2466 = vmatpush1.bf16.xpose.msra.mxu0 0
  %2467 = vmatprep.subr.bf16.mxu0 0
  %2468 = vmatpush1.bf16.xpose.msra.mxu0 0
  %2469 = vmatprep.subr.bf16.mxu0 0
  %2470 = vmatpush1.bf16.xpose.msra.mxu0 0
  %2471 = vmatprep.subr.bf16.mxu0 0
  %2472 = vmatpush1.bf16.xpose.msra.mxu0 0
  %2473 = vmatprep.subr.bf16.mxu0 0
  %2474 = vmatpush1.bf16.xpose.msra.mxu0 0
  %2475 = vmatprep.subr.bf16.mxu0 0
  %2476 = vmatpush1.bf16.xpose.msra.mxu0 0
  %2477 = vmatprep.subr.bf16.mxu0 0
  %2478 = vmatpush1.bf16.xpose.msra.mxu0 0
  %2479 = vmatprep.subr.bf16.mxu0 0
  %2480 = vmatpush1.bf16.xpose.msra.mxu0 %v2463
  %2481 = vmatprep.subr.bf16.mxu0 0
  %2482 = vmatpush2.bf16.xpose.msra.mxu0 0
  %2483 = vmatprep.subr.bf16.mxu0 0
  %2484 = vmatpush2.bf16.xpose.msra.mxu0 0
  %2485 = vmatprep.subr.bf16.mxu0 0
  %2486 = vmatpush2.bf16.xpose.msra.mxu0 0
  %2487 = vmatprep.subr.bf16.mxu0 0
  %2488 = vmatpush2.bf16.xpose.msra.mxu0 0
  %2489 = vmatprep.subr.bf16.mxu0 0
  %2490 = vmatpush2.bf16.xpose.msra.mxu0 0
  %2491 = vmatprep.subr.bf16.mxu0 0
  %2492 = vmatpush2.bf16.xpose.msra.mxu0 0
  %2493 = vmatprep.subr.bf16.mxu0 0
  %2494 = vmatpush2.bf16.xpose.msra.mxu0 0
  %2495 = vmatprep.subr.bf16.mxu0 0
  %2496 = vmatpush2.bf16.xpose.msra.mxu0 0
  %2497 = vmatprep.mubr.bf16.mxu0 0
  %2498 = vmatmul.mubr.bf16.gmra.mxu0 %v2460
  %v2499 = vpop.f32.mrf.mxu0
  %v2500 = vadd.f32 0.0, %v2499
  %v2501 = vpop.f32.mrf.mxu0
  %v2502 = vpop.f32.mrf.mxu0
  %v2503 = vpop.f32.mrf.mxu0
  %2504 = vdwg.mxu0
  %2505 = vrot.lane.b32.xlu0 %v300, 112
  %v2506 = vpop.permute.xlu0 %2505
  %2507 = vrot.lane.b32.xlu0 %v300, 80
  %v2508 = vpop.permute.xlu0 %2507
  %v2510 = vsel %vm304, %v2506, 0
  %v2513 = vsel %vm304, %v2508, 0
  %2515 = vmatprep.subr.bf16.mxu0 0
  %2516 = vmatpush1.bf16.xpose.msra.mxu0 0
  %2517 = vmatprep.subr.bf16.mxu0 0
  %2518 = vmatpush1.bf16.xpose.msra.mxu0 0
  %2519 = vmatprep.subr.bf16.mxu0 0
  %2520 = vmatpush1.bf16.xpose.msra.mxu0 0
  %2521 = vmatprep.subr.bf16.mxu0 0
  %2522 = vmatpush1.bf16.xpose.msra.mxu0 0
  %2523 = vmatprep.subr.bf16.mxu0 0
  %2524 = vmatpush1.bf16.xpose.msra.mxu0 0
  %2525 = vmatprep.subr.bf16.mxu0 0
  %2526 = vmatpush1.bf16.xpose.msra.mxu0 0
  %2527 = vmatprep.subr.bf16.mxu0 0
  %2528 = vmatpush1.bf16.xpose.msra.mxu0 0
  %2529 = vmatprep.subr.bf16.mxu0 0
  %2530 = vmatpush1.bf16.xpose.msra.mxu0 %v2513
  %2531 = vmatprep.subr.bf16.mxu0 0
  %2532 = vmatpush2.bf16.xpose.msra.mxu0 0
  %2533 = vmatprep.subr.bf16.mxu0 0
  %2534 = vmatpush2.bf16.xpose.msra.mxu0 0
  %2535 = vmatprep.subr.bf16.mxu0 0
  %2536 = vmatpush2.bf16.xpose.msra.mxu0 0
  %2537 = vmatprep.subr.bf16.mxu0 0
  %2538 = vmatpush2.bf16.xpose.msra.mxu0 0
  %2539 = vmatprep.subr.bf16.mxu0 0
  %2540 = vmatpush2.bf16.xpose.msra.mxu0 0
  %2541 = vmatprep.subr.bf16.mxu0 0
  %2542 = vmatpush2.bf16.xpose.msra.mxu0 0
  %2543 = vmatprep.subr.bf16.mxu0 0
  %2544 = vmatpush2.bf16.xpose.msra.mxu0 0
  %2545 = vmatprep.subr.bf16.mxu0 0
  %2546 = vmatpush2.bf16.xpose.msra.mxu0 0
  %2547 = vmatprep.mubr.bf16.mxu0 0
  %2548 = vmatmul.mubr.bf16.gmra.mxu0 %v2510
  %v2549 = vpop.f32.mrf.mxu0
  %v2550 = vadd.f32 0.0, %v2549
  %v2551 = vpop.f32.mrf.mxu0
  %v2552 = vpop.f32.mrf.mxu0
  %v2553 = vpop.f32.mrf.mxu0
  %2554 = vdwg.mxu0
  %v2555 = vmul.f32 %v2200, 0.35355338
  %v2556 = vmul.f32 %v2250, 0.35355338
  %v2557 = vmul.f32 %v2300, 0.35355338
  %v2558 = vmul.f32 %v2350, 0.35355338
  %v2559 = vmul.f32 %v2400, 0.35355338
  %v2560 = vmul.f32 %v2450, 0.35355338
  %v2561 = vmul.f32 %v2500, 0.35355338
  %v2562 = vmul.f32 %v2550, 0.35355338
  %v2563 = vsel %vm704, %v2555, -1e+30
  %v2564 = vsel %vm704, %v2556, -1e+30
  %v2565 = vsel %vm704, %v2557, -1e+30
  %v2566 = vsel %vm704, %v2558, -1e+30
  %v2567 = vsel %vm704, %v2559, -1e+30
  %v2568 = vsel %vm704, %v2560, -1e+30
  %v2569 = vsel %vm704, %v2561, -1e+30
  %v2570 = vsel %vm704, %v2562, -1e+30
  %v2571 = vsel %vm304, %v2563, -inf
  %2572 = vmax.xlane.f32.xlu0 %v2571
  %v2573 = vpop.xlane.xlu0 %2572
  %v2574 = vsel %vm304, %v2564, -inf
  %2575 = vmax.xlane.f32.xlu0 %v2574
  %v2576 = vpop.xlane.xlu0 %2575
  %v2577 = vsel %vm304, %v2565, -inf
  %2578 = vmax.xlane.f32.xlu0 %v2577
  %v2579 = vpop.xlane.xlu0 %2578
  %v2580 = vsel %vm304, %v2566, -inf
  %2581 = vmax.xlane.f32.xlu0 %v2580
  %v2582 = vpop.xlane.xlu0 %2581
  %v2583 = vsel %vm304, %v2567, -inf
  %2584 = vmax.xlane.f32.xlu0 %v2583
  %v2585 = vpop.xlane.xlu0 %2584
  %v2586 = vsel %vm304, %v2568, -inf
  %2587 = vmax.xlane.f32.xlu0 %v2586
  %v2588 = vpop.xlane.xlu0 %2587
  %v2589 = vsel %vm304, %v2569, -inf
  %2590 = vmax.xlane.f32.xlu0 %v2589
  %v2591 = vpop.xlane.xlu0 %2590
  %v2592 = vsel %vm304, %v2570, -inf
  %2593 = vmax.xlane.f32.xlu0 %v2592
  %v2594 = vpop.xlane.xlu0 %2593
  %v2595 = vsub.f32 %v2563, %v2573
  %v2596 = vsub.f32 %v2564, %v2576
  %v2597 = vsub.f32 %v2565, %v2579
  %v2598 = vsub.f32 %v2566, %v2582
  %v2599 = vsub.f32 %v2567, %v2585
  %v2600 = vsub.f32 %v2568, %v2588
  %v2601 = vsub.f32 %v2569, %v2591
  %v2602 = vsub.f32 %v2570, %v2594
  %v2603 = vmul.f32 %v2595, 1.442695
  %v2604 = vpow.pop %v2603
  %v2605 = vmul.f32 %v2596, 1.442695
  %v2606 = vpow.pop %v2605
  %v2607 = vmul.f32 %v2597, 1.442695
  %v2608 = vpow.pop %v2607
  %v2609 = vmul.f32 %v2598, 1.442695
  %v2610 = vpow.pop %v2609
  %v2611 = vmul.f32 %v2599, 1.442695
  %v2612 = vpow.pop %v2611
  %v2613 = vmul.f32 %v2600, 1.442695
  %v2614 = vpow.pop %v2613
  %v2615 = vmul.f32 %v2601, 1.442695
  %v2616 = vpow.pop %v2615
  %v2617 = vmul.f32 %v2602, 1.442695
  %v2618 = vpow.pop %v2617
  %v2619 = vsel %vm304, %v2604, 0.0
  %2620 = vadd.xlane.f32.xlu0 %v2619
  %v2621 = vpop.xlane.xlu0 %2620
  %v2622 = vsel %vm304, %v2606, 0.0
  %2623 = vadd.xlane.f32.xlu0 %v2622
  %v2624 = vpop.xlane.xlu0 %2623
  %v2625 = vsel %vm304, %v2608, 0.0
  %2626 = vadd.xlane.f32.xlu0 %v2625
  %v2627 = vpop.xlane.xlu0 %2626
  %v2628 = vsel %vm304, %v2610, 0.0
  %2629 = vadd.xlane.f32.xlu0 %v2628
  %v2630 = vpop.xlane.xlu0 %2629
  %v2631 = vsel %vm304, %v2612, 0.0
  %2632 = vadd.xlane.f32.xlu0 %v2631
  %v2633 = vpop.xlane.xlu0 %2632
  %v2634 = vsel %vm304, %v2614, 0.0
  %2635 = vadd.xlane.f32.xlu0 %v2634
  %v2636 = vpop.xlane.xlu0 %2635
  %v2637 = vsel %vm304, %v2616, 0.0
  %2638 = vadd.xlane.f32.xlu0 %v2637
  %v2639 = vpop.xlane.xlu0 %2638
  %v2640 = vsel %vm304, %v2618, 0.0
  %2641 = vadd.xlane.f32.xlu0 %v2640
  %v2642 = vpop.xlane.xlu0 %2641
  %v2643 = vrcp.pop %v2621
  %v2644 = vmul.f32 1.0, %v2643
  %v2645 = vrcp.pop %v2624
  %v2646 = vmul.f32 1.0, %v2645
  %v2647 = vrcp.pop %v2627
  %v2648 = vmul.f32 1.0, %v2647
  %v2649 = vrcp.pop %v2630
  %v2650 = vmul.f32 1.0, %v2649
  %v2651 = vrcp.pop %v2633
  %v2652 = vmul.f32 1.0, %v2651
  %v2653 = vrcp.pop %v2636
  %v2654 = vmul.f32 1.0, %v2653
  %v2655 = vrcp.pop %v2639
  %v2656 = vmul.f32 1.0, %v2655
  %v2657 = vrcp.pop %v2642
  %v2658 = vmul.f32 1.0, %v2657
  %v2659 = vmul.f32 %v2604, %v2644
  %v2660 = vmul.f32 %v2606, %v2646
  %v2661 = vmul.f32 %v2608, %v2648
  %v2662 = vmul.f32 %v2610, %v2650
  %v2663 = vmul.f32 %v2612, %v2652
  %v2664 = vmul.f32 %v2614, %v2654
  %v2665 = vmul.f32 %v2616, %v2656
  %v2666 = vmul.f32 %v2618, %v2658
  %v2667 = vpack.c.bf16 %v2659, %v2659
  %v2668 = vpack.c.bf16 %v2660, %v2660
  %v2669 = vpack.c.bf16 %v2661, %v2661
  %v2670 = vpack.c.bf16 %v2662, %v2662
  %v2671 = vpack.c.bf16 %v2663, %v2663
  %v2672 = vpack.c.bf16 %v2664, %v2664
  %v2673 = vpack.c.bf16 %v2665, %v2665
  %v2674 = vpack.c.bf16 %v2666, %v2666
  %2675 = vrot.lane.b32.xlu0 %v293, 48
  %v2676 = vpop.permute.xlu0 %2675
  %v2678 = vsel %vm304, %v2667, 0
  %v2681 = vsel %vm822, %v2676, 0
  %2683 = vmatprep.subr.bf16.mxu0 0
  %2684 = vmatpush1.bf16.msra.mxu0 0
  %2685 = vmatprep.subr.bf16.mxu0 0
  %2686 = vmatpush1.bf16.msra.mxu0 0
  %2687 = vmatprep.subr.bf16.mxu0 0
  %2688 = vmatpush1.bf16.msra.mxu0 0
  %2689 = vmatprep.subr.bf16.mxu0 0
  %2690 = vmatpush1.bf16.msra.mxu0 0
  %2691 = vmatprep.subr.bf16.mxu0 0
  %2692 = vmatpush1.bf16.msra.mxu0 0
  %2693 = vmatprep.subr.bf16.mxu0 0
  %2694 = vmatpush1.bf16.msra.mxu0 0
  %2695 = vmatprep.subr.bf16.mxu0 0
  %2696 = vmatpush1.bf16.msra.mxu0 0
  %2697 = vmatprep.subr.bf16.mxu0 0
  %2698 = vmatpush1.bf16.msra.mxu0 %v2681
  %2699 = vmatprep.subr.bf16.mxu0 0
  %2700 = vmatpush2.bf16.msra.mxu0 0
  %2701 = vmatprep.subr.bf16.mxu0 0
  %2702 = vmatpush2.bf16.msra.mxu0 0
  %2703 = vmatprep.subr.bf16.mxu0 0
  %2704 = vmatpush2.bf16.msra.mxu0 0
  %2705 = vmatprep.subr.bf16.mxu0 0
  %2706 = vmatpush2.bf16.msra.mxu0 0
  %2707 = vmatprep.subr.bf16.mxu0 0
  %2708 = vmatpush2.bf16.msra.mxu0 0
  %2709 = vmatprep.subr.bf16.mxu0 0
  %2710 = vmatpush2.bf16.msra.mxu0 0
  %2711 = vmatprep.subr.bf16.mxu0 0
  %2712 = vmatpush2.bf16.msra.mxu0 0
  %2713 = vmatprep.subr.bf16.mxu0 0
  %2714 = vmatpush2.bf16.msra.mxu0 0
  %2715 = vmatprep.mubr.bf16.mxu0 0
  %2716 = vmatmul.mubr.bf16.gmra.mxu0 %v2678
  %v2717 = vpop.f32.mrf.mxu0
  %v2718 = vadd.f32 0.0, %v2717
  %v2719 = vpop.f32.mrf.mxu0
  %v2720 = vpop.f32.mrf.mxu0
  %v2721 = vpop.f32.mrf.mxu0
  %2722 = vdwg.mxu0
  %2723 = vrot.lane.b32.xlu0 %v294, 48
  %v2724 = vpop.permute.xlu0 %2723
  %v2726 = vsel %vm304, %v2668, 0
  %v2729 = vsel %vm822, %v2724, 0
  %2731 = vmatprep.subr.bf16.mxu0 0
  %2732 = vmatpush1.bf16.msra.mxu0 0
  %2733 = vmatprep.subr.bf16.mxu0 0
  %2734 = vmatpush1.bf16.msra.mxu0 0
  %2735 = vmatprep.subr.bf16.mxu0 0
  %2736 = vmatpush1.bf16.msra.mxu0 0
  %2737 = vmatprep.subr.bf16.mxu0 0
  %2738 = vmatpush1.bf16.msra.mxu0 0
  %2739 = vmatprep.subr.bf16.mxu0 0
  %2740 = vmatpush1.bf16.msra.mxu0 0
  %2741 = vmatprep.subr.bf16.mxu0 0
  %2742 = vmatpush1.bf16.msra.mxu0 0
  %2743 = vmatprep.subr.bf16.mxu0 0
  %2744 = vmatpush1.bf16.msra.mxu0 0
  %2745 = vmatprep.subr.bf16.mxu0 0
  %2746 = vmatpush1.bf16.msra.mxu0 %v2729
  %2747 = vmatprep.subr.bf16.mxu0 0
  %2748 = vmatpush2.bf16.msra.mxu0 0
  %2749 = vmatprep.subr.bf16.mxu0 0
  %2750 = vmatpush2.bf16.msra.mxu0 0
  %2751 = vmatprep.subr.bf16.mxu0 0
  %2752 = vmatpush2.bf16.msra.mxu0 0
  %2753 = vmatprep.subr.bf16.mxu0 0
  %2754 = vmatpush2.bf16.msra.mxu0 0
  %2755 = vmatprep.subr.bf16.mxu0 0
  %2756 = vmatpush2.bf16.msra.mxu0 0
  %2757 = vmatprep.subr.bf16.mxu0 0
  %2758 = vmatpush2.bf16.msra.mxu0 0
  %2759 = vmatprep.subr.bf16.mxu0 0
  %2760 = vmatpush2.bf16.msra.mxu0 0
  %2761 = vmatprep.subr.bf16.mxu0 0
  %2762 = vmatpush2.bf16.msra.mxu0 0
  %2763 = vmatprep.mubr.bf16.mxu0 0
  %2764 = vmatmul.mubr.bf16.gmra.mxu0 %v2726
  %v2765 = vpop.f32.mrf.mxu0
  %v2766 = vadd.f32 0.0, %v2765
  %v2767 = vpop.f32.mrf.mxu0
  %v2768 = vpop.f32.mrf.mxu0
  %v2769 = vpop.f32.mrf.mxu0
  %2770 = vdwg.mxu0
  %2771 = vrot.lane.b32.xlu0 %v295, 48
  %v2772 = vpop.permute.xlu0 %2771
  %v2774 = vsel %vm304, %v2669, 0
  %v2777 = vsel %vm822, %v2772, 0
  %2779 = vmatprep.subr.bf16.mxu0 0
  %2780 = vmatpush1.bf16.msra.mxu0 0
  %2781 = vmatprep.subr.bf16.mxu0 0
  %2782 = vmatpush1.bf16.msra.mxu0 0
  %2783 = vmatprep.subr.bf16.mxu0 0
  %2784 = vmatpush1.bf16.msra.mxu0 0
  %2785 = vmatprep.subr.bf16.mxu0 0
  %2786 = vmatpush1.bf16.msra.mxu0 0
  %2787 = vmatprep.subr.bf16.mxu0 0
  %2788 = vmatpush1.bf16.msra.mxu0 0
  %2789 = vmatprep.subr.bf16.mxu0 0
  %2790 = vmatpush1.bf16.msra.mxu0 0
  %2791 = vmatprep.subr.bf16.mxu0 0
  %2792 = vmatpush1.bf16.msra.mxu0 0
  %2793 = vmatprep.subr.bf16.mxu0 0
  %2794 = vmatpush1.bf16.msra.mxu0 %v2777
  %2795 = vmatprep.subr.bf16.mxu0 0
  %2796 = vmatpush2.bf16.msra.mxu0 0
  %2797 = vmatprep.subr.bf16.mxu0 0
  %2798 = vmatpush2.bf16.msra.mxu0 0
  %2799 = vmatprep.subr.bf16.mxu0 0
  %2800 = vmatpush2.bf16.msra.mxu0 0
  %2801 = vmatprep.subr.bf16.mxu0 0
  %2802 = vmatpush2.bf16.msra.mxu0 0
  %2803 = vmatprep.subr.bf16.mxu0 0
  %2804 = vmatpush2.bf16.msra.mxu0 0
  %2805 = vmatprep.subr.bf16.mxu0 0
  %2806 = vmatpush2.bf16.msra.mxu0 0
  %2807 = vmatprep.subr.bf16.mxu0 0
  %2808 = vmatpush2.bf16.msra.mxu0 0
  %2809 = vmatprep.subr.bf16.mxu0 0
  %2810 = vmatpush2.bf16.msra.mxu0 0
  %2811 = vmatprep.mubr.bf16.mxu0 0
  %2812 = vmatmul.mubr.bf16.gmra.mxu0 %v2774
  %v2813 = vpop.f32.mrf.mxu0
  %v2814 = vadd.f32 0.0, %v2813
  %v2815 = vpop.f32.mrf.mxu0
  %v2816 = vpop.f32.mrf.mxu0
  %v2817 = vpop.f32.mrf.mxu0
  %2818 = vdwg.mxu0
  %2819 = vrot.lane.b32.xlu0 %v296, 48
  %v2820 = vpop.permute.xlu0 %2819
  %v2822 = vsel %vm304, %v2670, 0
  %v2825 = vsel %vm822, %v2820, 0
  %2827 = vmatprep.subr.bf16.mxu0 0
  %2828 = vmatpush1.bf16.msra.mxu0 0
  %2829 = vmatprep.subr.bf16.mxu0 0
  %2830 = vmatpush1.bf16.msra.mxu0 0
  %2831 = vmatprep.subr.bf16.mxu0 0
  %2832 = vmatpush1.bf16.msra.mxu0 0
  %2833 = vmatprep.subr.bf16.mxu0 0
  %2834 = vmatpush1.bf16.msra.mxu0 0
  %2835 = vmatprep.subr.bf16.mxu0 0
  %2836 = vmatpush1.bf16.msra.mxu0 0
  %2837 = vmatprep.subr.bf16.mxu0 0
  %2838 = vmatpush1.bf16.msra.mxu0 0
  %2839 = vmatprep.subr.bf16.mxu0 0
  %2840 = vmatpush1.bf16.msra.mxu0 0
  %2841 = vmatprep.subr.bf16.mxu0 0
  %2842 = vmatpush1.bf16.msra.mxu0 %v2825
  %2843 = vmatprep.subr.bf16.mxu0 0
  %2844 = vmatpush2.bf16.msra.mxu0 0
  %2845 = vmatprep.subr.bf16.mxu0 0
  %2846 = vmatpush2.bf16.msra.mxu0 0
  %2847 = vmatprep.subr.bf16.mxu0 0
  %2848 = vmatpush2.bf16.msra.mxu0 0
  %2849 = vmatprep.subr.bf16.mxu0 0
  %2850 = vmatpush2.bf16.msra.mxu0 0
  %2851 = vmatprep.subr.bf16.mxu0 0
  %2852 = vmatpush2.bf16.msra.mxu0 0
  %2853 = vmatprep.subr.bf16.mxu0 0
  %2854 = vmatpush2.bf16.msra.mxu0 0
  %2855 = vmatprep.subr.bf16.mxu0 0
  %2856 = vmatpush2.bf16.msra.mxu0 0
  %2857 = vmatprep.subr.bf16.mxu0 0
  %2858 = vmatpush2.bf16.msra.mxu0 0
  %2859 = vmatprep.mubr.bf16.mxu0 0
  %2860 = vmatmul.mubr.bf16.gmra.mxu0 %v2822
  %v2861 = vpop.f32.mrf.mxu0
  %v2862 = vadd.f32 0.0, %v2861
  %v2863 = vpop.f32.mrf.mxu0
  %v2864 = vpop.f32.mrf.mxu0
  %v2865 = vpop.f32.mrf.mxu0
  %2866 = vdwg.mxu0
  %2867 = vrot.lane.b32.xlu0 %v297, 48
  %v2868 = vpop.permute.xlu0 %2867
  %v2870 = vsel %vm304, %v2671, 0
  %v2873 = vsel %vm822, %v2868, 0
  %2875 = vmatprep.subr.bf16.mxu0 0
  %2876 = vmatpush1.bf16.msra.mxu0 0
  %2877 = vmatprep.subr.bf16.mxu0 0
  %2878 = vmatpush1.bf16.msra.mxu0 0
  %2879 = vmatprep.subr.bf16.mxu0 0
  %2880 = vmatpush1.bf16.msra.mxu0 0
  %2881 = vmatprep.subr.bf16.mxu0 0
  %2882 = vmatpush1.bf16.msra.mxu0 0
  %2883 = vmatprep.subr.bf16.mxu0 0
  %2884 = vmatpush1.bf16.msra.mxu0 0
  %2885 = vmatprep.subr.bf16.mxu0 0
  %2886 = vmatpush1.bf16.msra.mxu0 0
  %2887 = vmatprep.subr.bf16.mxu0 0
  %2888 = vmatpush1.bf16.msra.mxu0 0
  %2889 = vmatprep.subr.bf16.mxu0 0
  %2890 = vmatpush1.bf16.msra.mxu0 %v2873
  %2891 = vmatprep.subr.bf16.mxu0 0
  %2892 = vmatpush2.bf16.msra.mxu0 0
  %2893 = vmatprep.subr.bf16.mxu0 0
  %2894 = vmatpush2.bf16.msra.mxu0 0
  %2895 = vmatprep.subr.bf16.mxu0 0
  %2896 = vmatpush2.bf16.msra.mxu0 0
  %2897 = vmatprep.subr.bf16.mxu0 0
  %2898 = vmatpush2.bf16.msra.mxu0 0
  %2899 = vmatprep.subr.bf16.mxu0 0
  %2900 = vmatpush2.bf16.msra.mxu0 0
  %2901 = vmatprep.subr.bf16.mxu0 0
  %2902 = vmatpush2.bf16.msra.mxu0 0
  %2903 = vmatprep.subr.bf16.mxu0 0
  %2904 = vmatpush2.bf16.msra.mxu0 0
  %2905 = vmatprep.subr.bf16.mxu0 0
  %2906 = vmatpush2.bf16.msra.mxu0 0
  %2907 = vmatprep.mubr.bf16.mxu0 0
  %2908 = vmatmul.mubr.bf16.gmra.mxu0 %v2870
  %v2909 = vpop.f32.mrf.mxu0
  %v2910 = vadd.f32 0.0, %v2909
  %v2911 = vpop.f32.mrf.mxu0
  %v2912 = vpop.f32.mrf.mxu0
  %v2913 = vpop.f32.mrf.mxu0
  %2914 = vdwg.mxu0
  %2915 = vrot.lane.b32.xlu0 %v298, 48
  %v2916 = vpop.permute.xlu0 %2915
  %v2918 = vsel %vm304, %v2672, 0
  %v2921 = vsel %vm822, %v2916, 0
  %2923 = vmatprep.subr.bf16.mxu0 0
  %2924 = vmatpush1.bf16.msra.mxu0 0
  %2925 = vmatprep.subr.bf16.mxu0 0
  %2926 = vmatpush1.bf16.msra.mxu0 0
  %2927 = vmatprep.subr.bf16.mxu0 0
  %2928 = vmatpush1.bf16.msra.mxu0 0
  %2929 = vmatprep.subr.bf16.mxu0 0
  %2930 = vmatpush1.bf16.msra.mxu0 0
  %2931 = vmatprep.subr.bf16.mxu0 0
  %2932 = vmatpush1.bf16.msra.mxu0 0
  %2933 = vmatprep.subr.bf16.mxu0 0
  %2934 = vmatpush1.bf16.msra.mxu0 0
  %2935 = vmatprep.subr.bf16.mxu0 0
  %2936 = vmatpush1.bf16.msra.mxu0 0
  %2937 = vmatprep.subr.bf16.mxu0 0
  %2938 = vmatpush1.bf16.msra.mxu0 %v2921
  %2939 = vmatprep.subr.bf16.mxu0 0
  %2940 = vmatpush2.bf16.msra.mxu0 0
  %2941 = vmatprep.subr.bf16.mxu0 0
  %2942 = vmatpush2.bf16.msra.mxu0 0
  %2943 = vmatprep.subr.bf16.mxu0 0
  %2944 = vmatpush2.bf16.msra.mxu0 0
  %2945 = vmatprep.subr.bf16.mxu0 0
  %2946 = vmatpush2.bf16.msra.mxu0 0
  %2947 = vmatprep.subr.bf16.mxu0 0
  %2948 = vmatpush2.bf16.msra.mxu0 0
  %2949 = vmatprep.subr.bf16.mxu0 0
  %2950 = vmatpush2.bf16.msra.mxu0 0
  %2951 = vmatprep.subr.bf16.mxu0 0
  %2952 = vmatpush2.bf16.msra.mxu0 0
  %2953 = vmatprep.subr.bf16.mxu0 0
  %2954 = vmatpush2.bf16.msra.mxu0 0
  %2955 = vmatprep.mubr.bf16.mxu0 0
  %2956 = vmatmul.mubr.bf16.gmra.mxu0 %v2918
  %v2957 = vpop.f32.mrf.mxu0
  %v2958 = vadd.f32 0.0, %v2957
  %v2959 = vpop.f32.mrf.mxu0
  %v2960 = vpop.f32.mrf.mxu0
  %v2961 = vpop.f32.mrf.mxu0
  %2962 = vdwg.mxu0
  %2963 = vrot.lane.b32.xlu0 %v299, 48
  %v2964 = vpop.permute.xlu0 %2963
  %v2966 = vsel %vm304, %v2673, 0
  %v2969 = vsel %vm822, %v2964, 0
  %2971 = vmatprep.subr.bf16.mxu0 0
  %2972 = vmatpush1.bf16.msra.mxu0 0
  %2973 = vmatprep.subr.bf16.mxu0 0
  %2974 = vmatpush1.bf16.msra.mxu0 0
  %2975 = vmatprep.subr.bf16.mxu0 0
  %2976 = vmatpush1.bf16.msra.mxu0 0
  %2977 = vmatprep.subr.bf16.mxu0 0
  %2978 = vmatpush1.bf16.msra.mxu0 0
  %2979 = vmatprep.subr.bf16.mxu0 0
  %2980 = vmatpush1.bf16.msra.mxu0 0
  %2981 = vmatprep.subr.bf16.mxu0 0
  %2982 = vmatpush1.bf16.msra.mxu0 0
  %2983 = vmatprep.subr.bf16.mxu0 0
  %2984 = vmatpush1.bf16.msra.mxu0 0
  %2985 = vmatprep.subr.bf16.mxu0 0
  %2986 = vmatpush1.bf16.msra.mxu0 %v2969
  %2987 = vmatprep.subr.bf16.mxu0 0
  %2988 = vmatpush2.bf16.msra.mxu0 0
  %2989 = vmatprep.subr.bf16.mxu0 0
  %2990 = vmatpush2.bf16.msra.mxu0 0
  %2991 = vmatprep.subr.bf16.mxu0 0
  %2992 = vmatpush2.bf16.msra.mxu0 0
  %2993 = vmatprep.subr.bf16.mxu0 0
  %2994 = vmatpush2.bf16.msra.mxu0 0
  %2995 = vmatprep.subr.bf16.mxu0 0
  %2996 = vmatpush2.bf16.msra.mxu0 0
  %2997 = vmatprep.subr.bf16.mxu0 0
  %2998 = vmatpush2.bf16.msra.mxu0 0
  %2999 = vmatprep.subr.bf16.mxu0 0
  %3000 = vmatpush2.bf16.msra.mxu0 0
  %3001 = vmatprep.subr.bf16.mxu0 0
  %3002 = vmatpush2.bf16.msra.mxu0 0
  %3003 = vmatprep.mubr.bf16.mxu0 0
  %3004 = vmatmul.mubr.bf16.gmra.mxu0 %v2966
  %v3005 = vpop.f32.mrf.mxu0
  %v3006 = vadd.f32 0.0, %v3005
  %v3007 = vpop.f32.mrf.mxu0
  %v3008 = vpop.f32.mrf.mxu0
  %v3009 = vpop.f32.mrf.mxu0
  %3010 = vdwg.mxu0
  %3011 = vrot.lane.b32.xlu0 %v300, 48
  %v3012 = vpop.permute.xlu0 %3011
  %v3014 = vsel %vm304, %v2674, 0
  %v3017 = vsel %vm822, %v3012, 0
  %3019 = vmatprep.subr.bf16.mxu0 0
  %3020 = vmatpush1.bf16.msra.mxu0 0
  %3021 = vmatprep.subr.bf16.mxu0 0
  %3022 = vmatpush1.bf16.msra.mxu0 0
  %3023 = vmatprep.subr.bf16.mxu0 0
  %3024 = vmatpush1.bf16.msra.mxu0 0
  %3025 = vmatprep.subr.bf16.mxu0 0
  %3026 = vmatpush1.bf16.msra.mxu0 0
  %3027 = vmatprep.subr.bf16.mxu0 0
  %3028 = vmatpush1.bf16.msra.mxu0 0
  %3029 = vmatprep.subr.bf16.mxu0 0
  %3030 = vmatpush1.bf16.msra.mxu0 0
  %3031 = vmatprep.subr.bf16.mxu0 0
  %3032 = vmatpush1.bf16.msra.mxu0 0
  %3033 = vmatprep.subr.bf16.mxu0 0
  %3034 = vmatpush1.bf16.msra.mxu0 %v3017
  %3035 = vmatprep.subr.bf16.mxu0 0
  %3036 = vmatpush2.bf16.msra.mxu0 0
  %3037 = vmatprep.subr.bf16.mxu0 0
  %3038 = vmatpush2.bf16.msra.mxu0 0
  %3039 = vmatprep.subr.bf16.mxu0 0
  %3040 = vmatpush2.bf16.msra.mxu0 0
  %3041 = vmatprep.subr.bf16.mxu0 0
  %3042 = vmatpush2.bf16.msra.mxu0 0
  %3043 = vmatprep.subr.bf16.mxu0 0
  %3044 = vmatpush2.bf16.msra.mxu0 0
  %3045 = vmatprep.subr.bf16.mxu0 0
  %3046 = vmatpush2.bf16.msra.mxu0 0
  %3047 = vmatprep.subr.bf16.mxu0 0
  %3048 = vmatpush2.bf16.msra.mxu0 0
  %3049 = vmatprep.subr.bf16.mxu0 0
  %3050 = vmatpush2.bf16.msra.mxu0 0
  %3051 = vmatprep.mubr.bf16.mxu0 0
  %3052 = vmatmul.mubr.bf16.gmra.mxu0 %v3014
  %v3053 = vpop.f32.mrf.mxu0
  %v3054 = vadd.f32 0.0, %v3053
  %v3055 = vpop.f32.mrf.mxu0
  %v3056 = vpop.f32.mrf.mxu0
  %v3057 = vpop.f32.mrf.mxu0
  %3058 = vdwg.mxu0
  %3067 = vrot.lane.b32.xlu0 %v2718, 16
  %v3068 = vpop.permute.xlu0 %3067
  %3069 = vrot.lane.b32.xlu0 %v2766, 16
  %v3070 = vpop.permute.xlu0 %3069
  %3071 = vrot.lane.b32.xlu0 %v2814, 16
  %v3072 = vpop.permute.xlu0 %3071
  %3073 = vrot.lane.b32.xlu0 %v2862, 16
  %v3074 = vpop.permute.xlu0 %3073
  %3075 = vrot.lane.b32.xlu0 %v2910, 16
  %v3076 = vpop.permute.xlu0 %3075
  %3077 = vrot.lane.b32.xlu0 %v2958, 16
  %v3078 = vpop.permute.xlu0 %3077
  %3079 = vrot.lane.b32.xlu0 %v3006, 16
  %v3080 = vpop.permute.xlu0 %3079
  %3081 = vrot.lane.b32.xlu0 %v3054, 16
  %v3082 = vpop.permute.xlu0 %3081
  %vm3091 = vcmask 195712
  %3092 = vst.msk [vmem:[#allocation2] sm:$0xff] %vm3091, %v3068
  %3093 = vst.msk [vmem:[#allocation2 + $0x8] sm:$0xff] %vm3091, %v3070
  %3094 = vst.msk [vmem:[#allocation2 + $0x10] sm:$0xff] %vm3091, %v3072
  %3095 = vst.msk [vmem:[#allocation2 + $0x18] sm:$0xff] %vm3091, %v3074
  %3096 = vst.msk [vmem:[#allocation2 + $0x20] sm:$0xff] %vm3091, %v3076
  %3097 = vst.msk [vmem:[#allocation2 + $0x28] sm:$0xff] %vm3091, %v3078
  %3098 = vst.msk [vmem:[#allocation2 + $0x30] sm:$0xff] %vm3091, %v3080
  %3099 = vst.msk [vmem:[#allocation2 + $0x38] sm:$0xff] %vm3091, %v3082
  %3100 = vrot.lane.b32.xlu0 %v293, 104
  %v3101 = vpop.permute.xlu0 %3100
  %3102 = vrot.lane.b32.xlu0 %v293, 72
  %v3103 = vpop.permute.xlu0 %3102
  %v3105 = vsel %vm304, %v3101, 0
  %v3108 = vsel %vm304, %v3103, 0
  %3110 = vmatprep.subr.bf16.mxu0 0
  %3111 = vmatpush1.bf16.xpose.msra.mxu0 0
  %3112 = vmatprep.subr.bf16.mxu0 0
  %3113 = vmatpush1.bf16.xpose.msra.mxu0 0
  %3114 = vmatprep.subr.bf16.mxu0 0
  %3115 = vmatpush1.bf16.xpose.msra.mxu0 0
  %3116 = vmatprep.subr.bf16.mxu0 0
  %3117 = vmatpush1.bf16.xpose.msra.mxu0 0
  %3118 = vmatprep.subr.bf16.mxu0 0
  %3119 = vmatpush1.bf16.xpose.msra.mxu0 0
  %3120 = vmatprep.subr.bf16.mxu0 0
  %3121 = vmatpush1.bf16.xpose.msra.mxu0 0
  %3122 = vmatprep.subr.bf16.mxu0 0
  %3123 = vmatpush1.bf16.xpose.msra.mxu0 0
  %3124 = vmatprep.subr.bf16.mxu0 0
  %3125 = vmatpush1.bf16.xpose.msra.mxu0 %v3108
  %3126 = vmatprep.subr.bf16.mxu0 0
  %3127 = vmatpush2.bf16.xpose.msra.mxu0 0
  %3128 = vmatprep.subr.bf16.mxu0 0
  %3129 = vmatpush2.bf16.xpose.msra.mxu0 0
  %3130 = vmatprep.subr.bf16.mxu0 0
  %3131 = vmatpush2.bf16.xpose.msra.mxu0 0
  %3132 = vmatprep.subr.bf16.mxu0 0
  %3133 = vmatpush2.bf16.xpose.msra.mxu0 0
  %3134 = vmatprep.subr.bf16.mxu0 0
  %3135 = vmatpush2.bf16.xpose.msra.mxu0 0
  %3136 = vmatprep.subr.bf16.mxu0 0
  %3137 = vmatpush2.bf16.xpose.msra.mxu0 0
  %3138 = vmatprep.subr.bf16.mxu0 0
  %3139 = vmatpush2.bf16.xpose.msra.mxu0 0
  %3140 = vmatprep.subr.bf16.mxu0 0
  %3141 = vmatpush2.bf16.xpose.msra.mxu0 0
  %3142 = vmatprep.mubr.bf16.mxu0 0
  %3143 = vmatmul.mubr.bf16.gmra.mxu0 %v3105
  %v3144 = vpop.f32.mrf.mxu0
  %v3145 = vadd.f32 0.0, %v3144
  %v3146 = vpop.f32.mrf.mxu0
  %v3147 = vpop.f32.mrf.mxu0
  %v3148 = vpop.f32.mrf.mxu0
  %3149 = vdwg.mxu0
  %3150 = vrot.lane.b32.xlu0 %v294, 104
  %v3151 = vpop.permute.xlu0 %3150
  %3152 = vrot.lane.b32.xlu0 %v294, 72
  %v3153 = vpop.permute.xlu0 %3152
  %v3155 = vsel %vm304, %v3151, 0
  %v3158 = vsel %vm304, %v3153, 0
  %3160 = vmatprep.subr.bf16.mxu0 0
  %3161 = vmatpush1.bf16.xpose.msra.mxu0 0
  %3162 = vmatprep.subr.bf16.mxu0 0
  %3163 = vmatpush1.bf16.xpose.msra.mxu0 0
  %3164 = vmatprep.subr.bf16.mxu0 0
  %3165 = vmatpush1.bf16.xpose.msra.mxu0 0
  %3166 = vmatprep.subr.bf16.mxu0 0
  %3167 = vmatpush1.bf16.xpose.msra.mxu0 0
  %3168 = vmatprep.subr.bf16.mxu0 0
  %3169 = vmatpush1.bf16.xpose.msra.mxu0 0
  %3170 = vmatprep.subr.bf16.mxu0 0
  %3171 = vmatpush1.bf16.xpose.msra.mxu0 0
  %3172 = vmatprep.subr.bf16.mxu0 0
  %3173 = vmatpush1.bf16.xpose.msra.mxu0 0
  %3174 = vmatprep.subr.bf16.mxu0 0
  %3175 = vmatpush1.bf16.xpose.msra.mxu0 %v3158
  %3176 = vmatprep.subr.bf16.mxu0 0
  %3177 = vmatpush2.bf16.xpose.msra.mxu0 0
  %3178 = vmatprep.subr.bf16.mxu0 0
  %3179 = vmatpush2.bf16.xpose.msra.mxu0 0
  %3180 = vmatprep.subr.bf16.mxu0 0
  %3181 = vmatpush2.bf16.xpose.msra.mxu0 0
  %3182 = vmatprep.subr.bf16.mxu0 0
  %3183 = vmatpush2.bf16.xpose.msra.mxu0 0
  %3184 = vmatprep.subr.bf16.mxu0 0
  %3185 = vmatpush2.bf16.xpose.msra.mxu0 0
  %3186 = vmatprep.subr.bf16.mxu0 0
  %3187 = vmatpush2.bf16.xpose.msra.mxu0 0
  %3188 = vmatprep.subr.bf16.mxu0 0
  %3189 = vmatpush2.bf16.xpose.msra.mxu0 0
  %3190 = vmatprep.subr.bf16.mxu0 0
  %3191 = vmatpush2.bf16.xpose.msra.mxu0 0
  %3192 = vmatprep.mubr.bf16.mxu0 0
  %3193 = vmatmul.mubr.bf16.gmra.mxu0 %v3155
  %v3194 = vpop.f32.mrf.mxu0
  %v3195 = vadd.f32 0.0, %v3194
  %v3196 = vpop.f32.mrf.mxu0
  %v3197 = vpop.f32.mrf.mxu0
  %v3198 = vpop.f32.mrf.mxu0
  %3199 = vdwg.mxu0
  %3200 = vrot.lane.b32.xlu0 %v295, 104
  %v3201 = vpop.permute.xlu0 %3200
  %3202 = vrot.lane.b32.xlu0 %v295, 72
  %v3203 = vpop.permute.xlu0 %3202
  %v3205 = vsel %vm304, %v3201, 0
  %v3208 = vsel %vm304, %v3203, 0
  %3210 = vmatprep.subr.bf16.mxu0 0
  %3211 = vmatpush1.bf16.xpose.msra.mxu0 0
  %3212 = vmatprep.subr.bf16.mxu0 0
  %3213 = vmatpush1.bf16.xpose.msra.mxu0 0
  %3214 = vmatprep.subr.bf16.mxu0 0
  %3215 = vmatpush1.bf16.xpose.msra.mxu0 0
  %3216 = vmatprep.subr.bf16.mxu0 0
  %3217 = vmatpush1.bf16.xpose.msra.mxu0 0
  %3218 = vmatprep.subr.bf16.mxu0 0
  %3219 = vmatpush1.bf16.xpose.msra.mxu0 0
  %3220 = vmatprep.subr.bf16.mxu0 0
  %3221 = vmatpush1.bf16.xpose.msra.mxu0 0
  %3222 = vmatprep.subr.bf16.mxu0 0
  %3223 = vmatpush1.bf16.xpose.msra.mxu0 0
  %3224 = vmatprep.subr.bf16.mxu0 0
  %3225 = vmatpush1.bf16.xpose.msra.mxu0 %v3208
  %3226 = vmatprep.subr.bf16.mxu0 0
  %3227 = vmatpush2.bf16.xpose.msra.mxu0 0
  %3228 = vmatprep.subr.bf16.mxu0 0
  %3229 = vmatpush2.bf16.xpose.msra.mxu0 0
  %3230 = vmatprep.subr.bf16.mxu0 0
  %3231 = vmatpush2.bf16.xpose.msra.mxu0 0
  %3232 = vmatprep.subr.bf16.mxu0 0
  %3233 = vmatpush2.bf16.xpose.msra.mxu0 0
  %3234 = vmatprep.subr.bf16.mxu0 0
  %3235 = vmatpush2.bf16.xpose.msra.mxu0 0
  %3236 = vmatprep.subr.bf16.mxu0 0
  %3237 = vmatpush2.bf16.xpose.msra.mxu0 0
  %3238 = vmatprep.subr.bf16.mxu0 0
  %3239 = vmatpush2.bf16.xpose.msra.mxu0 0
  %3240 = vmatprep.subr.bf16.mxu0 0
  %3241 = vmatpush2.bf16.xpose.msra.mxu0 0
  %3242 = vmatprep.mubr.bf16.mxu0 0
  %3243 = vmatmul.mubr.bf16.gmra.mxu0 %v3205
  %v3244 = vpop.f32.mrf.mxu0
  %v3245 = vadd.f32 0.0, %v3244
  %v3246 = vpop.f32.mrf.mxu0
  %v3247 = vpop.f32.mrf.mxu0
  %v3248 = vpop.f32.mrf.mxu0
  %3249 = vdwg.mxu0
  %3250 = vrot.lane.b32.xlu0 %v296, 104
  %v3251 = vpop.permute.xlu0 %3250
  %3252 = vrot.lane.b32.xlu0 %v296, 72
  %v3253 = vpop.permute.xlu0 %3252
  %v3255 = vsel %vm304, %v3251, 0
  %v3258 = vsel %vm304, %v3253, 0
  %3260 = vmatprep.subr.bf16.mxu0 0
  %3261 = vmatpush1.bf16.xpose.msra.mxu0 0
  %3262 = vmatprep.subr.bf16.mxu0 0
  %3263 = vmatpush1.bf16.xpose.msra.mxu0 0
  %3264 = vmatprep.subr.bf16.mxu0 0
  %3265 = vmatpush1.bf16.xpose.msra.mxu0 0
  %3266 = vmatprep.subr.bf16.mxu0 0
  %3267 = vmatpush1.bf16.xpose.msra.mxu0 0
  %3268 = vmatprep.subr.bf16.mxu0 0
  %3269 = vmatpush1.bf16.xpose.msra.mxu0 0
  %3270 = vmatprep.subr.bf16.mxu0 0
  %3271 = vmatpush1.bf16.xpose.msra.mxu0 0
  %3272 = vmatprep.subr.bf16.mxu0 0
  %3273 = vmatpush1.bf16.xpose.msra.mxu0 0
  %3274 = vmatprep.subr.bf16.mxu0 0
  %3275 = vmatpush1.bf16.xpose.msra.mxu0 %v3258
  %3276 = vmatprep.subr.bf16.mxu0 0
  %3277 = vmatpush2.bf16.xpose.msra.mxu0 0
  %3278 = vmatprep.subr.bf16.mxu0 0
  %3279 = vmatpush2.bf16.xpose.msra.mxu0 0
  %3280 = vmatprep.subr.bf16.mxu0 0
  %3281 = vmatpush2.bf16.xpose.msra.mxu0 0
  %3282 = vmatprep.subr.bf16.mxu0 0
  %3283 = vmatpush2.bf16.xpose.msra.mxu0 0
  %3284 = vmatprep.subr.bf16.mxu0 0
  %3285 = vmatpush2.bf16.xpose.msra.mxu0 0
  %3286 = vmatprep.subr.bf16.mxu0 0
  %3287 = vmatpush2.bf16.xpose.msra.mxu0 0
  %3288 = vmatprep.subr.bf16.mxu0 0
  %3289 = vmatpush2.bf16.xpose.msra.mxu0 0
  %3290 = vmatprep.subr.bf16.mxu0 0
  %3291 = vmatpush2.bf16.xpose.msra.mxu0 0
  %3292 = vmatprep.mubr.bf16.mxu0 0
  %3293 = vmatmul.mubr.bf16.gmra.mxu0 %v3255
  %v3294 = vpop.f32.mrf.mxu0
  %v3295 = vadd.f32 0.0, %v3294
  %v3296 = vpop.f32.mrf.mxu0
  %v3297 = vpop.f32.mrf.mxu0
  %v3298 = vpop.f32.mrf.mxu0
  %3299 = vdwg.mxu0
  %3300 = vrot.lane.b32.xlu0 %v297, 104
  %v3301 = vpop.permute.xlu0 %3300
  %3302 = vrot.lane.b32.xlu0 %v297, 72
  %v3303 = vpop.permute.xlu0 %3302
  %v3305 = vsel %vm304, %v3301, 0
  %v3308 = vsel %vm304, %v3303, 0
  %3310 = vmatprep.subr.bf16.mxu0 0
  %3311 = vmatpush1.bf16.xpose.msra.mxu0 0
  %3312 = vmatprep.subr.bf16.mxu0 0
  %3313 = vmatpush1.bf16.xpose.msra.mxu0 0
  %3314 = vmatprep.subr.bf16.mxu0 0
  %3315 = vmatpush1.bf16.xpose.msra.mxu0 0
  %3316 = vmatprep.subr.bf16.mxu0 0
  %3317 = vmatpush1.bf16.xpose.msra.mxu0 0
  %3318 = vmatprep.subr.bf16.mxu0 0
  %3319 = vmatpush1.bf16.xpose.msra.mxu0 0
  %3320 = vmatprep.subr.bf16.mxu0 0
  %3321 = vmatpush1.bf16.xpose.msra.mxu0 0
  %3322 = vmatprep.subr.bf16.mxu0 0
  %3323 = vmatpush1.bf16.xpose.msra.mxu0 0
  %3324 = vmatprep.subr.bf16.mxu0 0
  %3325 = vmatpush1.bf16.xpose.msra.mxu0 %v3308
  %3326 = vmatprep.subr.bf16.mxu0 0
  %3327 = vmatpush2.bf16.xpose.msra.mxu0 0
  %3328 = vmatprep.subr.bf16.mxu0 0
  %3329 = vmatpush2.bf16.xpose.msra.mxu0 0
  %3330 = vmatprep.subr.bf16.mxu0 0
  %3331 = vmatpush2.bf16.xpose.msra.mxu0 0
  %3332 = vmatprep.subr.bf16.mxu0 0
  %3333 = vmatpush2.bf16.xpose.msra.mxu0 0
  %3334 = vmatprep.subr.bf16.mxu0 0
  %3335 = vmatpush2.bf16.xpose.msra.mxu0 0
  %3336 = vmatprep.subr.bf16.mxu0 0
  %3337 = vmatpush2.bf16.xpose.msra.mxu0 0
  %3338 = vmatprep.subr.bf16.mxu0 0
  %3339 = vmatpush2.bf16.xpose.msra.mxu0 0
  %3340 = vmatprep.subr.bf16.mxu0 0
  %3341 = vmatpush2.bf16.xpose.msra.mxu0 0
  %3342 = vmatprep.mubr.bf16.mxu0 0
  %3343 = vmatmul.mubr.bf16.gmra.mxu0 %v3305
  %v3344 = vpop.f32.mrf.mxu0
  %v3345 = vadd.f32 0.0, %v3344
  %v3346 = vpop.f32.mrf.mxu0
  %v3347 = vpop.f32.mrf.mxu0
  %v3348 = vpop.f32.mrf.mxu0
  %3349 = vdwg.mxu0
  %3350 = vrot.lane.b32.xlu0 %v298, 104
  %v3351 = vpop.permute.xlu0 %3350
  %3352 = vrot.lane.b32.xlu0 %v298, 72
  %v3353 = vpop.permute.xlu0 %3352
  %v3355 = vsel %vm304, %v3351, 0
  %v3358 = vsel %vm304, %v3353, 0
  %3360 = vmatprep.subr.bf16.mxu0 0
  %3361 = vmatpush1.bf16.xpose.msra.mxu0 0
  %3362 = vmatprep.subr.bf16.mxu0 0
  %3363 = vmatpush1.bf16.xpose.msra.mxu0 0
  %3364 = vmatprep.subr.bf16.mxu0 0
  %3365 = vmatpush1.bf16.xpose.msra.mxu0 0
  %3366 = vmatprep.subr.bf16.mxu0 0
  %3367 = vmatpush1.bf16.xpose.msra.mxu0 0
  %3368 = vmatprep.subr.bf16.mxu0 0
  %3369 = vmatpush1.bf16.xpose.msra.mxu0 0
  %3370 = vmatprep.subr.bf16.mxu0 0
  %3371 = vmatpush1.bf16.xpose.msra.mxu0 0
  %3372 = vmatprep.subr.bf16.mxu0 0
  %3373 = vmatpush1.bf16.xpose.msra.mxu0 0
  %3374 = vmatprep.subr.bf16.mxu0 0
  %3375 = vmatpush1.bf16.xpose.msra.mxu0 %v3358
  %3376 = vmatprep.subr.bf16.mxu0 0
  %3377 = vmatpush2.bf16.xpose.msra.mxu0 0
  %3378 = vmatprep.subr.bf16.mxu0 0
  %3379 = vmatpush2.bf16.xpose.msra.mxu0 0
  %3380 = vmatprep.subr.bf16.mxu0 0
  %3381 = vmatpush2.bf16.xpose.msra.mxu0 0
  %3382 = vmatprep.subr.bf16.mxu0 0
  %3383 = vmatpush2.bf16.xpose.msra.mxu0 0
  %3384 = vmatprep.subr.bf16.mxu0 0
  %3385 = vmatpush2.bf16.xpose.msra.mxu0 0
  %3386 = vmatprep.subr.bf16.mxu0 0
  %3387 = vmatpush2.bf16.xpose.msra.mxu0 0
  %3388 = vmatprep.subr.bf16.mxu0 0
  %3389 = vmatpush2.bf16.xpose.msra.mxu0 0
  %3390 = vmatprep.subr.bf16.mxu0 0
  %3391 = vmatpush2.bf16.xpose.msra.mxu0 0
  %3392 = vmatprep.mubr.bf16.mxu0 0
  %3393 = vmatmul.mubr.bf16.gmra.mxu0 %v3355
  %v3394 = vpop.f32.mrf.mxu0
  %v3395 = vadd.f32 0.0, %v3394
  %v3396 = vpop.f32.mrf.mxu0
  %v3397 = vpop.f32.mrf.mxu0
  %v3398 = vpop.f32.mrf.mxu0
  %3399 = vdwg.mxu0
  %3400 = vrot.lane.b32.xlu0 %v299, 104
  %v3401 = vpop.permute.xlu0 %3400
  %3402 = vrot.lane.b32.xlu0 %v299, 72
  %v3403 = vpop.permute.xlu0 %3402
  %v3405 = vsel %vm304, %v3401, 0
  %v3408 = vsel %vm304, %v3403, 0
  %3410 = vmatprep.subr.bf16.mxu0 0
  %3411 = vmatpush1.bf16.xpose.msra.mxu0 0
  %3412 = vmatprep.subr.bf16.mxu0 0
  %3413 = vmatpush1.bf16.xpose.msra.mxu0 0
  %3414 = vmatprep.subr.bf16.mxu0 0
  %3415 = vmatpush1.bf16.xpose.msra.mxu0 0
  %3416 = vmatprep.subr.bf16.mxu0 0
  %3417 = vmatpush1.bf16.xpose.msra.mxu0 0
  %3418 = vmatprep.subr.bf16.mxu0 0
  %3419 = vmatpush1.bf16.xpose.msra.mxu0 0
  %3420 = vmatprep.subr.bf16.mxu0 0
  %3421 = vmatpush1.bf16.xpose.msra.mxu0 0
  %3422 = vmatprep.subr.bf16.mxu0 0
  %3423 = vmatpush1.bf16.xpose.msra.mxu0 0
  %3424 = vmatprep.subr.bf16.mxu0 0
  %3425 = vmatpush1.bf16.xpose.msra.mxu0 %v3408
  %3426 = vmatprep.subr.bf16.mxu0 0
  %3427 = vmatpush2.bf16.xpose.msra.mxu0 0
  %3428 = vmatprep.subr.bf16.mxu0 0
  %3429 = vmatpush2.bf16.xpose.msra.mxu0 0
  %3430 = vmatprep.subr.bf16.mxu0 0
  %3431 = vmatpush2.bf16.xpose.msra.mxu0 0
  %3432 = vmatprep.subr.bf16.mxu0 0
  %3433 = vmatpush2.bf16.xpose.msra.mxu0 0
  %3434 = vmatprep.subr.bf16.mxu0 0
  %3435 = vmatpush2.bf16.xpose.msra.mxu0 0
  %3436 = vmatprep.subr.bf16.mxu0 0
  %3437 = vmatpush2.bf16.xpose.msra.mxu0 0
  %3438 = vmatprep.subr.bf16.mxu0 0
  %3439 = vmatpush2.bf16.xpose.msra.mxu0 0
  %3440 = vmatprep.subr.bf16.mxu0 0
  %3441 = vmatpush2.bf16.xpose.msra.mxu0 0
  %3442 = vmatprep.mubr.bf16.mxu0 0
  %3443 = vmatmul.mubr.bf16.gmra.mxu0 %v3405
  %v3444 = vpop.f32.mrf.mxu0
  %v3445 = vadd.f32 0.0, %v3444
  %v3446 = vpop.f32.mrf.mxu0
  %v3447 = vpop.f32.mrf.mxu0
  %v3448 = vpop.f32.mrf.mxu0
  %3449 = vdwg.mxu0
  %3450 = vrot.lane.b32.xlu0 %v300, 104
  %v3451 = vpop.permute.xlu0 %3450
  %3452 = vrot.lane.b32.xlu0 %v300, 72
  %v3453 = vpop.permute.xlu0 %3452
  %v3455 = vsel %vm304, %v3451, 0
  %v3458 = vsel %vm304, %v3453, 0
  %3460 = vmatprep.subr.bf16.mxu0 0
  %3461 = vmatpush1.bf16.xpose.msra.mxu0 0
  %3462 = vmatprep.subr.bf16.mxu0 0
  %3463 = vmatpush1.bf16.xpose.msra.mxu0 0
  %3464 = vmatprep.subr.bf16.mxu0 0
  %3465 = vmatpush1.bf16.xpose.msra.mxu0 0
  %3466 = vmatprep.subr.bf16.mxu0 0
  %3467 = vmatpush1.bf16.xpose.msra.mxu0 0
  %3468 = vmatprep.subr.bf16.mxu0 0
  %3469 = vmatpush1.bf16.xpose.msra.mxu0 0
  %3470 = vmatprep.subr.bf16.mxu0 0
  %3471 = vmatpush1.bf16.xpose.msra.mxu0 0
  %3472 = vmatprep.subr.bf16.mxu0 0
  %3473 = vmatpush1.bf16.xpose.msra.mxu0 0
  %3474 = vmatprep.subr.bf16.mxu0 0
  %3475 = vmatpush1.bf16.xpose.msra.mxu0 %v3458
  %3476 = vmatprep.subr.bf16.mxu0 0
  %3477 = vmatpush2.bf16.xpose.msra.mxu0 0
  %3478 = vmatprep.subr.bf16.mxu0 0
  %3479 = vmatpush2.bf16.xpose.msra.mxu0 0
  %3480 = vmatprep.subr.bf16.mxu0 0
  %3481 = vmatpush2.bf16.xpose.msra.mxu0 0
  %3482 = vmatprep.subr.bf16.mxu0 0
  %3483 = vmatpush2.bf16.xpose.msra.mxu0 0
  %3484 = vmatprep.subr.bf16.mxu0 0
  %3485 = vmatpush2.bf16.xpose.msra.mxu0 0
  %3486 = vmatprep.subr.bf16.mxu0 0
  %3487 = vmatpush2.bf16.xpose.msra.mxu0 0
  %3488 = vmatprep.subr.bf16.mxu0 0
  %3489 = vmatpush2.bf16.xpose.msra.mxu0 0
  %3490 = vmatprep.subr.bf16.mxu0 0
  %3491 = vmatpush2.bf16.xpose.msra.mxu0 0
  %3492 = vmatprep.mubr.bf16.mxu0 0
  %3493 = vmatmul.mubr.bf16.gmra.mxu0 %v3455
  %v3494 = vpop.f32.mrf.mxu0
  %v3495 = vadd.f32 0.0, %v3494
  %v3496 = vpop.f32.mrf.mxu0
  %v3497 = vpop.f32.mrf.mxu0
  %v3498 = vpop.f32.mrf.mxu0
  %3499 = vdwg.mxu0
  %v3500 = vmul.f32 %v3145, 0.35355338
  %v3501 = vmul.f32 %v3195, 0.35355338
  %v3502 = vmul.f32 %v3245, 0.35355338
  %v3503 = vmul.f32 %v3295, 0.35355338
  %v3504 = vmul.f32 %v3345, 0.35355338
  %v3505 = vmul.f32 %v3395, 0.35355338
  %v3506 = vmul.f32 %v3445, 0.35355338
  %v3507 = vmul.f32 %v3495, 0.35355338
  %v3508 = vsel %vm704, %v3500, -1e+30
  %v3509 = vsel %vm704, %v3501, -1e+30
  %v3510 = vsel %vm704, %v3502, -1e+30
  %v3511 = vsel %vm704, %v3503, -1e+30
  %v3512 = vsel %vm704, %v3504, -1e+30
  %v3513 = vsel %vm704, %v3505, -1e+30
  %v3514 = vsel %vm704, %v3506, -1e+30
  %v3515 = vsel %vm704, %v3507, -1e+30
  %v3516 = vsel %vm304, %v3508, -inf
  %3517 = vmax.xlane.f32.xlu0 %v3516
  %v3518 = vpop.xlane.xlu0 %3517
  %v3519 = vsel %vm304, %v3509, -inf
  %3520 = vmax.xlane.f32.xlu0 %v3519
  %v3521 = vpop.xlane.xlu0 %3520
  %v3522 = vsel %vm304, %v3510, -inf
  %3523 = vmax.xlane.f32.xlu0 %v3522
  %v3524 = vpop.xlane.xlu0 %3523
  %v3525 = vsel %vm304, %v3511, -inf
  %3526 = vmax.xlane.f32.xlu0 %v3525
  %v3527 = vpop.xlane.xlu0 %3526
  %v3528 = vsel %vm304, %v3512, -inf
  %3529 = vmax.xlane.f32.xlu0 %v3528
  %v3530 = vpop.xlane.xlu0 %3529
  %v3531 = vsel %vm304, %v3513, -inf
  %3532 = vmax.xlane.f32.xlu0 %v3531
  %v3533 = vpop.xlane.xlu0 %3532
  %v3534 = vsel %vm304, %v3514, -inf
  %3535 = vmax.xlane.f32.xlu0 %v3534
  %v3536 = vpop.xlane.xlu0 %3535
  %v3537 = vsel %vm304, %v3515, -inf
  %3538 = vmax.xlane.f32.xlu0 %v3537
  %v3539 = vpop.xlane.xlu0 %3538
  %v3540 = vsub.f32 %v3508, %v3518
  %v3541 = vsub.f32 %v3509, %v3521
  %v3542 = vsub.f32 %v3510, %v3524
  %v3543 = vsub.f32 %v3511, %v3527
  %v3544 = vsub.f32 %v3512, %v3530
  %v3545 = vsub.f32 %v3513, %v3533
  %v3546 = vsub.f32 %v3514, %v3536
  %v3547 = vsub.f32 %v3515, %v3539
  %v3548 = vmul.f32 %v3540, 1.442695
  %v3549 = vpow.pop %v3548
  %v3550 = vmul.f32 %v3541, 1.442695
  %v3551 = vpow.pop %v3550
  %v3552 = vmul.f32 %v3542, 1.442695
  %v3553 = vpow.pop %v3552
  %v3554 = vmul.f32 %v3543, 1.442695
  %v3555 = vpow.pop %v3554
  %v3556 = vmul.f32 %v3544, 1.442695
  %v3557 = vpow.pop %v3556
  %v3558 = vmul.f32 %v3545, 1.442695
  %v3559 = vpow.pop %v3558
  %v3560 = vmul.f32 %v3546, 1.442695
  %v3561 = vpow.pop %v3560
  %v3562 = vmul.f32 %v3547, 1.442695
  %v3563 = vpow.pop %v3562
  %v3564 = vsel %vm304, %v3549, 0.0
  %3565 = vadd.xlane.f32.xlu0 %v3564
  %v3566 = vpop.xlane.xlu0 %3565
  %v3567 = vsel %vm304, %v3551, 0.0
  %3568 = vadd.xlane.f32.xlu0 %v3567
  %v3569 = vpop.xlane.xlu0 %3568
  %v3570 = vsel %vm304, %v3553, 0.0
  %3571 = vadd.xlane.f32.xlu0 %v3570
  %v3572 = vpop.xlane.xlu0 %3571
  %v3573 = vsel %vm304, %v3555, 0.0
  %3574 = vadd.xlane.f32.xlu0 %v3573
  %v3575 = vpop.xlane.xlu0 %3574
  %v3576 = vsel %vm304, %v3557, 0.0
  %3577 = vadd.xlane.f32.xlu0 %v3576
  %v3578 = vpop.xlane.xlu0 %3577
  %v3579 = vsel %vm304, %v3559, 0.0
  %3580 = vadd.xlane.f32.xlu0 %v3579
  %v3581 = vpop.xlane.xlu0 %3580
  %v3582 = vsel %vm304, %v3561, 0.0
  %3583 = vadd.xlane.f32.xlu0 %v3582
  %v3584 = vpop.xlane.xlu0 %3583
  %v3585 = vsel %vm304, %v3563, 0.0
  %3586 = vadd.xlane.f32.xlu0 %v3585
  %v3587 = vpop.xlane.xlu0 %3586
  %v3588 = vrcp.pop %v3566
  %v3589 = vmul.f32 1.0, %v3588
  %v3590 = vrcp.pop %v3569
  %v3591 = vmul.f32 1.0, %v3590
  %v3592 = vrcp.pop %v3572
  %v3593 = vmul.f32 1.0, %v3592
  %v3594 = vrcp.pop %v3575
  %v3595 = vmul.f32 1.0, %v3594
  %v3596 = vrcp.pop %v3578
  %v3597 = vmul.f32 1.0, %v3596
  %v3598 = vrcp.pop %v3581
  %v3599 = vmul.f32 1.0, %v3598
  %v3600 = vrcp.pop %v3584
  %v3601 = vmul.f32 1.0, %v3600
  %v3602 = vrcp.pop %v3587
  %v3603 = vmul.f32 1.0, %v3602
  %v3604 = vmul.f32 %v3549, %v3589
  %v3605 = vmul.f32 %v3551, %v3591
  %v3606 = vmul.f32 %v3553, %v3593
  %v3607 = vmul.f32 %v3555, %v3595
  %v3608 = vmul.f32 %v3557, %v3597
  %v3609 = vmul.f32 %v3559, %v3599
  %v3610 = vmul.f32 %v3561, %v3601
  %v3611 = vmul.f32 %v3563, %v3603
  %v3612 = vpack.c.bf16 %v3604, %v3604
  %v3613 = vpack.c.bf16 %v3605, %v3605
  %v3614 = vpack.c.bf16 %v3606, %v3606
  %v3615 = vpack.c.bf16 %v3607, %v3607
  %v3616 = vpack.c.bf16 %v3608, %v3608
  %v3617 = vpack.c.bf16 %v3609, %v3609
  %v3618 = vpack.c.bf16 %v3610, %v3610
  %v3619 = vpack.c.bf16 %v3611, %v3611
  %3620 = vrot.lane.b32.xlu0 %v293, 40
  %v3621 = vpop.permute.xlu0 %3620
  %v3623 = vsel %vm304, %v3612, 0
  %v3626 = vsel %vm822, %v3621, 0
  %3628 = vmatprep.subr.bf16.mxu0 0
  %3629 = vmatpush1.bf16.msra.mxu0 0
  %3630 = vmatprep.subr.bf16.mxu0 0
  %3631 = vmatpush1.bf16.msra.mxu0 0
  %3632 = vmatprep.subr.bf16.mxu0 0
  %3633 = vmatpush1.bf16.msra.mxu0 0
  %3634 = vmatprep.subr.bf16.mxu0 0
  %3635 = vmatpush1.bf16.msra.mxu0 0
  %3636 = vmatprep.subr.bf16.mxu0 0
  %3637 = vmatpush1.bf16.msra.mxu0 0
  %3638 = vmatprep.subr.bf16.mxu0 0
  %3639 = vmatpush1.bf16.msra.mxu0 0
  %3640 = vmatprep.subr.bf16.mxu0 0
  %3641 = vmatpush1.bf16.msra.mxu0 0
  %3642 = vmatprep.subr.bf16.mxu0 0
  %3643 = vmatpush1.bf16.msra.mxu0 %v3626
  %3644 = vmatprep.subr.bf16.mxu0 0
  %3645 = vmatpush2.bf16.msra.mxu0 0
  %3646 = vmatprep.subr.bf16.mxu0 0
  %3647 = vmatpush2.bf16.msra.mxu0 0
  %3648 = vmatprep.subr.bf16.mxu0 0
  %3649 = vmatpush2.bf16.msra.mxu0 0
  %3650 = vmatprep.subr.bf16.mxu0 0
  %3651 = vmatpush2.bf16.msra.mxu0 0
  %3652 = vmatprep.subr.bf16.mxu0 0
  %3653 = vmatpush2.bf16.msra.mxu0 0
  %3654 = vmatprep.subr.bf16.mxu0 0
  %3655 = vmatpush2.bf16.msra.mxu0 0
  %3656 = vmatprep.subr.bf16.mxu0 0
  %3657 = vmatpush2.bf16.msra.mxu0 0
  %3658 = vmatprep.subr.bf16.mxu0 0
  %3659 = vmatpush2.bf16.msra.mxu0 0
  %3660 = vmatprep.mubr.bf16.mxu0 0
  %3661 = vmatmul.mubr.bf16.gmra.mxu0 %v3623
  %v3662 = vpop.f32.mrf.mxu0
  %v3663 = vadd.f32 0.0, %v3662
  %v3664 = vpop.f32.mrf.mxu0
  %v3665 = vpop.f32.mrf.mxu0
  %v3666 = vpop.f32.mrf.mxu0
  %3667 = vdwg.mxu0
  %3668 = vrot.lane.b32.xlu0 %v294, 40
  %v3669 = vpop.permute.xlu0 %3668
  %v3671 = vsel %vm304, %v3613, 0
  %v3674 = vsel %vm822, %v3669, 0
  %3676 = vmatprep.subr.bf16.mxu0 0
  %3677 = vmatpush1.bf16.msra.mxu0 0
  %3678 = vmatprep.subr.bf16.mxu0 0
  %3679 = vmatpush1.bf16.msra.mxu0 0
  %3680 = vmatprep.subr.bf16.mxu0 0
  %3681 = vmatpush1.bf16.msra.mxu0 0
  %3682 = vmatprep.subr.bf16.mxu0 0
  %3683 = vmatpush1.bf16.msra.mxu0 0
  %3684 = vmatprep.subr.bf16.mxu0 0
  %3685 = vmatpush1.bf16.msra.mxu0 0
  %3686 = vmatprep.subr.bf16.mxu0 0
  %3687 = vmatpush1.bf16.msra.mxu0 0
  %3688 = vmatprep.subr.bf16.mxu0 0
  %3689 = vmatpush1.bf16.msra.mxu0 0
  %3690 = vmatprep.subr.bf16.mxu0 0
  %3691 = vmatpush1.bf16.msra.mxu0 %v3674
  %3692 = vmatprep.subr.bf16.mxu0 0
  %3693 = vmatpush2.bf16.msra.mxu0 0
  %3694 = vmatprep.subr.bf16.mxu0 0
  %3695 = vmatpush2.bf16.msra.mxu0 0
  %3696 = vmatprep.subr.bf16.mxu0 0
  %3697 = vmatpush2.bf16.msra.mxu0 0
  %3698 = vmatprep.subr.bf16.mxu0 0
  %3699 = vmatpush2.bf16.msra.mxu0 0
  %3700 = vmatprep.subr.bf16.mxu0 0
  %3701 = vmatpush2.bf16.msra.mxu0 0
  %3702 = vmatprep.subr.bf16.mxu0 0
  %3703 = vmatpush2.bf16.msra.mxu0 0
  %3704 = vmatprep.subr.bf16.mxu0 0
  %3705 = vmatpush2.bf16.msra.mxu0 0
  %3706 = vmatprep.subr.bf16.mxu0 0
  %3707 = vmatpush2.bf16.msra.mxu0 0
  %3708 = vmatprep.mubr.bf16.mxu0 0
  %3709 = vmatmul.mubr.bf16.gmra.mxu0 %v3671
  %v3710 = vpop.f32.mrf.mxu0
  %v3711 = vadd.f32 0.0, %v3710
  %v3712 = vpop.f32.mrf.mxu0
  %v3713 = vpop.f32.mrf.mxu0
  %v3714 = vpop.f32.mrf.mxu0
  %3715 = vdwg.mxu0
  %3716 = vrot.lane.b32.xlu0 %v295, 40
  %v3717 = vpop.permute.xlu0 %3716
  %v3719 = vsel %vm304, %v3614, 0
  %v3722 = vsel %vm822, %v3717, 0
  %3724 = vmatprep.subr.bf16.mxu0 0
  %3725 = vmatpush1.bf16.msra.mxu0 0
  %3726 = vmatprep.subr.bf16.mxu0 0
  %3727 = vmatpush1.bf16.msra.mxu0 0
  %3728 = vmatprep.subr.bf16.mxu0 0
  %3729 = vmatpush1.bf16.msra.mxu0 0
  %3730 = vmatprep.subr.bf16.mxu0 0
  %3731 = vmatpush1.bf16.msra.mxu0 0
  %3732 = vmatprep.subr.bf16.mxu0 0
  %3733 = vmatpush1.bf16.msra.mxu0 0
  %3734 = vmatprep.subr.bf16.mxu0 0
  %3735 = vmatpush1.bf16.msra.mxu0 0
  %3736 = vmatprep.subr.bf16.mxu0 0
  %3737 = vmatpush1.bf16.msra.mxu0 0
  %3738 = vmatprep.subr.bf16.mxu0 0
  %3739 = vmatpush1.bf16.msra.mxu0 %v3722
  %3740 = vmatprep.subr.bf16.mxu0 0
  %3741 = vmatpush2.bf16.msra.mxu0 0
  %3742 = vmatprep.subr.bf16.mxu0 0
  %3743 = vmatpush2.bf16.msra.mxu0 0
  %3744 = vmatprep.subr.bf16.mxu0 0
  %3745 = vmatpush2.bf16.msra.mxu0 0
  %3746 = vmatprep.subr.bf16.mxu0 0
  %3747 = vmatpush2.bf16.msra.mxu0 0
  %3748 = vmatprep.subr.bf16.mxu0 0
  %3749 = vmatpush2.bf16.msra.mxu0 0
  %3750 = vmatprep.subr.bf16.mxu0 0
  %3751 = vmatpush2.bf16.msra.mxu0 0
  %3752 = vmatprep.subr.bf16.mxu0 0
  %3753 = vmatpush2.bf16.msra.mxu0 0
  %3754 = vmatprep.subr.bf16.mxu0 0
  %3755 = vmatpush2.bf16.msra.mxu0 0
  %3756 = vmatprep.mubr.bf16.mxu0 0
  %3757 = vmatmul.mubr.bf16.gmra.mxu0 %v3719
  %v3758 = vpop.f32.mrf.mxu0
  %v3759 = vadd.f32 0.0, %v3758
  %v3760 = vpop.f32.mrf.mxu0
  %v3761 = vpop.f32.mrf.mxu0
  %v3762 = vpop.f32.mrf.mxu0
  %3763 = vdwg.mxu0
  %3764 = vrot.lane.b32.xlu0 %v296, 40
  %v3765 = vpop.permute.xlu0 %3764
  %v3767 = vsel %vm304, %v3615, 0
  %v3770 = vsel %vm822, %v3765, 0
  %3772 = vmatprep.subr.bf16.mxu0 0
  %3773 = vmatpush1.bf16.msra.mxu0 0
  %3774 = vmatprep.subr.bf16.mxu0 0
  %3775 = vmatpush1.bf16.msra.mxu0 0
  %3776 = vmatprep.subr.bf16.mxu0 0
  %3777 = vmatpush1.bf16.msra.mxu0 0
  %3778 = vmatprep.subr.bf16.mxu0 0
  %3779 = vmatpush1.bf16.msra.mxu0 0
  %3780 = vmatprep.subr.bf16.mxu0 0
  %3781 = vmatpush1.bf16.msra.mxu0 0
  %3782 = vmatprep.subr.bf16.mxu0 0
  %3783 = vmatpush1.bf16.msra.mxu0 0
  %3784 = vmatprep.subr.bf16.mxu0 0
  %3785 = vmatpush1.bf16.msra.mxu0 0
  %3786 = vmatprep.subr.bf16.mxu0 0
  %3787 = vmatpush1.bf16.msra.mxu0 %v3770
  %3788 = vmatprep.subr.bf16.mxu0 0
  %3789 = vmatpush2.bf16.msra.mxu0 0
  %3790 = vmatprep.subr.bf16.mxu0 0
  %3791 = vmatpush2.bf16.msra.mxu0 0
  %3792 = vmatprep.subr.bf16.mxu0 0
  %3793 = vmatpush2.bf16.msra.mxu0 0
  %3794 = vmatprep.subr.bf16.mxu0 0
  %3795 = vmatpush2.bf16.msra.mxu0 0
  %3796 = vmatprep.subr.bf16.mxu0 0
  %3797 = vmatpush2.bf16.msra.mxu0 0
  %3798 = vmatprep.subr.bf16.mxu0 0
  %3799 = vmatpush2.bf16.msra.mxu0 0
  %3800 = vmatprep.subr.bf16.mxu0 0
  %3801 = vmatpush2.bf16.msra.mxu0 0
  %3802 = vmatprep.subr.bf16.mxu0 0
  %3803 = vmatpush2.bf16.msra.mxu0 0
  %3804 = vmatprep.mubr.bf16.mxu0 0
  %3805 = vmatmul.mubr.bf16.gmra.mxu0 %v3767
  %v3806 = vpop.f32.mrf.mxu0
  %v3807 = vadd.f32 0.0, %v3806
  %v3808 = vpop.f32.mrf.mxu0
  %v3809 = vpop.f32.mrf.mxu0
  %v3810 = vpop.f32.mrf.mxu0
  %3811 = vdwg.mxu0
  %3812 = vrot.lane.b32.xlu0 %v297, 40
  %v3813 = vpop.permute.xlu0 %3812
  %v3815 = vsel %vm304, %v3616, 0
  %v3818 = vsel %vm822, %v3813, 0
  %3820 = vmatprep.subr.bf16.mxu0 0
  %3821 = vmatpush1.bf16.msra.mxu0 0
  %3822 = vmatprep.subr.bf16.mxu0 0
  %3823 = vmatpush1.bf16.msra.mxu0 0
  %3824 = vmatprep.subr.bf16.mxu0 0
  %3825 = vmatpush1.bf16.msra.mxu0 0
  %3826 = vmatprep.subr.bf16.mxu0 0
  %3827 = vmatpush1.bf16.msra.mxu0 0
  %3828 = vmatprep.subr.bf16.mxu0 0
  %3829 = vmatpush1.bf16.msra.mxu0 0
  %3830 = vmatprep.subr.bf16.mxu0 0
  %3831 = vmatpush1.bf16.msra.mxu0 0
  %3832 = vmatprep.subr.bf16.mxu0 0
  %3833 = vmatpush1.bf16.msra.mxu0 0
  %3834 = vmatprep.subr.bf16.mxu0 0
  %3835 = vmatpush1.bf16.msra.mxu0 %v3818
  %3836 = vmatprep.subr.bf16.mxu0 0
  %3837 = vmatpush2.bf16.msra.mxu0 0
  %3838 = vmatprep.subr.bf16.mxu0 0
  %3839 = vmatpush2.bf16.msra.mxu0 0
  %3840 = vmatprep.subr.bf16.mxu0 0
  %3841 = vmatpush2.bf16.msra.mxu0 0
  %3842 = vmatprep.subr.bf16.mxu0 0
  %3843 = vmatpush2.bf16.msra.mxu0 0
  %3844 = vmatprep.subr.bf16.mxu0 0
  %3845 = vmatpush2.bf16.msra.mxu0 0
  %3846 = vmatprep.subr.bf16.mxu0 0
  %3847 = vmatpush2.bf16.msra.mxu0 0
  %3848 = vmatprep.subr.bf16.mxu0 0
  %3849 = vmatpush2.bf16.msra.mxu0 0
  %3850 = vmatprep.subr.bf16.mxu0 0
  %3851 = vmatpush2.bf16.msra.mxu0 0
  %3852 = vmatprep.mubr.bf16.mxu0 0
  %3853 = vmatmul.mubr.bf16.gmra.mxu0 %v3815
  %v3854 = vpop.f32.mrf.mxu0
  %v3855 = vadd.f32 0.0, %v3854
  %v3856 = vpop.f32.mrf.mxu0
  %v3857 = vpop.f32.mrf.mxu0
  %v3858 = vpop.f32.mrf.mxu0
  %3859 = vdwg.mxu0
  %3860 = vrot.lane.b32.xlu0 %v298, 40
  %v3861 = vpop.permute.xlu0 %3860
  %v3863 = vsel %vm304, %v3617, 0
  %v3866 = vsel %vm822, %v3861, 0
  %3868 = vmatprep.subr.bf16.mxu0 0
  %3869 = vmatpush1.bf16.msra.mxu0 0
  %3870 = vmatprep.subr.bf16.mxu0 0
  %3871 = vmatpush1.bf16.msra.mxu0 0
  %3872 = vmatprep.subr.bf16.mxu0 0
  %3873 = vmatpush1.bf16.msra.mxu0 0
  %3874 = vmatprep.subr.bf16.mxu0 0
  %3875 = vmatpush1.bf16.msra.mxu0 0
  %3876 = vmatprep.subr.bf16.mxu0 0
  %3877 = vmatpush1.bf16.msra.mxu0 0
  %3878 = vmatprep.subr.bf16.mxu0 0
  %3879 = vmatpush1.bf16.msra.mxu0 0
  %3880 = vmatprep.subr.bf16.mxu0 0
  %3881 = vmatpush1.bf16.msra.mxu0 0
  %3882 = vmatprep.subr.bf16.mxu0 0
  %3883 = vmatpush1.bf16.msra.mxu0 %v3866
  %3884 = vmatprep.subr.bf16.mxu0 0
  %3885 = vmatpush2.bf16.msra.mxu0 0
  %3886 = vmatprep.subr.bf16.mxu0 0
  %3887 = vmatpush2.bf16.msra.mxu0 0
  %3888 = vmatprep.subr.bf16.mxu0 0
  %3889 = vmatpush2.bf16.msra.mxu0 0
  %3890 = vmatprep.subr.bf16.mxu0 0
  %3891 = vmatpush2.bf16.msra.mxu0 0
  %3892 = vmatprep.subr.bf16.mxu0 0
  %3893 = vmatpush2.bf16.msra.mxu0 0
  %3894 = vmatprep.subr.bf16.mxu0 0
  %3895 = vmatpush2.bf16.msra.mxu0 0
  %3896 = vmatprep.subr.bf16.mxu0 0
  %3897 = vmatpush2.bf16.msra.mxu0 0
  %3898 = vmatprep.subr.bf16.mxu0 0
  %3899 = vmatpush2.bf16.msra.mxu0 0
  %3900 = vmatprep.mubr.bf16.mxu0 0
  %3901 = vmatmul.mubr.bf16.gmra.mxu0 %v3863
  %v3902 = vpop.f32.mrf.mxu0
  %v3903 = vadd.f32 0.0, %v3902
  %v3904 = vpop.f32.mrf.mxu0
  %v3905 = vpop.f32.mrf.mxu0
  %v3906 = vpop.f32.mrf.mxu0
  %3907 = vdwg.mxu0
  %3908 = vrot.lane.b32.xlu0 %v299, 40
  %v3909 = vpop.permute.xlu0 %3908
  %v3911 = vsel %vm304, %v3618, 0
  %v3914 = vsel %vm822, %v3909, 0
  %3916 = vmatprep.subr.bf16.mxu0 0
  %3917 = vmatpush1.bf16.msra.mxu0 0
  %3918 = vmatprep.subr.bf16.mxu0 0
  %3919 = vmatpush1.bf16.msra.mxu0 0
  %3920 = vmatprep.subr.bf16.mxu0 0
  %3921 = vmatpush1.bf16.msra.mxu0 0
  %3922 = vmatprep.subr.bf16.mxu0 0
  %3923 = vmatpush1.bf16.msra.mxu0 0
  %3924 = vmatprep.subr.bf16.mxu0 0
  %3925 = vmatpush1.bf16.msra.mxu0 0
  %3926 = vmatprep.subr.bf16.mxu0 0
  %3927 = vmatpush1.bf16.msra.mxu0 0
  %3928 = vmatprep.subr.bf16.mxu0 0
  %3929 = vmatpush1.bf16.msra.mxu0 0
  %3930 = vmatprep.subr.bf16.mxu0 0
  %3931 = vmatpush1.bf16.msra.mxu0 %v3914
  %3932 = vmatprep.subr.bf16.mxu0 0
  %3933 = vmatpush2.bf16.msra.mxu0 0
  %3934 = vmatprep.subr.bf16.mxu0 0
  %3935 = vmatpush2.bf16.msra.mxu0 0
  %3936 = vmatprep.subr.bf16.mxu0 0
  %3937 = vmatpush2.bf16.msra.mxu0 0
  %3938 = vmatprep.subr.bf16.mxu0 0
  %3939 = vmatpush2.bf16.msra.mxu0 0
  %3940 = vmatprep.subr.bf16.mxu0 0
  %3941 = vmatpush2.bf16.msra.mxu0 0
  %3942 = vmatprep.subr.bf16.mxu0 0
  %3943 = vmatpush2.bf16.msra.mxu0 0
  %3944 = vmatprep.subr.bf16.mxu0 0
  %3945 = vmatpush2.bf16.msra.mxu0 0
  %3946 = vmatprep.subr.bf16.mxu0 0
  %3947 = vmatpush2.bf16.msra.mxu0 0
  %3948 = vmatprep.mubr.bf16.mxu0 0
  %3949 = vmatmul.mubr.bf16.gmra.mxu0 %v3911
  %v3950 = vpop.f32.mrf.mxu0
  %v3951 = vadd.f32 0.0, %v3950
  %v3952 = vpop.f32.mrf.mxu0
  %v3953 = vpop.f32.mrf.mxu0
  %v3954 = vpop.f32.mrf.mxu0
  %3955 = vdwg.mxu0
  %3956 = vrot.lane.b32.xlu0 %v300, 40
  %v3957 = vpop.permute.xlu0 %3956
  %v3959 = vsel %vm304, %v3619, 0
  %v3962 = vsel %vm822, %v3957, 0
  %3964 = vmatprep.subr.bf16.mxu0 0
  %3965 = vmatpush1.bf16.msra.mxu0 0
  %3966 = vmatprep.subr.bf16.mxu0 0
  %3967 = vmatpush1.bf16.msra.mxu0 0
  %3968 = vmatprep.subr.bf16.mxu0 0
  %3969 = vmatpush1.bf16.msra.mxu0 0
  %3970 = vmatprep.subr.bf16.mxu0 0
  %3971 = vmatpush1.bf16.msra.mxu0 0
  %3972 = vmatprep.subr.bf16.mxu0 0
  %3973 = vmatpush1.bf16.msra.mxu0 0
  %3974 = vmatprep.subr.bf16.mxu0 0
  %3975 = vmatpush1.bf16.msra.mxu0 0
  %3976 = vmatprep.subr.bf16.mxu0 0
  %3977 = vmatpush1.bf16.msra.mxu0 0
  %3978 = vmatprep.subr.bf16.mxu0 0
  %3979 = vmatpush1.bf16.msra.mxu0 %v3962
  %3980 = vmatprep.subr.bf16.mxu0 0
  %3981 = vmatpush2.bf16.msra.mxu0 0
  %3982 = vmatprep.subr.bf16.mxu0 0
  %3983 = vmatpush2.bf16.msra.mxu0 0
  %3984 = vmatprep.subr.bf16.mxu0 0
  %3985 = vmatpush2.bf16.msra.mxu0 0
  %3986 = vmatprep.subr.bf16.mxu0 0
  %3987 = vmatpush2.bf16.msra.mxu0 0
  %3988 = vmatprep.subr.bf16.mxu0 0
  %3989 = vmatpush2.bf16.msra.mxu0 0
  %3990 = vmatprep.subr.bf16.mxu0 0
  %3991 = vmatpush2.bf16.msra.mxu0 0
  %3992 = vmatprep.subr.bf16.mxu0 0
  %3993 = vmatpush2.bf16.msra.mxu0 0
  %3994 = vmatprep.subr.bf16.mxu0 0
  %3995 = vmatpush2.bf16.msra.mxu0 0
  %3996 = vmatprep.mubr.bf16.mxu0 0
  %3997 = vmatmul.mubr.bf16.gmra.mxu0 %v3959
  %v3998 = vpop.f32.mrf.mxu0
  %v3999 = vadd.f32 0.0, %v3998
  %v4000 = vpop.f32.mrf.mxu0
  %v4001 = vpop.f32.mrf.mxu0
  %v4002 = vpop.f32.mrf.mxu0
  %4003 = vdwg.mxu0
  %4012 = vrot.lane.b32.xlu0 %v3663, 24
  %v4013 = vpop.permute.xlu0 %4012
  %4014 = vrot.lane.b32.xlu0 %v3711, 24
  %v4015 = vpop.permute.xlu0 %4014
  %4016 = vrot.lane.b32.xlu0 %v3759, 24
  %v4017 = vpop.permute.xlu0 %4016
  %4018 = vrot.lane.b32.xlu0 %v3807, 24
  %v4019 = vpop.permute.xlu0 %4018
  %4020 = vrot.lane.b32.xlu0 %v3855, 24
  %v4021 = vpop.permute.xlu0 %4020
  %4022 = vrot.lane.b32.xlu0 %v3903, 24
  %v4023 = vpop.permute.xlu0 %4022
  %4024 = vrot.lane.b32.xlu0 %v3951, 24
  %v4025 = vpop.permute.xlu0 %4024
  %4026 = vrot.lane.b32.xlu0 %v3999, 24
  %v4027 = vpop.permute.xlu0 %4026
  %vm4036 = vcmask 261312
  %4037 = vst.msk [vmem:[#allocation2] sm:$0xff] %vm4036, %v4013
  %4038 = vst.msk [vmem:[#allocation2 + $0x8] sm:$0xff] %vm4036, %v4015
  %4039 = vst.msk [vmem:[#allocation2 + $0x10] sm:$0xff] %vm4036, %v4017
  %4040 = vst.msk [vmem:[#allocation2 + $0x18] sm:$0xff] %vm4036, %v4019
  %4041 = vst.msk [vmem:[#allocation2 + $0x20] sm:$0xff] %vm4036, %v4021
  %4042 = vst.msk [vmem:[#allocation2 + $0x28] sm:$0xff] %vm4036, %v4023
  %4043 = vst.msk [vmem:[#allocation2 + $0x30] sm:$0xff] %vm4036, %v4025
  %4044 = vst.msk [vmem:[#allocation2 + $0x38] sm:$0xff] %vm4036, %v4027
  %v4045 = vld [vmem:[#allocation2] sm:$0xff]
  %v4046 = vld [vmem:[#allocation2 + $0x8] sm:$0xff]
  %v4047 = vld [vmem:[#allocation2 + $0x10] sm:$0xff]
  %v4048 = vld [vmem:[#allocation2 + $0x18] sm:$0xff]
  %v4049 = vld [vmem:[#allocation2 + $0x20] sm:$0xff]
  %v4050 = vld [vmem:[#allocation2 + $0x28] sm:$0xff]
  %v4051 = vld [vmem:[#allocation2 + $0x30] sm:$0xff]
  %v4052 = vld [vmem:[#allocation2 + $0x38] sm:$0xff]
  %v4053 = vpack.c.bf16 %v4046, %v4045
  %v4054 = vpack.c.bf16 %v4048, %v4047
  %v4055 = vpack.c.bf16 %v4050, %v4049
  %v4056 = vpack.c.bf16 %v4052, %v4051
  %v4057 = vld [vmem:[%s5] sm:$0xf]
  %v4058 = vld [vmem:[%s5 + $0x4] sm:$0xf]
  %v4059 = vld [vmem:[%s5 + $0x8] sm:$0xf]
  %v4060 = vld [vmem:[%s5 + $0xc] sm:$0xf]
  %v4061 = vld [vmem:[%s6] sm:$0x1]
  %v4063 = vlaneseq
  %v4064 = vshrl.u32 %v4063, 7
  %v4065 = vsub.s32 0, %v4064
  %v4066 = vrot.slane %v4061, %v4065
  %v4072 = vunpack.c.l.b16 %v4057
  %v4073 = vunpack.c.l.b16 %v4058
  %v4074 = vunpack.c.l.b16 %v4059
  %v4075 = vunpack.c.l.b16 %v4060
  %v4076 = vpack.c.b16 %v4073, %v4072
  %v4077 = vpack.c.b16 %v4075, %v4074
  %v4081 = vsel %vm55, %v4053, 0
  %v4084 = vsel %vm55, %v4054, 0
  %v4087 = vsel %vm55, %v4055, 0
  %v4090 = vsel %vm55, %v4056, 0
  %4092 = vmatprep.subr.bf16.mxu0 0
  %4093 = vmatpush1.bf16.msra.mxu0 0
  %4094 = vmatprep.subr.bf16.mxu0 0
  %4095 = vmatpush1.bf16.msra.mxu0 0
  %4096 = vmatprep.subr.bf16.mxu0 0
  %4097 = vmatpush1.bf16.msra.mxu0 0
  %4098 = vmatprep.subr.bf16.mxu0 0
  %4099 = vmatpush1.bf16.msra.mxu0 0
  %4100 = vmatprep.subr.bf16.mxu0 0
  %4101 = vmatpush1.bf16.msra.mxu0 0
  %4102 = vmatprep.subr.bf16.mxu0 0
  %4103 = vmatpush1.bf16.msra.mxu0 0
  %4104 = vmatprep.subr.bf16.mxu0 0
  %4105 = vmatpush1.bf16.msra.mxu0 %v4077
  %4106 = vmatprep.subr.bf16.mxu0 0
  %4107 = vmatpush1.bf16.msra.mxu0 %v4076
  %4108 = vmatprep.subr.bf16.mxu0 0
  %4109 = vmatpush2.bf16.msra.mxu0 0
  %4110 = vmatprep.subr.bf16.mxu0 0
  %4111 = vmatpush2.bf16.msra.mxu0 0
  %4112 = vmatprep.subr.bf16.mxu0 0
  %4113 = vmatpush2.bf16.msra.mxu0 0
  %4114 = vmatprep.subr.bf16.mxu0 0
  %4115 = vmatpush2.bf16.msra.mxu0 0
  %4116 = vmatprep.subr.bf16.mxu0 0
  %4117 = vmatpush2.bf16.msra.mxu0 0
  %4118 = vmatprep.subr.bf16.mxu0 0
  %4119 = vmatpush2.bf16.msra.mxu0 0
  %4120 = vmatprep.subr.bf16.mxu0 0
  %4121 = vmatpush2.bf16.msra.mxu0 0
  %4122 = vmatprep.subr.bf16.mxu0 0
  %4123 = vmatpush2.bf16.msra.mxu0 0
  %4124 = vmatprep.mubr.bf16.mxu0 0
  %4125 = vmatmul.mubr.bf16.gmra.mxu0 %v4081
  %v4126 = vpop.f32.mrf.mxu0
  %v4127 = vadd.f32 %v4066, %v4126
  %v4128 = vpop.f32.mrf.mxu0
  %v4129 = vpop.f32.mrf.mxu0
  %v4130 = vadd.f32 %v4066, %v4129
  %v4131 = vpop.f32.mrf.mxu0
  %4132 = vmatprep.mubr.bf16.mxu0 0
  %4133 = vmatmul.mubr.bf16.gmra.mxu0 %v4084
  %v4134 = vpop.f32.mrf.mxu0
  %v4135 = vadd.f32 %v4066, %v4134
  %v4136 = vpop.f32.mrf.mxu0
  %v4137 = vpop.f32.mrf.mxu0
  %v4138 = vadd.f32 %v4066, %v4137
  %v4139 = vpop.f32.mrf.mxu0
  %4140 = vmatprep.mubr.bf16.mxu0 0
  %4141 = vmatmul.mubr.bf16.gmra.mxu0 %v4087
  %v4142 = vpop.f32.mrf.mxu0
  %v4143 = vadd.f32 %v4066, %v4142
  %v4144 = vpop.f32.mrf.mxu0
  %v4145 = vpop.f32.mrf.mxu0
  %v4146 = vadd.f32 %v4066, %v4145
  %v4147 = vpop.f32.mrf.mxu0
  %4148 = vmatprep.mubr.bf16.mxu0 0
  %4149 = vmatmul.mubr.bf16.gmra.mxu0 %v4090
  %v4150 = vpop.f32.mrf.mxu0
  %v4151 = vadd.f32 %v4066, %v4150
  %v4152 = vpop.f32.mrf.mxu0
  %v4153 = vpop.f32.mrf.mxu0
  %v4154 = vadd.f32 %v4066, %v4153
  %v4155 = vpop.f32.mrf.mxu0
  %4156 = vdwg.mxu0
  %v4157 = vadd.f32 %v45, %v4127
  %v4158 = vadd.f32 %v46, %v4130
  %v4159 = vadd.f32 %v47, %v4135
  %v4160 = vadd.f32 %v48, %v4138
  %v4161 = vadd.f32 %v49, %v4143
  %v4162 = vadd.f32 %v50, %v4146
  %v4163 = vadd.f32 %v51, %v4151
  %v4164 = vadd.f32 %v52, %v4154
  %v4165 = vld [vmem:[%s7] sm:$0x1]
  %v4166 = vld [vmem:[%s8] sm:$0x1]
  %v4167 = vsel %vm55, %v4157, 0.0
  %4168 = vadd.xlane.f32.xlu0 %v4167
  %v4169 = vpop.xlane.xlu0 %4168
  %v4170 = vsel %vm55, %v4158, 0.0
  %4171 = vadd.xlane.f32.xlu0 %v4170
  %v4172 = vpop.xlane.xlu0 %4171
  %v4173 = vsel %vm55, %v4159, 0.0
  %4174 = vadd.xlane.f32.xlu0 %v4173
  %v4175 = vpop.xlane.xlu0 %4174
  %v4176 = vsel %vm55, %v4160, 0.0
  %4177 = vadd.xlane.f32.xlu0 %v4176
  %v4178 = vpop.xlane.xlu0 %4177
  %v4179 = vsel %vm55, %v4161, 0.0
  %4180 = vadd.xlane.f32.xlu0 %v4179
  %v4181 = vpop.xlane.xlu0 %4180
  %v4182 = vsel %vm55, %v4162, 0.0
  %4183 = vadd.xlane.f32.xlu0 %v4182
  %v4184 = vpop.xlane.xlu0 %4183
  %v4185 = vsel %vm55, %v4163, 0.0
  %4186 = vadd.xlane.f32.xlu0 %v4185
  %v4187 = vpop.xlane.xlu0 %4186
  %v4188 = vsel %vm55, %v4164, 0.0
  %4189 = vadd.xlane.f32.xlu0 %v4188
  %v4190 = vpop.xlane.xlu0 %4189
  %v4191 = vmul.f32 %v4169, %v80
  %v4192 = vmul.f32 %v4172, %v80
  %v4193 = vmul.f32 %v4175, %v80
  %v4194 = vmul.f32 %v4178, %v80
  %v4195 = vmul.f32 %v4181, %v80
  %v4196 = vmul.f32 %v4184, %v80
  %v4197 = vmul.f32 %v4187, %v80
  %v4198 = vmul.f32 %v4190, %v80
  %v4199 = vsub.f32 %v4157, %v4191
  %v4200 = vsub.f32 %v4158, %v4192
  %v4201 = vsub.f32 %v4159, %v4193
  %v4202 = vsub.f32 %v4160, %v4194
  %v4203 = vsub.f32 %v4161, %v4195
  %v4204 = vsub.f32 %v4162, %v4196
  %v4205 = vsub.f32 %v4163, %v4197
  %v4206 = vsub.f32 %v4164, %v4198
  %v4207 = vmul.f32 %v4199, %v4199
  %v4208 = vmul.f32 %v4200, %v4200
  %v4209 = vmul.f32 %v4201, %v4201
  %v4210 = vmul.f32 %v4202, %v4202
  %v4211 = vmul.f32 %v4203, %v4203
  %v4212 = vmul.f32 %v4204, %v4204
  %v4213 = vmul.f32 %v4205, %v4205
  %v4214 = vmul.f32 %v4206, %v4206
  %v4215 = vsel %vm55, %v4207, 0.0
  %4216 = vadd.xlane.f32.xlu0 %v4215
  %v4217 = vpop.xlane.xlu0 %4216
  %v4218 = vsel %vm55, %v4208, 0.0
  %4219 = vadd.xlane.f32.xlu0 %v4218
  %v4220 = vpop.xlane.xlu0 %4219
  %v4221 = vsel %vm55, %v4209, 0.0
  %4222 = vadd.xlane.f32.xlu0 %v4221
  %v4223 = vpop.xlane.xlu0 %4222
  %v4224 = vsel %vm55, %v4210, 0.0
  %4225 = vadd.xlane.f32.xlu0 %v4224
  %v4226 = vpop.xlane.xlu0 %4225
  %v4227 = vsel %vm55, %v4211, 0.0
  %4228 = vadd.xlane.f32.xlu0 %v4227
  %v4229 = vpop.xlane.xlu0 %4228
  %v4230 = vsel %vm55, %v4212, 0.0
  %4231 = vadd.xlane.f32.xlu0 %v4230
  %v4232 = vpop.xlane.xlu0 %4231
  %v4233 = vsel %vm55, %v4213, 0.0
  %4234 = vadd.xlane.f32.xlu0 %v4233
  %v4235 = vpop.xlane.xlu0 %4234
  %v4236 = vsel %vm55, %v4214, 0.0
  %4237 = vadd.xlane.f32.xlu0 %v4236
  %v4238 = vpop.xlane.xlu0 %4237
  %v4239 = vmul.f32 %v4217, %v80
  %v4240 = vmul.f32 %v4220, %v80
  %v4241 = vmul.f32 %v4223, %v80
  %v4242 = vmul.f32 %v4226, %v80
  %v4243 = vmul.f32 %v4229, %v80
  %v4244 = vmul.f32 %v4232, %v80
  %v4245 = vmul.f32 %v4235, %v80
  %v4246 = vmul.f32 %v4238, %v80
  %v4247 = vadd.f32 %v4239, 1e-05
  %v4248 = vadd.f32 %v4240, 1e-05
  %v4249 = vadd.f32 %v4241, 1e-05
  %v4250 = vadd.f32 %v4242, 1e-05
  %v4251 = vadd.f32 %v4243, 1e-05
  %v4252 = vadd.f32 %v4244, 1e-05
  %v4253 = vadd.f32 %v4245, 1e-05
  %v4254 = vadd.f32 %v4246, 1e-05
  %v4255 = vrsqrt.pop %v4247
  %v4256 = vrsqrt.pop %v4248
  %v4257 = vrsqrt.pop %v4249
  %v4258 = vrsqrt.pop %v4250
  %v4259 = vrsqrt.pop %v4251
  %v4260 = vrsqrt.pop %v4252
  %v4261 = vrsqrt.pop %v4253
  %v4262 = vrsqrt.pop %v4254
  %v4263 = vmul.f32 %v4199, %v4255
  %v4264 = vmul.f32 %v4200, %v4256
  %v4265 = vmul.f32 %v4201, %v4257
  %v4266 = vmul.f32 %v4202, %v4258
  %v4267 = vmul.f32 %v4203, %v4259
  %v4268 = vmul.f32 %v4204, %v4260
  %v4269 = vmul.f32 %v4205, %v4261
  %v4270 = vmul.f32 %v4206, %v4262
  %v4272 = vlaneseq
  %v4273 = vshrl.u32 %v4272, 7
  %v4274 = vsub.s32 0, %v4273
  %v4275 = vrot.slane %v4165, %v4274
  %v4277 = vmul.f32 %v4263, %v4275
  %v4278 = vmul.f32 %v4264, %v4275
  %v4279 = vmul.f32 %v4265, %v4275
  %v4280 = vmul.f32 %v4266, %v4275
  %v4281 = vmul.f32 %v4267, %v4275
  %v4282 = vmul.f32 %v4268, %v4275
  %v4283 = vmul.f32 %v4269, %v4275
  %v4284 = vmul.f32 %v4270, %v4275
  %v4286 = vlaneseq
  %v4287 = vshrl.u32 %v4286, 7
  %v4288 = vsub.s32 0, %v4287
  %v4289 = vrot.slane %v4166, %v4288
  %v4291 = vadd.f32 %v4277, %v4289
  %v4292 = vadd.f32 %v4278, %v4289
  %v4293 = vadd.f32 %v4279, %v4289
  %v4294 = vadd.f32 %v4280, %v4289
  %v4295 = vadd.f32 %v4281, %v4289
  %v4296 = vadd.f32 %v4282, %v4289
  %v4297 = vadd.f32 %v4283, %v4289
  %v4298 = vadd.f32 %v4284, %v4289
  %v4299 = vpack.c.bf16 %v4292, %v4291
  %v4300 = vpack.c.bf16 %v4294, %v4293
  %v4301 = vpack.c.bf16 %v4296, %v4295
  %v4302 = vpack.c.bf16 %v4298, %v4297
  %v4303 = vld [vmem:[%s9] sm:$0xf]
  %v4304 = vld [vmem:[%s9 + $0x4] sm:$0xf]
  %v4305 = vld [vmem:[%s9 + $0x8] sm:$0xf]
  %v4306 = vld [vmem:[%s9 + $0xc] sm:$0xf]
  %v4307 = vld [vmem:[%s10] sm:$0x1]
  %v4309 = vlaneseq
  %v4310 = vshrl.u32 %v4309, 7
  %v4311 = vsub.s32 0, %v4310
  %v4312 = vrot.slane %v4307, %v4311
  %v4318 = vunpack.c.l.b16 %v4303
  %v4319 = vunpack.c.l.b16 %v4304
  %v4320 = vunpack.c.l.b16 %v4305
  %v4321 = vunpack.c.l.b16 %v4306
  %v4322 = vpack.c.b16 %v4319, %v4318
  %v4323 = vpack.c.b16 %v4321, %v4320
  %v4327 = vsel %vm55, %v4299, 0
  %v4330 = vsel %vm55, %v4300, 0
  %v4333 = vsel %vm55, %v4301, 0
  %v4336 = vsel %vm55, %v4302, 0
  %4338 = vmatprep.subr.bf16.mxu0 0
  %4339 = vmatpush1.bf16.msra.mxu0 0
  %4340 = vmatprep.subr.bf16.mxu0 0
  %4341 = vmatpush1.bf16.msra.mxu0 0
  %4342 = vmatprep.subr.bf16.mxu0 0
  %4343 = vmatpush1.bf16.msra.mxu0 0
  %4344 = vmatprep.subr.bf16.mxu0 0
  %4345 = vmatpush1.bf16.msra.mxu0 0
  %4346 = vmatprep.subr.bf16.mxu0 0
  %4347 = vmatpush1.bf16.msra.mxu0 0
  %4348 = vmatprep.subr.bf16.mxu0 0
  %4349 = vmatpush1.bf16.msra.mxu0 0
  %4350 = vmatprep.subr.bf16.mxu0 0
  %4351 = vmatpush1.bf16.msra.mxu0 %v4323
  %4352 = vmatprep.subr.bf16.mxu0 0
  %4353 = vmatpush1.bf16.msra.mxu0 %v4322
  %4354 = vmatprep.subr.bf16.mxu0 0
  %4355 = vmatpush2.bf16.msra.mxu0 0
  %4356 = vmatprep.subr.bf16.mxu0 0
  %4357 = vmatpush2.bf16.msra.mxu0 0
  %4358 = vmatprep.subr.bf16.mxu0 0
  %4359 = vmatpush2.bf16.msra.mxu0 0
  %4360 = vmatprep.subr.bf16.mxu0 0
  %4361 = vmatpush2.bf16.msra.mxu0 0
  %4362 = vmatprep.subr.bf16.mxu0 0
  %4363 = vmatpush2.bf16.msra.mxu0 0
  %4364 = vmatprep.subr.bf16.mxu0 0
  %4365 = vmatpush2.bf16.msra.mxu0 0
  %4366 = vmatprep.subr.bf16.mxu0 0
  %4367 = vmatpush2.bf16.msra.mxu0 0
  %4368 = vmatprep.subr.bf16.mxu0 0
  %4369 = vmatpush2.bf16.msra.mxu0 0
  %4370 = vmatprep.mubr.bf16.mxu0 0
  %4371 = vmatmul.mubr.bf16.gmra.mxu0 %v4327
  %v4372 = vpop.f32.mrf.mxu0
  %v4373 = vadd.f32 %v4312, %v4372
  %v4374 = vpop.f32.mrf.mxu0
  %v4375 = vpop.f32.mrf.mxu0
  %v4376 = vadd.f32 %v4312, %v4375
  %v4377 = vpop.f32.mrf.mxu0
  %4378 = vmatprep.mubr.bf16.mxu0 0
  %4379 = vmatmul.mubr.bf16.gmra.mxu0 %v4330
  %v4380 = vpop.f32.mrf.mxu0
  %v4381 = vadd.f32 %v4312, %v4380
  %v4382 = vpop.f32.mrf.mxu0
  %v4383 = vpop.f32.mrf.mxu0
  %v4384 = vadd.f32 %v4312, %v4383
  %v4385 = vpop.f32.mrf.mxu0
  %4386 = vmatprep.mubr.bf16.mxu0 0
  %4387 = vmatmul.mubr.bf16.gmra.mxu0 %v4333
  %v4388 = vpop.f32.mrf.mxu0
  %v4389 = vadd.f32 %v4312, %v4388
  %v4390 = vpop.f32.mrf.mxu0
  %v4391 = vpop.f32.mrf.mxu0
  %v4392 = vadd.f32 %v4312, %v4391
  %v4393 = vpop.f32.mrf.mxu0
  %4394 = vmatprep.mubr.bf16.mxu0 0
  %4395 = vmatmul.mubr.bf16.gmra.mxu0 %v4336
  %v4396 = vpop.f32.mrf.mxu0
  %v4397 = vadd.f32 %v4312, %v4396
  %v4398 = vpop.f32.mrf.mxu0
  %v4399 = vpop.f32.mrf.mxu0
  %v4400 = vadd.f32 %v4312, %v4399
  %v4401 = vpop.f32.mrf.mxu0
  %4402 = vdwg.mxu0
  %v4403 = vmul.f32 %v4373, 0.5
  %v4404 = vmul.f32 %v4376, 0.5
  %v4405 = vmul.f32 %v4381, 0.5
  %v4406 = vmul.f32 %v4384, 0.5
  %v4407 = vmul.f32 %v4389, 0.5
  %v4408 = vmul.f32 %v4392, 0.5
  %v4409 = vmul.f32 %v4397, 0.5
  %v4410 = vmul.f32 %v4400, 0.5
  %v4411 = vmul.f32 %v4373, 0.044715
  %v4412 = vmul.f32 %v4376, 0.044715
  %v4413 = vmul.f32 %v4381, 0.044715
  %v4414 = vmul.f32 %v4384, 0.044715
  %v4415 = vmul.f32 %v4389, 0.044715
  %v4416 = vmul.f32 %v4392, 0.044715
  %v4417 = vmul.f32 %v4397, 0.044715
  %v4418 = vmul.f32 %v4400, 0.044715
  %v4419 = vmul.f32 %v4411, %v4373
  %v4420 = vmul.f32 %v4412, %v4376
  %v4421 = vmul.f32 %v4413, %v4381
  %v4422 = vmul.f32 %v4414, %v4384
  %v4423 = vmul.f32 %v4415, %v4389
  %v4424 = vmul.f32 %v4416, %v4392
  %v4425 = vmul.f32 %v4417, %v4397
  %v4426 = vmul.f32 %v4418, %v4400
  %v4427 = vmul.f32 %v4419, %v4373
  %v4428 = vmul.f32 %v4420, %v4376
  %v4429 = vmul.f32 %v4421, %v4381
  %v4430 = vmul.f32 %v4422, %v4384
  %v4431 = vmul.f32 %v4423, %v4389
  %v4432 = vmul.f32 %v4424, %v4392
  %v4433 = vmul.f32 %v4425, %v4397
  %v4434 = vmul.f32 %v4426, %v4400
  %v4435 = vadd.f32 %v4373, %v4427
  %v4436 = vadd.f32 %v4376, %v4428
  %v4437 = vadd.f32 %v4381, %v4429
  %v4438 = vadd.f32 %v4384, %v4430
  %v4439 = vadd.f32 %v4389, %v4431
  %v4440 = vadd.f32 %v4392, %v4432
  %v4441 = vadd.f32 %v4397, %v4433
  %v4442 = vadd.f32 %v4400, %v4434
  %v4443 = vmul.f32 %v4435, 0.7978846
  %v4444 = vmul.f32 %v4436, 0.7978846
  %v4445 = vmul.f32 %v4437, 0.7978846
  %v4446 = vmul.f32 %v4438, 0.7978846
  %v4447 = vmul.f32 %v4439, 0.7978846
  %v4448 = vmul.f32 %v4440, 0.7978846
  %v4449 = vmul.f32 %v4441, 0.7978846
  %v4450 = vmul.f32 %v4442, 0.7978846
  %v4451 = vtanh.pop %v4443
  %v4452 = vtanh.pop %v4444
  %v4453 = vtanh.pop %v4445
  %v4454 = vtanh.pop %v4446
  %v4455 = vtanh.pop %v4447
  %v4456 = vtanh.pop %v4448
  %v4457 = vtanh.pop %v4449
  %v4458 = vtanh.pop %v4450
  %v4459 = vadd.f32 %v4451, 1.0
  %v4460 = vadd.f32 %v4452, 1.0
  %v4461 = vadd.f32 %v4453, 1.0
  %v4462 = vadd.f32 %v4454, 1.0
  %v4463 = vadd.f32 %v4455, 1.0
  %v4464 = vadd.f32 %v4456, 1.0
  %v4465 = vadd.f32 %v4457, 1.0
  %v4466 = vadd.f32 %v4458, 1.0
  %v4467 = vmul.f32 %v4403, %v4459
  %v4468 = vmul.f32 %v4404, %v4460
  %v4469 = vmul.f32 %v4405, %v4461
  %v4470 = vmul.f32 %v4406, %v4462
  %v4471 = vmul.f32 %v4407, %v4463
  %v4472 = vmul.f32 %v4408, %v4464
  %v4473 = vmul.f32 %v4409, %v4465
  %v4474 = vmul.f32 %v4410, %v4466
  %v4475 = vpack.c.bf16 %v4468, %v4467
  %v4476 = vpack.c.bf16 %v4470, %v4469
  %v4477 = vpack.c.bf16 %v4472, %v4471
  %v4478 = vpack.c.bf16 %v4474, %v4473
  %v4479 = vld [vmem:[%s11] sm:$0xf]
  %v4480 = vld [vmem:[%s11 + $0x4] sm:$0xf]
  %v4481 = vld [vmem:[%s11 + $0x8] sm:$0xf]
  %v4482 = vld [vmem:[%s11 + $0xc] sm:$0xf]
  %v4483 = vld [vmem:[%s11 + $0x10] sm:$0xf]
  %v4484 = vld [vmem:[%s11 + $0x14] sm:$0xf]
  %v4485 = vld [vmem:[%s11 + $0x18] sm:$0xf]
  %v4486 = vld [vmem:[%s11 + $0x1c] sm:$0xf]
  %v4487 = vld [vmem:[%s11 + $0x20] sm:$0xf]
  %v4488 = vld [vmem:[%s11 + $0x24] sm:$0xf]
  %v4489 = vld [vmem:[%s11 + $0x28] sm:$0xf]
  %v4490 = vld [vmem:[%s11 + $0x2c] sm:$0xf]
  %v4491 = vld [vmem:[%s11 + $0x30] sm:$0xf]
  %v4492 = vld [vmem:[%s11 + $0x34] sm:$0xf]
  %v4493 = vld [vmem:[%s11 + $0x38] sm:$0xf]
  %v4494 = vld [vmem:[%s11 + $0x3c] sm:$0xf]
  %v4495 = vld [vmem:[%s12] sm:$0x1]
  %v4497 = vlaneseq
  %v4498 = vshrl.u32 %v4497, 7
  %v4499 = vsub.s32 0, %v4498
  %v4500 = vrot.slane %v4495, %v4499
  %v4518 = vunpack.c.l.b16 %v4479
  %v4519 = vunpack.c.l.b16 %v4480
  %v4520 = vunpack.c.l.b16 %v4481
  %v4521 = vunpack.c.l.b16 %v4482
  %v4522 = vunpack.c.l.b16 %v4483
  %v4523 = vunpack.c.l.b16 %v4484
  %v4524 = vunpack.c.l.b16 %v4485
  %v4525 = vunpack.c.l.b16 %v4486
  %v4526 = vunpack.c.l.b16 %v4487
  %v4527 = vunpack.c.l.b16 %v4488
  %v4528 = vunpack.c.l.b16 %v4489
  %v4529 = vunpack.c.l.b16 %v4490
  %v4530 = vunpack.c.l.b16 %v4491
  %v4531 = vunpack.c.l.b16 %v4492
  %v4532 = vunpack.c.l.b16 %v4493
  %v4533 = vunpack.c.l.b16 %v4494
  %v4534 = vpack.c.b16 %v4519, %v4518
  %v4535 = vpack.c.b16 %v4521, %v4520
  %v4536 = vpack.c.b16 %v4523, %v4522
  %v4537 = vpack.c.b16 %v4525, %v4524
  %v4538 = vpack.c.b16 %v4527, %v4526
  %v4539 = vpack.c.b16 %v4529, %v4528
  %v4540 = vpack.c.b16 %v4531, %v4530
  %v4541 = vpack.c.b16 %v4533, %v4532
  %4550 = vmatprep.subr.bf16.mxu0 0
  %4551 = vmatpush1.bf16.msra.mxu0 %v4541
  %4552 = vmatprep.subr.bf16.mxu0 0
  %4553 = vmatpush1.bf16.msra.mxu0 %v4540
  %4554 = vmatprep.subr.bf16.mxu0 0
  %4555 = vmatpush1.bf16.msra.mxu0 %v4539
  %4556 = vmatprep.subr.bf16.mxu0 0
  %4557 = vmatpush1.bf16.msra.mxu0 %v4538
  %4558 = vmatprep.subr.bf16.mxu0 0
  %4559 = vmatpush1.bf16.msra.mxu0 %v4537
  %4560 = vmatprep.subr.bf16.mxu0 0
  %4561 = vmatpush1.bf16.msra.mxu0 %v4536
  %4562 = vmatprep.subr.bf16.mxu0 0
  %4563 = vmatpush1.bf16.msra.mxu0 %v4535
  %4564 = vmatprep.subr.bf16.mxu0 0
  %4565 = vmatpush1.bf16.msra.mxu0 %v4534
  %4566 = vmatprep.subr.bf16.mxu0 0
  %4567 = vmatpush2.bf16.msra.mxu0 0
  %4568 = vmatprep.subr.bf16.mxu0 0
  %4569 = vmatpush2.bf16.msra.mxu0 0
  %4570 = vmatprep.subr.bf16.mxu0 0
  %4571 = vmatpush2.bf16.msra.mxu0 0
  %4572 = vmatprep.subr.bf16.mxu0 0
  %4573 = vmatpush2.bf16.msra.mxu0 0
  %4574 = vmatprep.subr.bf16.mxu0 0
  %4575 = vmatpush2.bf16.msra.mxu0 0
  %4576 = vmatprep.subr.bf16.mxu0 0
  %4577 = vmatpush2.bf16.msra.mxu0 0
  %4578 = vmatprep.subr.bf16.mxu0 0
  %4579 = vmatpush2.bf16.msra.mxu0 0
  %4580 = vmatprep.subr.bf16.mxu0 0
  %4581 = vmatpush2.bf16.msra.mxu0 0
  %4582 = vmatprep.mubr.bf16.mxu0 0
  %4583 = vmatmul.mubr.bf16.gmra.mxu0 %v4475
  %v4584 = vpop.f32.mrf.mxu0
  %v4585 = vadd.f32 %v4500, %v4584
  %v4586 = vpop.f32.mrf.mxu0
  %v4587 = vpop.f32.mrf.mxu0
  %v4588 = vadd.f32 %v4500, %v4587
  %v4589 = vpop.f32.mrf.mxu0
  %4590 = vmatprep.mubr.bf16.mxu0 0
  %4591 = vmatmul.mubr.bf16.gmra.mxu0 %v4476
  %v4592 = vpop.f32.mrf.mxu0
  %v4593 = vadd.f32 %v4500, %v4592
  %v4594 = vpop.f32.mrf.mxu0
  %v4595 = vpop.f32.mrf.mxu0
  %v4596 = vadd.f32 %v4500, %v4595
  %v4597 = vpop.f32.mrf.mxu0
  %4598 = vmatprep.mubr.bf16.mxu0 0
  %4599 = vmatmul.mubr.bf16.gmra.mxu0 %v4477
  %v4600 = vpop.f32.mrf.mxu0
  %v4601 = vadd.f32 %v4500, %v4600
  %v4602 = vpop.f32.mrf.mxu0
  %v4603 = vpop.f32.mrf.mxu0
  %v4604 = vadd.f32 %v4500, %v4603
  %v4605 = vpop.f32.mrf.mxu0
  %4606 = vmatprep.mubr.bf16.mxu0 0
  %4607 = vmatmul.mubr.bf16.gmra.mxu0 %v4478
  %v4608 = vpop.f32.mrf.mxu0
  %v4609 = vadd.f32 %v4500, %v4608
  %v4610 = vpop.f32.mrf.mxu0
  %v4611 = vpop.f32.mrf.mxu0
  %v4612 = vadd.f32 %v4500, %v4611
  %v4613 = vpop.f32.mrf.mxu0
  %4614 = vdwg.mxu0
  %v4615 = vadd.f32 %v4157, %v4585
  %v4616 = vadd.f32 %v4158, %v4588
  %v4617 = vadd.f32 %v4159, %v4593
  %v4618 = vadd.f32 %v4160, %v4596
  %v4619 = vadd.f32 %v4161, %v4601
  %v4620 = vadd.f32 %v4162, %v4604
  %v4621 = vadd.f32 %v4163, %v4609
  %v4622 = vadd.f32 %v4164, %v4612
  %4623 = vst.msk [vmem:[%s13] sm:$0xff] %vm55, %v4615
  %4624 = vst.msk [vmem:[%s13 + $0x8] sm:$0xff] %vm55, %v4616
  %4625 = vst.msk [vmem:[%s13 + $0x10] sm:$0xff] %vm55, %v4617
  %4626 = vst.msk [vmem:[%s13 + $0x18] sm:$0xff] %vm55, %v4618
  %4627 = vst.msk [vmem:[%s13 + $0x20] sm:$0xff] %vm55, %v4619
  %4628 = vst.msk [vmem:[%s13 + $0x28] sm:$0xff] %vm55, %v4620
  %4629 = vst.msk [vmem:[%s13 + $0x30] sm:$0xff] %vm55, %v4621
  %4630 = vst.msk [vmem:[%s13 + $0x38] sm:$0xff] %vm55, %v4622
  // Predicated region
  $region54: #{_lambda_.3} parent=0 // pred_check
    _
  $region55: #{_lambda_.3} parent=0 // pred_check_branch
    %4632 = sbr.rel (0) target = $region57
  $region56: #{_lambda_.3} parent=0 // pred_region
    _
  $region57: #{_lambda_.3} parent=0 // pred_fallthru
    _
  // Predicated region
  $region58: #{_lambda_.3} parent=0 // pred_check
    _
  $region59: #{_lambda_.3} parent=0 // pred_check_branch
    %4634 = sbr.rel (0) target = $region61
  $region60: #{_lambda_.3} parent=0 // pred_region
    _
  $region61: #{_lambda_.3} parent=0 // pred_fallthru
    _

</llo_original>
